<compile_context>
chip_gen: v5e
topology: v5e:2x2
jax: 0.10.0
libtpu: 0.0.40
codegen_flags: <defaults>
</compile_context>

<pallas_src>
import functools

import jax
import jax.numpy as jnp
from jax.experimental import pallas as pl
from jax.experimental.pallas import tpu as pltpu


def _round_up(x: int, m: int) -> int:
    return ((x + m - 1) // m) * m


# ---------------------------------------------------------------------------
# Kernel 1: atom-level update_network (hoisted before the gather)
#   updated = sigmoid(atom_features @ W_up + b_up)      grid = (Na_tiles,)
# ---------------------------------------------------------------------------
def atom_update_kernel(atom_ref,   # [tNa, Fa]  f32
                       w_up_ref,   # [Fa, Bp]   f32 (resident)
                       b_up_ref,   # [1, Bp]    f32 (resident)
                       out_ref):   # [tNa, Bp]  bf16
    h = jnp.dot(atom_ref[...], w_up_ref[...], preferred_element_type=jnp.float32)
    out_ref[...] = jax.nn.sigmoid(h + b_up_ref[...]).astype(out_ref.dtype)


# ---------------------------------------------------------------------------
# Kernel 2: sorted segment-sum scatter + fusion Linear + residual
#   grid = (num_work,)  where num_work = Nb_tiles + T_tiles (static upper bound)
#   scalar prefetch: bond_tile[w], triple_tile[w], is_first[w], is_last[w], valid[w]
# ---------------------------------------------------------------------------
def scatter_fuse_kernel(bond_sched_ref, trip_sched_ref, first_ref, last_ref, valid_ref,
                        basis_ref,    # [tT, Bp]    bf16 (sorted by center bond)
                        upd_ref,      # [tT, Bp]    bf16 (sorted gathered updated feats)
                        center_ref,   # [1, tT]     int32 sorted center bond ids
                        bond_ref,     # [tNb, FbP]  f32
                        w_fu_ref,     # [Bp, FbP]   f32 (resident)
                        b_fu_ref,     # [1, FbP]    f32 (resident)
                        out_ref,      # [tNb, FbP]  f32
                        acc_ref):     # [tNb, Bp]   f32 scratch (resident per bond tile)
    w = pl.program_id(0)
    tnb = acc_ref.shape[0]
    tt = basis_ref.shape[0]

    @pl.when(first_ref[w] == 1)
    def _init():
        acc_ref[...] = jnp.zeros_like(acc_ref)

    @pl.when(valid_ref[w] == 1)
    def _accumulate():
        bond_tile = bond_sched_ref[w]
        # messages for this triple tile (bf16; padded basis rows/cols are zero)
        msg = basis_ref[...] * upd_ref[...]                       # [tT, Bp] bf16
        # one-hot scatter matrix: sel[r, t] = (global_bond_row(r) == center[t])
        # loop-invariant iota; centers outside this bond tile (incl. pad sentinel) never match.
        rel = center_ref[...] - bond_tile * tnb                   # [1, tT] int32
        row = jax.lax.broadcasted_iota(jnp.int32, (tnb, tt), 0)   # [tNb, tT]
        sel = (row == rel).astype(jnp.bfloat16)                   # exact 0/1 in bf16
        acc_ref[...] += jnp.dot(sel, msg, preferred_element_type=jnp.float32)

    @pl.when(last_ref[w] == 1)
    def _finalize():
        fused = jnp.dot(acc_ref[...], w_fu_ref[...],
                        preferred_element_type=jnp.float32) + b_fu_ref[...]
        out_ref[...] = bond_ref[...] + fused


# ---------------------------------------------------------------------------
# Wrapper: atom update kernel -> gather/sort glue -> scatter+fuse kernel
# ---------------------------------------------------------------------------
def three_d_interaction(atom_features,        # [Na, Fa] f32
                        bond_features,        # [Nb, Fb] f32
                        three_body_basis,     # [T, B]   f32
                        bond_atom_indices,    # [Nb, 2]  int32
                        triple_bond_indices,  # [T, 2]   int32
                        params,               # w_update, b_update, w_fusion, b_fusion
                        *,
                        tile_t: int = 512,    # triples per tile (K of scatter matmul; 256-mult)
                        tile_nb: int = 512,   # bonds per tile
                        tile_na: int = 128):  # atoms per tile
    f32 = jnp.float32
    bf16 = jnp.bfloat16
    na, fa = atom_features.shape
    nb, fb = bond_features.shape
    t, b = three_body_basis.shape

    b_p = _round_up(b, 128)
    fb_p = _round_up(fb, 128)
    na_p = _round_up(na, tile_na)
    t_p = _round_up(t, tile_t)
    nb_p = _round_up(nb, tile_nb)
    nb_tiles = nb_p // tile_nb
    t_tiles = t_p // tile_t
    num_work = nb_tiles + t_tiles          # static bound on sorted-schedule length

    w_up = params["w_update"].astype(f32)
    b_up = jnp.asarray(params["b_update"], f32).reshape(1, -1)
    w_fu = params["w_fusion"].astype(f32)
    b_fu = jnp.asarray(params["b_fusion"], f32).reshape(1, -1)

    # --- kernel 1: atom-level update (Fa left unpadded; full-dim block is legal) ----------
    atoms_p = jnp.pad(atom_features.astype(f32), ((0, na_p - na), (0, 0)))
    w_up_p = jnp.pad(w_up, ((0, 0), (0, b_p - b)))
    b_up_p = jnp.pad(b_up, ((0, 0), (0, b_p - b)))

    updated = pl.pallas_call(
        atom_update_kernel,
        out_shape=jax.ShapeDtypeStruct((na_p, b_p), bf16),
        grid_spec=pltpu.PrefetchScalarGridSpec(
            num_scalar_prefetch=0,
            grid=(na_p // tile_na,),
            in_specs=[
                pl.BlockSpec((tile_na, fa), lambda i: (i, 0)),
                pl.BlockSpec((fa, b_p), lambda i: (0, 0)),
                pl.BlockSpec((1, b_p), lambda i: (0, 0)),
            ],
            out_specs=pl.BlockSpec((tile_na, b_p), lambda i: (i, 0)),
        ),
        compiler_params=pltpu.CompilerParams(
            dimension_semantics=("parallel",)),
    )(atoms_p, w_up_p, b_up_p)

    # --- JAX glue: gather updated feats at the third atom, sort triples by center bond ----
    third_idx = bond_atom_indices[triple_bond_indices[:, 1], 1]        # [T]
    upd_t = jnp.take(updated, third_idx, axis=0)                       # [T, Bp] bf16
    upd_t = jnp.pad(upd_t, ((0, t_p - t), (0, 0)))
    basis_t = jnp.pad(three_body_basis.astype(bf16),
                      ((0, t_p - t), (0, b_p - b)))                    # zero pad kills pads
    center = jnp.pad(triple_bond_indices[:, 0].astype(jnp.int32),
                     (0, t_p - t), constant_values=nb_p)               # sentinel sorts last

    order = jnp.argsort(center)
    center_s = center[order]
    basis_s = basis_t[order]
    upd_s = upd_t[order]

    # --- sorted-segment schedule (scalar prefetch arrays) ---------------------------------
    tile_starts = jnp.arange(nb_tiles, dtype=jnp.int32) * tile_nb
    lo = jnp.searchsorted(center_s, tile_starts, side="left").astype(jnp.int32)
    hi = jnp.searchsorted(center_s, tile_starts + tile_nb, side="left").astype(jnp.int32)
    ts = lo // tile_t
    te = jnp.where(hi > lo, (hi + tile_t - 1) // tile_t, ts)
    n_steps = jnp.maximum(te - ts, 1)          # every bond tile gets >= 1 step (init+finalize)
    cum = jnp.concatenate([jnp.zeros((1,), jnp.int32),
                           jnp.cumsum(n_steps).astype(jnp.int32)])
    total = cum[-1]                            # true number of work steps (<= num_work)

    w_ids = jnp.arange(num_work, dtype=jnp.int32)
    bond_of_w = jnp.clip(
        jnp.searchsorted(cum, w_ids, side="right").astype(jnp.int32) - 1, 0, nb_tiles - 1)
    step_in = w_ids - cum[bond_of_w]
    trip_of_w = jnp.clip(ts[bond_of_w] + step_in, 0, t_tiles - 1)
    valid_w = ((w_ids < total) & (hi[bond_of_w] > lo[bond_of_w])).astype(jnp.int32)
    first_w = ((step_in == 0) & (w_ids < total)).astype(jnp.int32)
    last_w = (w_ids == cum[bond_of_w + 1] - 1).astype(jnp.int32)

    bond_p = jnp.pad(bond_features.astype(f32), ((0, nb_p - nb), (0, fb_p - fb)))
    w_fu_p = jnp.pad(w_fu, ((0, b_p - b), (0, fb_p - fb)))
    b_fu_p = jnp.pad(b_fu, ((0, 0), (0, fb_p - fb)))
    center_2d = center_s.reshape(1, t_p)

    # --- kernel 2: scatter-sum (sorted) + fusion + residual --------------------------------
    out_p = pl.pallas_call(
        scatter_fuse_kernel,
        out_shape=jax.ShapeDtypeStruct((nb_p, fb_p), f32),
        grid_spec=pltpu.PrefetchScalarGridSpec(
            num_scalar_prefetch=5,
            grid=(num_work,),
            in_specs=[
                pl.BlockSpec((tile_t, b_p), lambda w, bo, tr, fs, ls, vl: (tr[w], 0)),
                pl.BlockSpec((tile_t, b_p), lambda w, bo, tr, fs, ls, vl: (tr[w], 0)),
                pl.BlockSpec((1, tile_t), lambda w, bo, tr, fs, ls, vl: (0, tr[w])),
                pl.BlockSpec((tile_nb, fb_p), lambda w, bo, tr, fs, ls, vl: (bo[w], 0)),
                pl.BlockSpec((b_p, fb_p), lambda w, bo, tr, fs, ls, vl: (0, 0)),
                pl.BlockSpec((1, fb_p), lambda w, bo, tr, fs, ls, vl: (0, 0)),
            ],
            out_specs=pl.BlockSpec((tile_nb, fb_p),
                                   lambda w, bo, tr, fs, ls, vl: (bo[w], 0)),
            scratch_shapes=[pltpu.VMEM((tile_nb, b_p), f32)],
        ),
        compiler_params=pltpu.CompilerParams(
            dimension_semantics=("arbitrary",),
            vmem_limit_bytes=48 * 1024 * 1024),
    )(bond_of_w, trip_of_w, first_w, last_w, valid_w,
      basis_s, upd_s, center_2d, bond_p, w_fu_p, b_fu_p)

    return out_p[:nb, :fb]


# ---------------------------------------------------------------------------
# Pure-JAX f32 reference (mirrors the PyTorch module exactly)
# ---------------------------------------------------------------------------
def reference(atom_features, bond_features, three_body_basis,
              bond_atom_indices, triple_bond_indices, params):
    third_idx = bond_atom_indices[triple_bond_indices[:, 1], 1]
    third = jax.nn.sigmoid(atom_features[third_idx] @ params["w_update"]
                           + params["b_update"].reshape(1, -1))
    messages = three_body_basis * third
    center = triple_bond_indices[:, 0]
    summed = jnp.zeros((bond_features.shape[0], messages.shape[1]), jnp.float32)
    summed = summed.at[center].add(messages)
    return bond_features + (summed @ params["w_fusion"] + params["b_fusion"].reshape(1, -1))


if __name__ == "__main__":
    def run_case(seed, num_atoms, num_bonds, num_triples, f_atom, f_bond, b_basis):
        key = jax.random.PRNGKey(seed)
        ks = jax.random.split(key, 9)
        atom_features = jax.random.normal(ks[0], (num_atoms, f_atom), jnp.float32)
        bond_features = jax.random.normal(ks[1], (num_bonds, f_bond), jnp.float32)
        three_body_basis = jax.random.normal(ks[2], (num_triples, b_basis), jnp.float32)
        bond_atom_indices = jax.random.randint(
            ks[3], (num_bonds, 2), 0, num_atoms, dtype=jnp.int32)
        triple_bond_indices = jax.random.randint(
            ks[4], (num_triples, 2), 0, num_bonds, dtype=jnp.int32)
        params = {
            "w_update": 0.1 * jax.random.normal(ks[5], (f_atom, b_basis), jnp.float32),
            "b_update": 0.1 * jax.random.normal(ks[6], (1, b_basis), jnp.float32),
            "w_fusion": 0.1 * jax.random.normal(ks[7], (b_basis, f_bond), jnp.float32),
            "b_fusion": 0.1 * jax.random.normal(ks[8], (1, f_bond), jnp.float32),
        }

        fn = jax.jit(functools.partial(three_d_interaction,
                                       tile_t=512, tile_nb=512, tile_na=128))
        out = fn(atom_features, bond_features, three_body_basis,
                 bond_atom_indices, triple_bond_indices, params)
        out = jax.block_until_ready(out)

        ref = reference(atom_features, bond_features, three_body_basis,
                        bond_atom_indices, triple_bond_indices, params)

        assert out.shape == (num_bonds, f_bond)
        # bf16 message/one-hot data path (f32 accumulation) -> ~1e-3 relative error vs f32 ref.
        max_diff = jnp.max(jnp.abs(out - ref))
        assert jnp.allclose(out, ref, atol=5e-2, rtol=5e-2), (
            "mismatch vs reference; max abs diff = %s" % max_diff)

    # multi-tile case: 3 bond tiles x 8 triple tiles (exercises the sorted schedule,
    # boundary triple tiles shared between bond tiles, and padding steps)
    run_case(0, num_atoms=300, num_bonds=1500, num_triples=4000,
             f_atom=16, f_bond=32, b_basis=32)
    # small single-tile case
    run_case(1, num_atoms=20, num_bonds=200, num_triples=300,
             f_atom=16, f_bond=32, b_basis=32)

    print("KERNEL_OK")
</pallas_src>

<mosaic_0001>
module attributes {stable_mosaic.version = 11 : i64} {
  func.func @atom_update_kernel(%arg0: i32, %arg1: memref<128x16xf32, #tpu.memory_space<vmem>>, %arg2: memref<16x128xf32, #tpu.memory_space<vmem>>, %arg3: memref<1x128xf32, #tpu.memory_space<vmem>>, %arg4: memref<128x128xbf16, #tpu.memory_space<vmem>>) attributes {dimension_semantics = [#tpu.dimension_semantics<parallel>], iteration_bounds = array<i64: 3>, scalar_prefetch = 0 : i64, scratch_operands = 0 : i64, tpu.core_type = #tpu.core_type<tc>, window_params = [{transform_indices = @transform_0, window_bounds = array<i64: 128, 16>}, {pipeline_mode = #tpu.pipeline_mode<synchronous>, transform_indices = @transform_1, window_bounds = array<i64: 16, 128>}, {pipeline_mode = #tpu.pipeline_mode<synchronous>, transform_indices = @transform_2, window_bounds = array<i64: 1, 128>}, {transform_indices = @transform_3, window_bounds = array<i64: 128, 128>}]} {
    %c0 = arith.constant 0 : index
    %c0_0 = arith.constant 0 : index
    %0 = vector.load %arg1[%c0, %c0_0] : memref<128x16xf32, #tpu.memory_space<vmem>>, vector<128x16xf32>
    %c0_1 = arith.constant 0 : index
    %c0_2 = arith.constant 0 : index
    %1 = vector.load %arg2[%c0_1, %c0_2] : memref<16x128xf32, #tpu.memory_space<vmem>>, vector<16x128xf32>
    %cst = arith.constant dense<0.000000e+00> : vector<128x128xf32>
    %2 = tpu.matmul %0, %1, %cst {dimension_numbers = #tpu.dot_dimension_numbers<[1], [0], [0], [1], [0, 0, 1, 1], [], []>} : vector<128x16xf32>, vector<16x128xf32>, vector<128x128xf32> -> vector<128x128xf32>
    %c0_3 = arith.constant 0 : index
    %c0_4 = arith.constant 0 : index
    %3 = vector.load %arg3[%c0_3, %c0_4] : memref<1x128xf32, #tpu.memory_space<vmem>>, vector<1x128xf32>
    %4 = vector.broadcast %3 : vector<1x128xf32> to vector<128x128xf32>
    %5 = arith.addf %2, %4 : vector<128x128xf32>
    %6 = arith.negf %5 : vector<128x128xf32>
    %7 = math.exp %6 : vector<128x128xf32>
    %cst_5 = arith.constant 1.000000e+00 : f32
    %8 = vector.broadcast %cst_5 : f32 to vector<128x128xf32>
    %9 = arith.addf %8, %7 : vector<128x128xf32>
    %10 = arith.divf %8, %9 : vector<128x128xf32>
    %11 = arith.truncf %10 : vector<128x128xf32> to vector<128x128xbf16>
    %c0_6 = arith.constant 0 : index
    %c0_7 = arith.constant 0 : index
    %12 = vector.load %arg4[%c0_6, %c0_7] : memref<128x128xbf16, #tpu.memory_space<vmem>>, vector<128x128xbf16>
    tpu.vector_store %arg4[%c0_6, %c0_7], %11 {strides = array<i32>} : memref<128x128xbf16, #tpu.memory_space<vmem>>, vector<128x128xbf16>,
    return
  }
  func.func @transform_0(%arg0: i32) -> (i32, i32) {
    %c0_i32 = arith.constant 0 : i32
    %c0_i32_0 = arith.constant 0 : i32
    return %arg0, %c0_i32 : i32, i32
  }
  func.func @transform_1(%arg0: i32) -> (i32, i32) {
    %c0_i32 = arith.constant 0 : i32
    %c0_i32_0 = arith.constant 0 : i32
    %c0_i32_1 = arith.constant 0 : i32
    return %c0_i32, %c0_i32_0 : i32, i32
  }
  func.func @transform_2(%arg0: i32) -> (i32, i32) {
    %c0_i32 = arith.constant 0 : i32
    %c0_i32_0 = arith.constant 0 : i32
    %c0_i32_1 = arith.constant 0 : i32
    return %c0_i32, %c0_i32_0 : i32, i32
  }
  func.func @transform_3(%arg0: i32) -> (i32, i32) {
    %c0_i32 = arith.constant 0 : i32
    %c0_i32_0 = arith.constant 0 : i32
    return %arg0, %c0_i32 : i32, i32
  }
}

module attributes {stable_mosaic.version = 11 : i64} {
  func.func @scatter_fuse_kernel(%arg0: i32, %arg1: memref<11xi32, #tpu.memory_space<smem>>, %arg2: memref<11xi32, #tpu.memory_space<smem>>, %arg3: memref<11xi32, #tpu.memory_space<smem>>, %arg4: memref<11xi32, #tpu.memory_space<smem>>, %arg5: memref<11xi32, #tpu.memory_space<smem>>, %arg6: memref<512x128xbf16, #tpu.memory_space<vmem>>, %arg7: memref<512x128xbf16, #tpu.memory_space<vmem>>, %arg8: memref<1x512xi32, #tpu.memory_space<vmem>>, %arg9: memref<512x128xf32, #tpu.memory_space<vmem>>, %arg10: memref<128x128xf32, #tpu.memory_space<vmem>>, %arg11: memref<1x128xf32, #tpu.memory_space<vmem>>, %arg12: memref<512x128xf32, #tpu.memory_space<vmem>>, %arg13: memref<512x128xf32, #tpu.memory_space<vmem>>) attributes {dimension_semantics = [#tpu.dimension_semantics<arbitrary>], iteration_bounds = array<i64: 11>, scalar_prefetch = 5 : i64, scratch_operands = 1 : i64, tpu.core_type = #tpu.core_type<tc>, window_params = [{transform_indices = @transform_0, window_bounds = array<i64: 512, 128>}, {transform_indices = @transform_1, window_bounds = array<i64: 512, 128>}, {transform_indices = @transform_2, window_bounds = array<i64: 1, 512>}, {transform_indices = @transform_3, window_bounds = array<i64: 512, 128>}, {pipeline_mode = #tpu.pipeline_mode<synchronous>, transform_indices = @transform_4, window_bounds = array<i64: 128, 128>}, {pipeline_mode = #tpu.pipeline_mode<synchronous>, transform_indices = @transform_5, window_bounds = array<i64: 1, 128>}, {transform_indices = @transform_6, window_bounds = array<i64: 512, 128>}]} {
    %0 = arith.index_cast %arg0 : i32 to index
    %1 = memref.load %arg3[%0] : memref<11xi32, #tpu.memory_space<smem>>
    %c1_i32 = arith.constant 1 : i32
    %2 = arith.cmpi eq, %1, %c1_i32 : i32
    %3 = arith.extui %2 : i1 to i32
    %c0_i32 = arith.constant 0 : i32
    %4 = arith.cmpi ne, %3, %c0_i32 : i32
    scf.if %4 {
      %cst = arith.constant 0.000000e+00 : f32
      %15 = vector.broadcast %cst : f32 to vector<512x128xf32>
      %c0 = arith.constant 0 : index
      %c0_4 = arith.constant 0 : index
      %16 = vector.load %arg13[%c0, %c0_4] : memref<512x128xf32, #tpu.memory_space<vmem>>, vector<512x128xf32>
      tpu.vector_store %arg13[%c0, %c0_4], %15 {strides = array<i32>} : memref<512x128xf32, #tpu.memory_space<vmem>>, vector<512x128xf32>,
    } else {
    }
    %5 = arith.index_cast %arg0 : i32 to index
    %6 = memref.load %arg5[%5] : memref<11xi32, #tpu.memory_space<smem>>
    %c1_i32_0 = arith.constant 1 : i32
    %7 = arith.cmpi eq, %6, %c1_i32_0 : i32
    %8 = arith.extui %7 : i1 to i32
    %c0_i32_1 = arith.constant 0 : i32
    %9 = arith.cmpi ne, %8, %c0_i32_1 : i32
    scf.if %9 {
      %15 = arith.index_cast %arg0 : i32 to index
      %16 = memref.load %arg1[%15] : memref<11xi32, #tpu.memory_space<smem>>
      %c0 = arith.constant 0 : index
      %c0_4 = arith.constant 0 : index
      %17 = vector.load %arg6[%c0, %c0_4] : memref<512x128xbf16, #tpu.memory_space<vmem>>, vector<512x128xbf16>
      %c0_5 = arith.constant 0 : index
      %c0_6 = arith.constant 0 : index
      %18 = vector.load %arg7[%c0_5, %c0_6] : memref<512x128xbf16, #tpu.memory_space<vmem>>, vector<512x128xbf16>
      %19 = arith.mulf %17, %18 : vector<512x128xbf16>
      %c0_7 = arith.constant 0 : index
      %c0_8 = arith.constant 0 : index
      %20 = vector.load %arg8[%c0_7, %c0_8] : memref<1x512xi32, #tpu.memory_space<vmem>>, vector<1x512xi32>
      %c512_i32 = arith.constant 512 : i32
      %21 = arith.muli %16, %c512_i32 : i32
      %22 = vector.broadcast %21 : i32 to vector<1x512xi32>
      %23 = arith.subi %20, %22 : vector<1x512xi32>
      %24 = tpu.iota {dimensions = array<i32: 0>} : vector<512x512xi32>
      %25 = vector.broadcast %23 : vector<1x512xi32> to vector<512x512xi32>
      %26 = arith.cmpi eq, %24, %25 : vector<512x512xi32>
      %27 = arith.extui %26 : vector<512x512xi1> to vector<512x512xi32>
      %28 = arith.sitofp %27 : vector<512x512xi32> to vector<512x512xf32>
      %29 = arith.truncf %28 : vector<512x512xf32> to vector<512x512xbf16>
      %c0_9 = arith.constant 0 : index
      %c0_10 = arith.constant 0 : index
      %30 = vector.load %arg13[%c0_9, %c0_10] : memref<512x128xf32, #tpu.memory_space<vmem>>, vector<512x128xf32>
      %cst = arith.constant dense<0.000000e+00> : vector<512x128xf32>
      %31 = tpu.matmul %29, %19, %cst {dimension_numbers = #tpu.dot_dimension_numbers<[1], [0], [0], [1], [0, 0, 1, 1], [], []>} : vector<512x512xbf16>, vector<512x128xbf16>, vector<512x128xf32> -> vector<512x128xf32>
      %32 = arith.addf %30, %31 : vector<512x128xf32>
      %c0_11 = arith.constant 0 : index
      %c0_12 = arith.constant 0 : index
      %33 = vector.load %arg13[%c0_11, %c0_12] : memref<512x128xf32, #tpu.memory_space<vmem>>, vector<512x128xf32>
      tpu.vector_store %arg13[%c0_11, %c0_12], %32 {strides = array<i32>} : memref<512x128xf32, #tpu.memory_space<vmem>>, vector<512x128xf32>,
    } else {
    }
    %10 = arith.index_cast %arg0 : i32 to index
    %11 = memref.load %arg4[%10] : memref<11xi32, #tpu.memory_space<smem>>
    %c1_i32_2 = arith.constant 1 : i32
    %12 = arith.cmpi eq, %11, %c1_i32_2 : i32
    %13 = arith.extui %12 : i1 to i32
    %c0_i32_3 = arith.constant 0 : i32
    %14 = arith.cmpi ne, %13, %c0_i32_3 : i32
    scf.if %14 {
      %c0 = arith.constant 0 : index
      %c0_4 = arith.constant 0 : index
      %15 = vector.load %arg13[%c0, %c0_4] : memref<512x128xf32, #tpu.memory_space<vmem>>, vector<512x128xf32>
      %c0_5 = arith.constant 0 : index
      %c0_6 = arith.constant 0 : index
      %16 = vector.load %arg10[%c0_5, %c0_6] : memref<128x128xf32, #tpu.memory_space<vmem>>, vector<128x128xf32>
      %cst = arith.constant dense<0.000000e+00> : vector<512x128xf32>
      %17 = tpu.matmul %15, %16, %cst {dimension_numbers = #tpu.dot_dimension_numbers<[1], [0], [0], [1], [0, 0, 1, 1], [], []>} : vector<512x128xf32>, vector<128x128xf32>, vector<512x128xf32> -> vector<512x128xf32>
      %c0_7 = arith.constant 0 : index
      %c0_8 = arith.constant 0 : index
      %18 = vector.load %arg11[%c0_7, %c0_8] : memref<1x128xf32, #tpu.memory_space<vmem>>, vector<1x128xf32>
      %19 = vector.broadcast %18 : vector<1x128xf32> to vector<512x128xf32>
      %20 = arith.addf %17, %19 : vector<512x128xf32>
      %c0_9 = arith.constant 0 : index
      %c0_10 = arith.constant 0 : index
      %21 = vector.load %arg9[%c0_9, %c0_10] : memref<512x128xf32, #tpu.memory_space<vmem>>, vector<512x128xf32>
      %22 = arith.addf %21, %20 : vector<512x128xf32>
      %c0_11 = arith.constant 0 : index
      %c0_12 = arith.constant 0 : index
      %23 = vector.load %arg12[%c0_11, %c0_12] : memref<512x128xf32, #tpu.memory_space<vmem>>, vector<512x128xf32>
      tpu.vector_store %arg12[%c0_11, %c0_12], %22 {strides = array<i32>} : memref<512x128xf32, #tpu.memory_space<vmem>>, vector<512x128xf32>,
    } else {
    }
    return
  }
  func.func @transform_0(%arg0: i32, %arg1: memref<11xi32, #tpu.memory_space<smem>>, %arg2: memref<11xi32, #tpu.memory_space<smem>>, %arg3: memref<11xi32, #tpu.memory_space<smem>>, %arg4: memref<11xi32, #tpu.memory_space<smem>>, %arg5: memref<11xi32, #tpu.memory_space<smem>>) -> (i32, i32) {
    %0 = arith.index_cast %arg0 : i32 to index
    %1 = memref.load %arg2[%0] : memref<11xi32, #tpu.memory_space<smem>>
    %c0_i32 = arith.constant 0 : i32
    %c0_i32_0 = arith.constant 0 : i32
    return %1, %c0_i32 : i32, i32
  }
  func.func @transform_1(%arg0: i32, %arg1: memref<11xi32, #tpu.memory_space<smem>>, %arg2: memref<11xi32, #tpu.memory_space<smem>>, %arg3: memref<11xi32, #tpu.memory_space<smem>>, %arg4: memref<11xi32, #tpu.memory_space<smem>>, %arg5: memref<11xi32, #tpu.memory_space<smem>>) -> (i32, i32) {
    %0 = arith.index_cast %arg0 : i32 to index
    %1 = memref.load %arg2[%0] : memref<11xi32, #tpu.memory_space<smem>>
    %c0_i32 = arith.constant 0 : i32
    %c0_i32_0 = arith.constant 0 : i32
    return %1, %c0_i32 : i32, i32
  }
  func.func @transform_2(%arg0: i32, %arg1: memref<11xi32, #tpu.memory_space<smem>>, %arg2: memref<11xi32, #tpu.memory_space<smem>>, %arg3: memref<11xi32, #tpu.memory_space<smem>>, %arg4: memref<11xi32, #tpu.memory_space<smem>>, %arg5: memref<11xi32, #tpu.memory_space<smem>>) -> (i32, i32) {
    %0 = arith.index_cast %arg0 : i32 to index
    %1 = memref.load %arg2[%0] : memref<11xi32, #tpu.memory_space<smem>>
    %c0_i32 = arith.constant 0 : i32
    %c0_i32_0 = arith.constant 0 : i32
    return %c0_i32, %1 : i32, i32
  }
  func.func @transform_3(%arg0: i32, %arg1: memref<11xi32, #tpu.memory_space<smem>>, %arg2: memref<11xi32, #tpu.memory_space<smem>>, %arg3: memref<11xi32, #tpu.memory_space<smem>>, %arg4: memref<11xi32, #tpu.memory_space<smem>>, %arg5: memref<11xi32, #tpu.memory_space<smem>>) -> (i32, i32) {
    %0 = arith.index_cast %arg0 : i32 to index
    %1 = memref.load %arg1[%0] : memref<11xi32, #tpu.memory_space<smem>>
    %c0_i32 = arith.constant 0 : i32
    %c0_i32_0 = arith.constant 0 : i32
    return %1, %c0_i32 : i32, i32
  }
  func.func @transform_4(%arg0: i32, %arg1: memref<11xi32, #tpu.memory_space<smem>>, %arg2: memref<11xi32, #tpu.memory_space<smem>>, %arg3: memref<11xi32, #tpu.memory_space<smem>>, %arg4: memref<11xi32, #tpu.memory_space<smem>>, %arg5: memref<11xi32, #tpu.memory_space<smem>>) -> (i32, i32) {
    %c0_i32 = arith.constant 0 : i32
    %c0_i32_0 = arith.constant 0 : i32
    %c0_i32_1 = arith.constant 0 : i32
    return %c0_i32, %c0_i32_0 : i32, i32
  }
  func.func @transform_5(%arg0: i32, %arg1: memref<11xi32, #tpu.memory_space<smem>>, %arg2: memref<11xi32, #tpu.memory_space<smem>>, %arg3: memref<11xi32, #tpu.memory_space<smem>>, %arg4: memref<11xi32, #tpu.memory_space<smem>>, %arg5: memref<11xi32, #tpu.memory_space<smem>>) -> (i32, i32) {
    %c0_i32 = arith.constant 0 : i32
    %c0_i32_0 = arith.constant 0 : i32
    %c0_i32_1 = arith.constant 0 : i32
    return %c0_i32, %c0_i32_0 : i32, i32
  }
  func.func @transform_6(%arg0: i32, %arg1: memref<11xi32, #tpu.memory_space<smem>>, %arg2: memref<11xi32, #tpu.memory_space<smem>>, %arg3: memref<11xi32, #tpu.memory_space<smem>>, %arg4: memref<11xi32, #tpu.memory_space<smem>>, %arg5: memref<11xi32, #tpu.memory_space<smem>>) -> (i32, i32) {
    %0 = arith.index_cast %arg0 : i32 to index
    %1 = memref.load %arg1[%0] : memref<11xi32, #tpu.memory_space<smem>>
    %c0_i32 = arith.constant 0 : i32
    %c0_i32_0 = arith.constant 0 : i32
    return %1, %c0_i32 : i32, i32
  }
}

</mosaic_0001>

<llo_original>
// kernel: custom-call.2
$region0: #{custom-call.2}
  %s0 = inlined_call_operand.vmem [shape: u32[3], index: 0, kind: output, shape index: {}]

// kernel: custom-call.6
$region0: #{custom-call.6}
  %s0 = inlined_call_operand.vmem [shape: u32[11], index: 0, kind: output, shape index: {}]

// kernel: three_d_interaction.2
$region0: #{three_d_interaction.2}
  #allocation0 [shape = 'u32[]', space=smem, size = 0x4, offset = 0x4, fixed_abs, tag = 'smem constant byte address 0x4 - core index']
  #allocation1 [shape = 'u32[72,128]{1,0:T(1,128)}', space=vmem, size = 0x9000, scoped, tag = 'internal scratch']
  %s0 = inlined_call_operand.vmem [shape: f32[384,16], index: 0, kind: input, shape index: {}]
  %s1 = inlined_call_operand.vmem [shape: f32[16,128], index: 1, kind: input, shape index: {}]
  %s2 = inlined_call_operand.vmem [shape: f32[1,128], index: 2, kind: input, shape index: {}]
  %s3 = inlined_call_operand.vmem [shape: bf16[384,128], index: 3, kind: output, shape index: {}]
  %s4 = sld [smem:[#allocation0]]
  $region45: #{three_d_interaction.2} parent=0
    _
  %s6 = ssub.s32 1, %s4
  %s7 = scalar_select 0, %s6, %s4
  loop: start=0, step=1, limit=5
  $region2: #{three_d_interaction.2} parent=0 // loop_pre_header
    _
  $region3: #{three_d_interaction.2} parent=0 // loop_header
    %s9 = sphi 0, %s13
    %p10 = scmp.ge.s32.totalorder %s9, 5
    %s19 = sphi 0, %s21
    %s22 = sphi 0, %s19
    %s23 = sphi 0, %s22
    %s39 = sphi 0, %s23
    %s43 = sphi 0, %s43
    %s45 = sphi 0, %s43
    %s46 = sphi 0, %s45
    %s60 = sphi 0, %s46
    %s64 = sphi 0, %s64
    %s66 = sphi 0, %s64
    %s67 = sphi 0, %s66
    %s81 = sphi 0, %s67
    %s87 = sphi 0, %s89
    %s90 = sphi 0, %s87
    %s91 = sphi 0, %s90
    %s107 = sphi 0, %s91
  $region4: #{three_d_interaction.2} parent=0 // loop_header_branch
    %12 = sbr.rel (%p10) target = $region8
  $region5: #{three_d_interaction.2} parent=0 // loop_body
    %s14 = ssub.s32 %s9, 1
    %s15 = ssub.s32 %s9, 2
    %s16 = sadd.s32 %s9, 1
    %s17 = ssub.s32 %s9, %s16
    %p18 = scmp.eq.s32.totalorder %s17, 0
    %s20 = sadd.s32 %s19, 1
    %s21 = scalar_select %p18, %s19, %s20
    %p24 = pneg %p18
    %p25 = scmp.eq.s32.totalorder %s9, 2
    %p26 = por %p24, %p25
    %p27 = scmp.ne.s32.totalorder %s19, %s22
    %p28 = scmp.eq.s32.totalorder %s9, 0
    %p29 = por %p27, %p28
    %p30 = scmp.ne.s32.totalorder %s19, %s22
    %p31 = scmp.eq.s32.totalorder %s14, 2
    %p32 = por %p30, %p31
    %p33 = scmp.ne.s32.totalorder %s22, %s23
    %p34 = scmp.eq.s32.totalorder %s14, 0
    %p35 = por %p33, %p34
    %p36 = scmp.ne.s32.totalorder %s22, %s23
    %p37 = scmp.eq.s32.totalorder %s15, 2
    %p38 = por %p36, %p37
    %p40 = scmp.ne.s32.totalorder %s23, %s39
    %p41 = scmp.eq.s32.totalorder %s15, 0
    %p42 = por %p40, %p41
    %s44 = sadd.s32 %s43, 1
    %p47 = scmp.eq.s32.totalorder %s9, 2
    %p48 = scmp.ne.s32.totalorder %s43, %s45
    %p49 = scmp.eq.s32.totalorder %s9, 0
    %p50 = por %p48, %p49
    %p51 = scmp.ne.s32.totalorder %s43, %s45
    %p52 = scmp.eq.s32.totalorder %s14, 2
    %p53 = por %p51, %p52
    %p54 = scmp.ne.s32.totalorder %s45, %s46
    %p55 = scmp.eq.s32.totalorder %s14, 0
    %p56 = por %p54, %p55
    %p57 = scmp.ne.s32.totalorder %s45, %s46
    %p58 = scmp.eq.s32.totalorder %s15, 2
    %p59 = por %p57, %p58
    %p61 = scmp.ne.s32.totalorder %s46, %s60
    %p62 = scmp.eq.s32.totalorder %s15, 0
    %p63 = por %p61, %p62
    %s65 = sadd.s32 %s64, 1
    %p68 = scmp.eq.s32.totalorder %s9, 2
    %p69 = scmp.ne.s32.totalorder %s64, %s66
    %p70 = scmp.eq.s32.totalorder %s9, 0
    %p71 = por %p69, %p70
    %p72 = scmp.ne.s32.totalorder %s64, %s66
    %p73 = scmp.eq.s32.totalorder %s14, 2
    %p74 = por %p72, %p73
    %p75 = scmp.ne.s32.totalorder %s66, %s67
    %p76 = scmp.eq.s32.totalorder %s14, 0
    %p77 = por %p75, %p76
    %p78 = scmp.ne.s32.totalorder %s66, %s67
    %p79 = scmp.eq.s32.totalorder %s15, 2
    %p80 = por %p78, %p79
    %p82 = scmp.ne.s32.totalorder %s67, %s81
    %p83 = scmp.eq.s32.totalorder %s15, 0
    %p84 = por %p82, %p83
    %s85 = ssub.s32 %s9, %s16
    %p86 = scmp.eq.s32.totalorder %s85, 0
    %s88 = sadd.s32 %s87, 1
    %s89 = scalar_select %p86, %s87, %s88
    %p92 = pneg %p86
    %p93 = scmp.eq.s32.totalorder %s9, 2
    %p94 = por %p92, %p93
    %p95 = scmp.ne.s32.totalorder %s87, %s90
    %p96 = scmp.eq.s32.totalorder %s9, 0
    %p97 = por %p95, %p96
    %p98 = scmp.ne.s32.totalorder %s87, %s90
    %p99 = scmp.eq.s32.totalorder %s14, 2
    %p100 = por %p98, %p99
    %p101 = scmp.ne.s32.totalorder %s90, %s91
    %p102 = scmp.eq.s32.totalorder %s14, 0
    %p103 = por %p101, %p102
    %p104 = scmp.ne.s32.totalorder %s90, %s91
    %p105 = scmp.eq.s32.totalorder %s15, 2
    %p106 = por %p104, %p105
    %p108 = scmp.ne.s32.totalorder %s91, %s107
    %p109 = scmp.eq.s32.totalorder %s15, 0
    %p110 = por %p108, %p109
    %p111 = scmp.le.s32.totalorder 1, %s9
    %p112 = scmp.lt.s32.totalorder %s9, 4
    %p113 = pnand %p111, %p112
    %p114 = pneg %p113
    // Predicated region
    $region9: #{three_d_interaction.2} parent=5 // pred_check
      _
    $region10: #{three_d_interaction.2} parent=5 // pred_check_branch
      %116 = sbr.rel (%p113) target = $region12
    $region11: #{three_d_interaction.2} parent=5 // pred_region
      %s117 = ssub.s32 %s9, 1
      // Predicated region
      $region13: #{three_d_interaction.2} parent=11 // pred_check
        %p118 = pneg %p56
      $region14: #{three_d_interaction.2} parent=11 // pred_check_branch
        %120 = sbr.rel (%p118) target = $region16
      $region15: #{three_d_interaction.2} parent=11 // pred_region
        _
      $region16: #{three_d_interaction.2} parent=11 // pred_fallthru
        _
      // Predicated region
      $region17: #{three_d_interaction.2} parent=11 // pred_check
        %p121 = pneg %p77
      $region18: #{three_d_interaction.2} parent=11 // pred_check_branch
        %123 = sbr.rel (%p121) target = $region20
      $region19: #{three_d_interaction.2} parent=11 // pred_region
        _
      $region20: #{three_d_interaction.2} parent=11 // pred_fallthru
        _
    $region12: #{three_d_interaction.2} parent=5 // pred_fallthru
      _
    %p124 = scmp.lt.s32.totalorder %s9, 3
    // Predicated region
    $region21: #{three_d_interaction.2} parent=5 // pred_check
      %p125 = pneg %p124
    $region22: #{three_d_interaction.2} parent=5 // pred_check_branch
      %127 = sbr.rel (%p125) target = $region24
    $region23: #{three_d_interaction.2} parent=5 // pred_region
      // Predicated region
      $region25: #{three_d_interaction.2} parent=23 // pred_check
        %p128 = pneg %p29
      $region26: #{three_d_interaction.2} parent=23 // pred_check_branch
        %130 = sbr.rel (%p128) target = $region28
      $region27: #{three_d_interaction.2} parent=23 // pred_region
        %s131 = smul.u32 16, %s9
        %p132 = scmp.lt.s32.totalorder %s131, 47
        %s133 = scalar_select %p132, %s131, 47
        %s134 = smul.addr %s133, 8
        %s135 = scalar_lea.vmem %s0, %s134
        %s136 = smul.u32 16, %s9
      $region28: #{three_d_interaction.2} parent=23 // pred_fallthru
        _
    $region24: #{three_d_interaction.2} parent=5 // pred_fallthru
      _
    %p137 = scmp.le.s32.totalorder 1, %s9
    %p138 = scmp.lt.s32.totalorder %s9, 4
    %p139 = pnand %p137, %p138
    %p140 = pneg %p139
    // Predicated region
    $region29: #{three_d_interaction.2} parent=5 // pred_check
      _
    $region30: #{three_d_interaction.2} parent=5 // pred_check_branch
      %142 = sbr.rel (%p139) target = $region32
    $region31: #{three_d_interaction.2} parent=5 // pred_region
      %s143 = ssub.s32 %s9, 1
      %s144 = smul.u32 16, %s14
      %p145 = scmp.lt.s32.totalorder %s144, 47
      %s146 = scalar_select %p145, %s144, 47
      %s147 = smul.addr %s146, 8
      %s148 = scalar_lea.vmem %s0, %s147
      %p149 = pneg %p35
      %p150 = pneg %p32
      %p151 = pneg %p56
      %p152 = pneg %p53
      %p153 = pneg %p77
      %p154 = pneg %p74
      %p155 = pneg %p103
      %p156 = pneg %p100
      %s157 = smul.u32 16, %s14
      %p158 = scmp.lt.s32.totalorder %s157, 47
      %s159 = scalar_select %p158, %s157, 47
      %s160 = smul.addr %s159, 4
      %s161 = scalar_lea.vmem %s3, %s160
      %s162 = smul.u32 16, %s14
      %p163 = scmp.lt.s32.totalorder %s162, 47
      %s164 = scalar_select %p163, %s162, 47
      %s165 = smul.addr %s164, 8
      %s166 = scalar_lea.vmem %s0, %s165
      %s167 = smul.u32 16, %s14
      %s168 = smul.u32 16, %s14
      %p169 = scmp.lt.s32.totalorder %s168, 47
      %s170 = scalar_select %p169, %s168, 47
      %s171 = smul.addr %s170, 4
      %s172 = scalar_lea.vmem %s3, %s171
      %s173 = smul.u32 16, %s14
      %v174 = vld [vmem:[%s166] sm:$0xff]
      %v175 = vld [vmem:[%s166 + $0x8] sm:$0xff]
      %v176 = vld [vmem:[%s166 + $0x10] sm:$0xff]
      %v177 = vld [vmem:[%s166 + $0x18] sm:$0xff]
      %v178 = vld [vmem:[%s166 + $0x20] sm:$0xff]
      %v179 = vld [vmem:[%s166 + $0x28] sm:$0xff]
      %v180 = vld [vmem:[%s166 + $0x30] sm:$0xff]
      %v181 = vld [vmem:[%s166 + $0x38] sm:$0xff]
      %v182 = vld [vmem:[%s166 + $0x40] sm:$0xff]
      %v183 = vld [vmem:[%s166 + $0x48] sm:$0xff]
      %v184 = vld [vmem:[%s166 + $0x50] sm:$0xff]
      %v185 = vld [vmem:[%s166 + $0x58] sm:$0xff]
      %v186 = vld [vmem:[%s166 + $0x60] sm:$0xff]
      %v187 = vld [vmem:[%s166 + $0x68] sm:$0xff]
      %v188 = vld [vmem:[%s166 + $0x70] sm:$0xff]
      %v189 = vld [vmem:[%s166 + $0x78] sm:$0xff]
      %v190 = vld [vmem:[%s1] sm:$0xff]
      %v191 = vld [vmem:[%s1 + $0x8] sm:$0xff]
      %v192 = vld [vmem:[%s2] sm:$0x1]
      %v194 = vperm.slane %v192, 0
      %vm196 = vcmask 130048
      %v198 = vsel %vm196, %v174, 0
      %v201 = vsel %vm196, %v175, 0
      %v204 = vsel %vm196, %v176, 0
      %v207 = vsel %vm196, %v177, 0
      %v210 = vsel %vm196, %v178, 0
      %v213 = vsel %vm196, %v179, 0
      %v216 = vsel %vm196, %v180, 0
      %v219 = vsel %vm196, %v181, 0
      %v222 = vsel %vm196, %v182, 0
      %v225 = vsel %vm196, %v183, 0
      %v228 = vsel %vm196, %v184, 0
      %v231 = vsel %vm196, %v185, 0
      %v234 = vsel %vm196, %v186, 0
      %v237 = vsel %vm196, %v187, 0
      %v240 = vsel %vm196, %v188, 0
      %v243 = vsel %vm196, %v189, 0
      %245 = vmatpush.msra.mxu0 0.0
      %246 = vmatpush.msra.mxu0 0.0
      %247 = vmatpush.msra.mxu0 0.0
      %248 = vmatpush.msra.mxu0 0.0
      %249 = vmatpush.msra.mxu0 0.0
      %250 = vmatpush.msra.mxu0 0.0
      %251 = vmatpush.msra.mxu0 0.0
      %252 = vmatpush.msra.mxu0 0.0
      %253 = vmatpush.msra.mxu0 0.0
      %254 = vmatpush.msra.mxu0 0.0
      %255 = vmatpush.msra.mxu0 0.0
      %256 = vmatpush.msra.mxu0 0.0
      %257 = vmatpush.msra.mxu0 0.0
      %258 = vmatpush.msra.mxu0 0.0
      %259 = vmatpush.msra.mxu0 %v191
      %260 = vmatpush.msra.mxu0 %v190
      %261 = vmatmul.f32.gmra.mxu0 %v198
      %v262 = vpop.f32.mrf.mxu0
      %v263 = vadd.f32 %v194, %v262
      %264 = vmatmul.f32.gmra.mxu0 %v201
      %v265 = vpop.f32.mrf.mxu0
      %v266 = vadd.f32 %v194, %v265
      %267 = vmatmul.f32.gmra.mxu0 %v204
      %v268 = vpop.f32.mrf.mxu0
      %v269 = vadd.f32 %v194, %v268
      %270 = vmatmul.f32.gmra.mxu0 %v207
      %v271 = vpop.f32.mrf.mxu0
      %v272 = vadd.f32 %v194, %v271
      %273 = vmatmul.f32.gmra.mxu0 %v210
      %v274 = vpop.f32.mrf.mxu0
      %v275 = vadd.f32 %v194, %v274
      %276 = vmatmul.f32.gmra.mxu0 %v213
      %v277 = vpop.f32.mrf.mxu0
      %v278 = vadd.f32 %v194, %v277
      %279 = vmatmul.f32.gmra.mxu0 %v216
      %v280 = vpop.f32.mrf.mxu0
      %v281 = vadd.f32 %v194, %v280
      %282 = vmatmul.f32.gmra.mxu0 %v219
      %v283 = vpop.f32.mrf.mxu0
      %v284 = vadd.f32 %v194, %v283
      %285 = vmatmul.f32.gmra.mxu0 %v222
      %v286 = vpop.f32.mrf.mxu0
      %v287 = vadd.f32 %v194, %v286
      %288 = vmatmul.f32.gmra.mxu0 %v225
      %v289 = vpop.f32.mrf.mxu0
      %v290 = vadd.f32 %v194, %v289
      %291 = vmatmul.f32.gmra.mxu0 %v228
      %v292 = vpop.f32.mrf.mxu0
      %v293 = vadd.f32 %v194, %v292
      %294 = vmatmul.f32.gmra.mxu0 %v231
      %v295 = vpop.f32.mrf.mxu0
      %v296 = vadd.f32 %v194, %v295
      %297 = vmatmul.f32.gmra.mxu0 %v234
      %v298 = vpop.f32.mrf.mxu0
      %v299 = vadd.f32 %v194, %v298
      %300 = vmatmul.f32.gmra.mxu0 %v237
      %v301 = vpop.f32.mrf.mxu0
      %v302 = vadd.f32 %v194, %v301
      %303 = vmatmul.f32.gmra.mxu0 %v240
      %v304 = vpop.f32.mrf.mxu0
      %v305 = vadd.f32 %v194, %v304
      %306 = vmatmul.f32.gmra.mxu0 %v243
      %v307 = vpop.f32.mrf.mxu0
      %v308 = vadd.f32 %v194, %v307
      %309 = vdwg.mxu0
      %v310 = vxor.u32 %v263, 2147483648
      %v311 = vxor.u32 %v266, 2147483648
      %v312 = vxor.u32 %v269, 2147483648
      %v313 = vxor.u32 %v272, 2147483648
      %v314 = vxor.u32 %v275, 2147483648
      %v315 = vxor.u32 %v278, 2147483648
      %v316 = vxor.u32 %v281, 2147483648
      %v317 = vxor.u32 %v284, 2147483648
      %v318 = vxor.u32 %v287, 2147483648
      %v319 = vxor.u32 %v290, 2147483648
      %v320 = vxor.u32 %v293, 2147483648
      %v321 = vxor.u32 %v296, 2147483648
      %v322 = vxor.u32 %v299, 2147483648
      %v323 = vxor.u32 %v302, 2147483648
      %v324 = vxor.u32 %v305, 2147483648
      %v325 = vxor.u32 %v308, 2147483648
      %v326 = vmul.f32 %v310, 1.442695
      %v327 = vpow.pop %v326
      %v328 = vmul.f32 %v311, 1.442695
      %v329 = vpow.pop %v328
      %v330 = vmul.f32 %v312, 1.442695
      %v331 = vpow.pop %v330
      %v332 = vmul.f32 %v313, 1.442695
      %v333 = vpow.pop %v332
      %v334 = vmul.f32 %v314, 1.442695
      %v335 = vpow.pop %v334
      %v336 = vmul.f32 %v315, 1.442695
      %v337 = vpow.pop %v336
      %v338 = vmul.f32 %v316, 1.442695
      %v339 = vpow.pop %v338
      %v340 = vmul.f32 %v317, 1.442695
      %v341 = vpow.pop %v340
      %v342 = vmul.f32 %v318, 1.442695
      %v343 = vpow.pop %v342
      %v344 = vmul.f32 %v319, 1.442695
      %v345 = vpow.pop %v344
      %v346 = vmul.f32 %v320, 1.442695
      %v347 = vpow.pop %v346
      %v348 = vmul.f32 %v321, 1.442695
      %v349 = vpow.pop %v348
      %v350 = vmul.f32 %v322, 1.442695
      %v351 = vpow.pop %v350
      %v352 = vmul.f32 %v323, 1.442695
      %v353 = vpow.pop %v352
      %v354 = vmul.f32 %v324, 1.442695
      %v355 = vpow.pop %v354
      %v356 = vmul.f32 %v325, 1.442695
      %v357 = vpow.pop %v356
      %v358 = vadd.f32 %v327, 1.0
      %v359 = vadd.f32 %v329, 1.0
      %v360 = vadd.f32 %v331, 1.0
      %v361 = vadd.f32 %v333, 1.0
      %v362 = vadd.f32 %v335, 1.0
      %v363 = vadd.f32 %v337, 1.0
      %v364 = vadd.f32 %v339, 1.0
      %v365 = vadd.f32 %v341, 1.0
      %v366 = vadd.f32 %v343, 1.0
      %v367 = vadd.f32 %v345, 1.0
      %v368 = vadd.f32 %v347, 1.0
      %v369 = vadd.f32 %v349, 1.0
      %v370 = vadd.f32 %v351, 1.0
      %v371 = vadd.f32 %v353, 1.0
      %v372 = vadd.f32 %v355, 1.0
      %v373 = vadd.f32 %v357, 1.0
      %v374 = vrcp.pop %v358
      %v375 = vmul.f32 %v358, %v374
      %v376 = vsub.f32 1.0, %v375
      %v377 = vmul.f32 %v374, %v376
      %v378 = vadd.f32 %v374, %v377
      %vm379 = vweird.f32 %v358
      %vm380 = vweird.f32 %v374
      %vm381 = vmor %vm379, %vm380
      %v382 = vsel %vm381, %v374, %v378
      %v383 = vand.u32 2147483647, %v358
      %vm384 = vcmp.eq.f32.partialorder %v383, 8.507059e+37
      %v385 = vand.u32 %v358, 2147483648
      %v386 = vor.u32 1.1754944e-38, %v385
      %v387 = vsel %vm384, %v386, %v382
      %v388 = vmul.f32 1.0, %v387
      %v389 = vrcp.pop %v359
      %v390 = vmul.f32 %v359, %v389
      %v391 = vsub.f32 1.0, %v390
      %v392 = vmul.f32 %v389, %v391
      %v393 = vadd.f32 %v389, %v392
      %vm394 = vweird.f32 %v359
      %vm395 = vweird.f32 %v389
      %vm396 = vmor %vm394, %vm395
      %v397 = vsel %vm396, %v389, %v393
      %v398 = vand.u32 2147483647, %v359
      %vm399 = vcmp.eq.f32.partialorder %v398, 8.507059e+37
      %v400 = vand.u32 %v359, 2147483648
      %v401 = vor.u32 1.1754944e-38, %v400
      %v402 = vsel %vm399, %v401, %v397
      %v403 = vmul.f32 1.0, %v402
      %v404 = vrcp.pop %v360
      %v405 = vmul.f32 %v360, %v404
      %v406 = vsub.f32 1.0, %v405
      %v407 = vmul.f32 %v404, %v406
      %v408 = vadd.f32 %v404, %v407
      %vm409 = vweird.f32 %v360
      %vm410 = vweird.f32 %v404
      %vm411 = vmor %vm409, %vm410
      %v412 = vsel %vm411, %v404, %v408
      %v413 = vand.u32 2147483647, %v360
      %vm414 = vcmp.eq.f32.partialorder %v413, 8.507059e+37
      %v415 = vand.u32 %v360, 2147483648
      %v416 = vor.u32 1.1754944e-38, %v415
      %v417 = vsel %vm414, %v416, %v412
      %v418 = vmul.f32 1.0, %v417
      %v419 = vrcp.pop %v361
      %v420 = vmul.f32 %v361, %v419
      %v421 = vsub.f32 1.0, %v420
      %v422 = vmul.f32 %v419, %v421
      %v423 = vadd.f32 %v419, %v422
      %vm424 = vweird.f32 %v361
      %vm425 = vweird.f32 %v419
      %vm426 = vmor %vm424, %vm425
      %v427 = vsel %vm426, %v419, %v423
      %v428 = vand.u32 2147483647, %v361
      %vm429 = vcmp.eq.f32.partialorder %v428, 8.507059e+37
      %v430 = vand.u32 %v361, 2147483648
      %v431 = vor.u32 1.1754944e-38, %v430
      %v432 = vsel %vm429, %v431, %v427
      %v433 = vmul.f32 1.0, %v432
      %v434 = vrcp.pop %v362
      %v435 = vmul.f32 %v362, %v434
      %v436 = vsub.f32 1.0, %v435
      %v437 = vmul.f32 %v434, %v436
      %v438 = vadd.f32 %v434, %v437
      %vm439 = vweird.f32 %v362
      %vm440 = vweird.f32 %v434
      %vm441 = vmor %vm439, %vm440
      %v442 = vsel %vm441, %v434, %v438
      %v443 = vand.u32 2147483647, %v362
      %vm444 = vcmp.eq.f32.partialorder %v443, 8.507059e+37
      %v445 = vand.u32 %v362, 2147483648
      %v446 = vor.u32 1.1754944e-38, %v445
      %v447 = vsel %vm444, %v446, %v442
      %v448 = vmul.f32 1.0, %v447
      %v449 = vrcp.pop %v363
      %v450 = vmul.f32 %v363, %v449
      %v451 = vsub.f32 1.0, %v450
      %v452 = vmul.f32 %v449, %v451
      %v453 = vadd.f32 %v449, %v452
      %vm454 = vweird.f32 %v363
      %vm455 = vweird.f32 %v449
      %vm456 = vmor %vm454, %vm455
      %v457 = vsel %vm456, %v449, %v453
      %v458 = vand.u32 2147483647, %v363
      %vm459 = vcmp.eq.f32.partialorder %v458, 8.507059e+37
      %v460 = vand.u32 %v363, 2147483648
      %v461 = vor.u32 1.1754944e-38, %v460
      %v462 = vsel %vm459, %v461, %v457
      %v463 = vmul.f32 1.0, %v462
      %v464 = vrcp.pop %v364
      %v465 = vmul.f32 %v364, %v464
      %v466 = vsub.f32 1.0, %v465
      %v467 = vmul.f32 %v464, %v466
      %v468 = vadd.f32 %v464, %v467
      %vm469 = vweird.f32 %v364
      %vm470 = vweird.f32 %v464
      %vm471 = vmor %vm469, %vm470
      %v472 = vsel %vm471, %v464, %v468
      %v473 = vand.u32 2147483647, %v364
      %vm474 = vcmp.eq.f32.partialorder %v473, 8.507059e+37
      %v475 = vand.u32 %v364, 2147483648
      %v476 = vor.u32 1.1754944e-38, %v475
      %v477 = vsel %vm474, %v476, %v472
      %v478 = vmul.f32 1.0, %v477
      %v479 = vrcp.pop %v365
      %v480 = vmul.f32 %v365, %v479
      %v481 = vsub.f32 1.0, %v480
      %v482 = vmul.f32 %v479, %v481
      %v483 = vadd.f32 %v479, %v482
      %vm484 = vweird.f32 %v365
      %vm485 = vweird.f32 %v479
      %vm486 = vmor %vm484, %vm485
      %v487 = vsel %vm486, %v479, %v483
      %v488 = vand.u32 2147483647, %v365
      %vm489 = vcmp.eq.f32.partialorder %v488, 8.507059e+37
      %v490 = vand.u32 %v365, 2147483648
      %v491 = vor.u32 1.1754944e-38, %v490
      %v492 = vsel %vm489, %v491, %v487
      %v493 = vmul.f32 1.0, %v492
      %v494 = vrcp.pop %v366
      %v495 = vmul.f32 %v366, %v494
      %v496 = vsub.f32 1.0, %v495
      %v497 = vmul.f32 %v494, %v496
      %v498 = vadd.f32 %v494, %v497
      %vm499 = vweird.f32 %v366
      %vm500 = vweird.f32 %v494
      %vm501 = vmor %vm499, %vm500
      %v502 = vsel %vm501, %v494, %v498
      %v503 = vand.u32 2147483647, %v366
      %vm504 = vcmp.eq.f32.partialorder %v503, 8.507059e+37
      %v505 = vand.u32 %v366, 2147483648
      %v506 = vor.u32 1.1754944e-38, %v505
      %v507 = vsel %vm504, %v506, %v502
      %v508 = vmul.f32 1.0, %v507
      %v509 = vrcp.pop %v367
      %v510 = vmul.f32 %v367, %v509
      %v511 = vsub.f32 1.0, %v510
      %v512 = vmul.f32 %v509, %v511
      %v513 = vadd.f32 %v509, %v512
      %vm514 = vweird.f32 %v367
      %vm515 = vweird.f32 %v509
      %vm516 = vmor %vm514, %vm515
      %v517 = vsel %vm516, %v509, %v513
      %v518 = vand.u32 2147483647, %v367
      %vm519 = vcmp.eq.f32.partialorder %v518, 8.507059e+37
      %v520 = vand.u32 %v367, 2147483648
      %v521 = vor.u32 1.1754944e-38, %v520
      %v522 = vsel %vm519, %v521, %v517
      %v523 = vmul.f32 1.0, %v522
      %v524 = vrcp.pop %v368
      %v525 = vmul.f32 %v368, %v524
      %v526 = vsub.f32 1.0, %v525
      %v527 = vmul.f32 %v524, %v526
      %v528 = vadd.f32 %v524, %v527
      %vm529 = vweird.f32 %v368
      %vm530 = vweird.f32 %v524
      %vm531 = vmor %vm529, %vm530
      %v532 = vsel %vm531, %v524, %v528
      %v533 = vand.u32 2147483647, %v368
      %vm534 = vcmp.eq.f32.partialorder %v533, 8.507059e+37
      %v535 = vand.u32 %v368, 2147483648
      %v536 = vor.u32 1.1754944e-38, %v535
      %v537 = vsel %vm534, %v536, %v532
      %v538 = vmul.f32 1.0, %v537
      %v539 = vrcp.pop %v369
      %v540 = vmul.f32 %v369, %v539
      %v541 = vsub.f32 1.0, %v540
      %v542 = vmul.f32 %v539, %v541
      %v543 = vadd.f32 %v539, %v542
      %vm544 = vweird.f32 %v369
      %vm545 = vweird.f32 %v539
      %vm546 = vmor %vm544, %vm545
      %v547 = vsel %vm546, %v539, %v543
      %v548 = vand.u32 2147483647, %v369
      %vm549 = vcmp.eq.f32.partialorder %v548, 8.507059e+37
      %v550 = vand.u32 %v369, 2147483648
      %v551 = vor.u32 1.1754944e-38, %v550
      %v552 = vsel %vm549, %v551, %v547
      %v553 = vmul.f32 1.0, %v552
      %v554 = vrcp.pop %v370
      %v555 = vmul.f32 %v370, %v554
      %v556 = vsub.f32 1.0, %v555
      %v557 = vmul.f32 %v554, %v556
      %v558 = vadd.f32 %v554, %v557
      %vm559 = vweird.f32 %v370
      %vm560 = vweird.f32 %v554
      %vm561 = vmor %vm559, %vm560
      %v562 = vsel %vm561, %v554, %v558
      %v563 = vand.u32 2147483647, %v370
      %vm564 = vcmp.eq.f32.partialorder %v563, 8.507059e+37
      %v565 = vand.u32 %v370, 2147483648
      %v566 = vor.u32 1.1754944e-38, %v565
      %v567 = vsel %vm564, %v566, %v562
      %v568 = vmul.f32 1.0, %v567
      %v569 = vrcp.pop %v371
      %v570 = vmul.f32 %v371, %v569
      %v571 = vsub.f32 1.0, %v570
      %v572 = vmul.f32 %v569, %v571
      %v573 = vadd.f32 %v569, %v572
      %vm574 = vweird.f32 %v371
      %vm575 = vweird.f32 %v569
      %vm576 = vmor %vm574, %vm575
      %v577 = vsel %vm576, %v569, %v573
      %v578 = vand.u32 2147483647, %v371
      %vm579 = vcmp.eq.f32.partialorder %v578, 8.507059e+37
      %v580 = vand.u32 %v371, 2147483648
      %v581 = vor.u32 1.1754944e-38, %v580
      %v582 = vsel %vm579, %v581, %v577
      %v583 = vmul.f32 1.0, %v582
      %v584 = vrcp.pop %v372
      %v585 = vmul.f32 %v372, %v584
      %v586 = vsub.f32 1.0, %v585
      %v587 = vmul.f32 %v584, %v586
      %v588 = vadd.f32 %v584, %v587
      %vm589 = vweird.f32 %v372
      %vm590 = vweird.f32 %v584
      %vm591 = vmor %vm589, %vm590
      %v592 = vsel %vm591, %v584, %v588
      %v593 = vand.u32 2147483647, %v372
      %vm594 = vcmp.eq.f32.partialorder %v593, 8.507059e+37
      %v595 = vand.u32 %v372, 2147483648
      %v596 = vor.u32 1.1754944e-38, %v595
      %v597 = vsel %vm594, %v596, %v592
      %v598 = vmul.f32 1.0, %v597
      %v599 = vrcp.pop %v373
      %v600 = vmul.f32 %v373, %v599
      %v601 = vsub.f32 1.0, %v600
      %v602 = vmul.f32 %v599, %v601
      %v603 = vadd.f32 %v599, %v602
      %vm604 = vweird.f32 %v373
      %vm605 = vweird.f32 %v599
      %vm606 = vmor %vm604, %vm605
      %v607 = vsel %vm606, %v599, %v603
      %v608 = vand.u32 2147483647, %v373
      %vm609 = vcmp.eq.f32.partialorder %v608, 8.507059e+37
      %v610 = vand.u32 %v373, 2147483648
      %v611 = vor.u32 1.1754944e-38, %v610
      %v612 = vsel %vm609, %v611, %v607
      %v613 = vmul.f32 1.0, %v612
      %v614 = vpack.c.bf16 %v388, %v388
      %v615 = vpack.c.bf16 %v403, %v403
      %v616 = vpack.c.bf16 %v418, %v418
      %v617 = vpack.c.bf16 %v433, %v433
      %v618 = vpack.c.bf16 %v448, %v448
      %v619 = vpack.c.bf16 %v463, %v463
      %v620 = vpack.c.bf16 %v478, %v478
      %v621 = vpack.c.bf16 %v493, %v493
      %v622 = vpack.c.bf16 %v508, %v508
      %v623 = vpack.c.bf16 %v523, %v523
      %v624 = vpack.c.bf16 %v538, %v538
      %v625 = vpack.c.bf16 %v553, %v553
      %v626 = vpack.c.bf16 %v568, %v568
      %v627 = vpack.c.bf16 %v583, %v583
      %v628 = vpack.c.bf16 %v598, %v598
      %v629 = vpack.c.bf16 %v613, %v613
      %630 = vst [vmem:[%s172] sm:$0xf] %v614
      %631 = vst [vmem:[%s172 + $0x4] sm:$0xf] %v615
      %632 = vst [vmem:[%s172 + $0x8] sm:$0xf] %v616
      %633 = vst [vmem:[%s172 + $0xc] sm:$0xf] %v617
      %634 = vst [vmem:[%s172 + $0x10] sm:$0xf] %v618
      %635 = vst [vmem:[%s172 + $0x14] sm:$0xf] %v619
      %636 = vst [vmem:[%s172 + $0x18] sm:$0xf] %v620
      %637 = vst [vmem:[%s172 + $0x1c] sm:$0xf] %v621
      %638 = vst [vmem:[%s172 + $0x20] sm:$0xf] %v622
      %639 = vst [vmem:[%s172 + $0x24] sm:$0xf] %v623
      %640 = vst [vmem:[%s172 + $0x28] sm:$0xf] %v624
      %641 = vst [vmem:[%s172 + $0x2c] sm:$0xf] %v625
      %642 = vst [vmem:[%s172 + $0x30] sm:$0xf] %v626
      %643 = vst [vmem:[%s172 + $0x34] sm:$0xf] %v627
      %644 = vst [vmem:[%s172 + $0x38] sm:$0xf] %v628
      %645 = vst [vmem:[%s172 + $0x3c] sm:$0xf] %v629
      %s646 = smul.u32 16, %s14
      %p647 = scmp.lt.s32.totalorder %s646, 47
      %s648 = scalar_select %p647, %s646, 47
      %s649 = smul.addr %s648, 4
      %s650 = scalar_lea.vmem %s3, %s649
      // Predicated region
      $region33: #{three_d_interaction.2} parent=31 // pred_check
        %p651 = pneg %p100
      $region34: #{three_d_interaction.2} parent=31 // pred_check_branch
        %653 = sbr.rel (%p651) target = $region36
      $region35: #{three_d_interaction.2} parent=31 // pred_region
        %s654 = smul.u32 16, %s14
      $region36: #{three_d_interaction.2} parent=31 // pred_fallthru
        _
    $region32: #{three_d_interaction.2} parent=5 // pred_fallthru
      _
    %p655 = scmp.le.s32.totalorder 2, %s9
    // Predicated region
    $region37: #{three_d_interaction.2} parent=5 // pred_check
      %p656 = pneg %p655
    $region38: #{three_d_interaction.2} parent=5 // pred_check_branch
      %658 = sbr.rel (%p656) target = $region40
    $region39: #{three_d_interaction.2} parent=5 // pred_region
      %s659 = ssub.s32 %s9, 2
      // Predicated region
      $region41: #{three_d_interaction.2} parent=39 // pred_check
        %p660 = pneg %p106
      $region42: #{three_d_interaction.2} parent=39 // pred_check_branch
        %662 = sbr.rel (%p660) target = $region44
      $region43: #{three_d_interaction.2} parent=39 // pred_region
        %s663 = smul.u32 16, %s15
        %p664 = scmp.lt.s32.totalorder %s663, 47
        %s665 = scalar_select %p664, %s663, 47
        %s666 = smul.addr %s665, 4
        %s667 = scalar_lea.vmem %s3, %s666
      $region44: #{three_d_interaction.2} parent=39 // pred_fallthru
        _
    $region40: #{three_d_interaction.2} parent=5 // pred_fallthru
      _
  $region6: #{three_d_interaction.2} parent=0 // loop_footer
    %s13 = sadd.s32 1, %s9
  $region7: #{three_d_interaction.2} parent=0 // loop_footer_branch
    %8 = sbr.rel target = $region3
  $region8: #{three_d_interaction.2} parent=0 // loop_exit
    _

// kernel: three_d_interaction.3
$region0: #{three_d_interaction.3}
  #allocation0 [shape = 'u32[]', space=smem, size = 0x4, offset = 0x4, fixed_abs, tag = 'smem constant byte address 0x4 - core index']
  #allocation1 [shape = 'u32[72,128]{1,0:T(1,128)}', space=vmem, size = 0x9000, scoped, tag = 'internal scratch']
  #allocation2 [shape = 'f32[512,128]{1,0:T(8,128)}', space=vmem, size = 0x40000, scoped, tag = 'scratch operand']
  #allocation3 [shape = 's32[1]{0}', space=sflag, size = 0x4, scoped, tag = 'scoped memory for three_d_interaction.3']
  #allocation4 [shape = 'u8[512]{0}', space=smem, size = 0x200, scoped, tag = 'prefetched SMEM operand 0']
  #allocation5 [shape = 'u8[512]{0}', space=smem, size = 0x200, scoped, tag = 'prefetched SMEM operand 1']
  #allocation6 [shape = 'u8[512]{0}', space=smem, size = 0x200, scoped, tag = 'prefetched SMEM operand 2']
  #allocation7 [shape = 'u8[512]{0}', space=smem, size = 0x200, scoped, tag = 'prefetched SMEM operand 3']
  #allocation8 [shape = 'u8[512]{0}', space=smem, size = 0x200, scoped, tag = 'prefetched SMEM operand 4']
  %s0 = inlined_call_operand.vmem [shape: s32[11], index: 0, kind: input, shape index: {}]
  %s1 = inlined_call_operand.vmem [shape: s32[11], index: 1, kind: input, shape index: {}]
  %s2 = inlined_call_operand.vmem [shape: s32[11], index: 2, kind: input, shape index: {}]
  %s3 = inlined_call_operand.vmem [shape: s32[11], index: 3, kind: input, shape index: {}]
  %s4 = inlined_call_operand.vmem [shape: s32[11], index: 4, kind: input, shape index: {}]
  %s5 = inlined_call_operand.vmem [shape: bf16[4096,128], index: 5, kind: input, shape index: {}]
  %s6 = inlined_call_operand.vmem [shape: bf16[4096,128], index: 6, kind: input, shape index: {}]
  %s7 = inlined_call_operand.vmem [shape: s32[1,4096], index: 7, kind: input, shape index: {}]
  %s8 = inlined_call_operand.vmem [shape: f32[1536,128], index: 8, kind: input, shape index: {}]
  %s9 = inlined_call_operand.vmem [shape: f32[128,128], index: 9, kind: input, shape index: {}]
  %s10 = inlined_call_operand.vmem [shape: f32[1,128], index: 10, kind: input, shape index: {}]
  %s11 = inlined_call_operand.vmem [shape: f32[1536,128], index: 11, kind: output, shape index: {}]
  %s12 = sld [smem:[#allocation0]]
  $region69: #{three_d_interaction.3} parent=0
    _
  %s14 = ssub.s32 1, %s12
  %s15 = scalar_select 0, %s14, %s12
  %s17 = sshll.u32 %s0, 4
  %s18 = int_to_ptr.vmem [resolvable:$true] %s17
  %20 = dma.vmem_to_smem %s18, 16, [#allocation4], [#allocation3]
  %s22 = sshll.u32 %s1, 4
  %s23 = int_to_ptr.vmem [resolvable:$true] %s22
  %25 = dma.vmem_to_smem %s23, 16, [#allocation5], [#allocation3]
  %s27 = sshll.u32 %s2, 4
  %s28 = int_to_ptr.vmem [resolvable:$true] %s27
  %30 = dma.vmem_to_smem %s28, 16, [#allocation6], [#allocation3]
  %s32 = sshll.u32 %s3, 4
  %s33 = int_to_ptr.vmem [resolvable:$true] %s32
  %35 = dma.vmem_to_smem %s33, 16, [#allocation7], [#allocation3]
  %s37 = sshll.u32 %s4, 4
  %s38 = int_to_ptr.vmem [resolvable:$true] %s37
  %40 = dma.vmem_to_smem %s38, 16, [#allocation8], [#allocation3]
  %42 = dma.done [#allocation3], 80
  %43 = sfence
  loop: start=0, step=1, limit=13
  $region2: #{three_d_interaction.3} parent=0 // loop_pre_header
    _
  $region3: #{three_d_interaction.3} parent=0 // loop_header
    %s45 = sphi 0, %s49
    %p46 = scmp.ge.s32.totalorder %s45, 13
    %s57 = sphi 0, %s59
    %s60 = sphi 0, %s57
    %s61 = sphi 0, %s60
    %s77 = sphi 0, %s61
    %s85 = sphi 0, %s87
    %s88 = sphi 0, %s85
    %s89 = sphi 0, %s88
    %s105 = sphi 0, %s89
    %s113 = sphi 0, %s115
    %s116 = sphi 0, %s113
    %s117 = sphi 0, %s116
    %s133 = sphi 0, %s117
    %s141 = sphi 0, %s143
    %s144 = sphi 0, %s141
    %s145 = sphi 0, %s144
    %s161 = sphi 0, %s145
    %s165 = sphi 0, %s165
    %s167 = sphi 0, %s165
    %s168 = sphi 0, %s167
    %s182 = sphi 0, %s168
    %s186 = sphi 0, %s186
    %s188 = sphi 0, %s186
    %s189 = sphi 0, %s188
    %s203 = sphi 0, %s189
    %s211 = sphi 0, %s213
    %s214 = sphi 0, %s211
    %s215 = sphi 0, %s214
    %s231 = sphi 0, %s215
  $region4: #{three_d_interaction.3} parent=0 // loop_header_branch
    %48 = sbr.rel (%p46) target = $region8
  $region5: #{three_d_interaction.3} parent=0 // loop_body
    %s50 = ssub.s32 %s45, 1
    %s51 = ssub.s32 %s45, 2
    %s52 = sadd.s32 %s45, 1
    %s53 = sld [smem:[#allocation5 + %s45]]
    %s54 = sld [smem:[#allocation5 + %s52]]
    %s55 = ssub.s32 %s53, %s54
    %p56 = scmp.eq.s32.totalorder %s55, 0
    %s58 = sadd.s32 %s57, 1
    %s59 = scalar_select %p56, %s57, %s58
    %p62 = pneg %p56
    %p63 = scmp.eq.s32.totalorder %s45, 10
    %p64 = por %p62, %p63
    %p65 = scmp.ne.s32.totalorder %s57, %s60
    %p66 = scmp.eq.s32.totalorder %s45, 0
    %p67 = por %p65, %p66
    %p68 = scmp.ne.s32.totalorder %s57, %s60
    %p69 = scmp.eq.s32.totalorder %s50, 10
    %p70 = por %p68, %p69
    %p71 = scmp.ne.s32.totalorder %s60, %s61
    %p72 = scmp.eq.s32.totalorder %s50, 0
    %p73 = por %p71, %p72
    %p74 = scmp.ne.s32.totalorder %s60, %s61
    %p75 = scmp.eq.s32.totalorder %s51, 10
    %p76 = por %p74, %p75
    %p78 = scmp.ne.s32.totalorder %s61, %s77
    %p79 = scmp.eq.s32.totalorder %s51, 0
    %p80 = por %p78, %p79
    %s81 = sld [smem:[#allocation5 + %s45]]
    %s82 = sld [smem:[#allocation5 + %s52]]
    %s83 = ssub.s32 %s81, %s82
    %p84 = scmp.eq.s32.totalorder %s83, 0
    %s86 = sadd.s32 %s85, 1
    %s87 = scalar_select %p84, %s85, %s86
    %p90 = pneg %p84
    %p91 = scmp.eq.s32.totalorder %s45, 10
    %p92 = por %p90, %p91
    %p93 = scmp.ne.s32.totalorder %s85, %s88
    %p94 = scmp.eq.s32.totalorder %s45, 0
    %p95 = por %p93, %p94
    %p96 = scmp.ne.s32.totalorder %s85, %s88
    %p97 = scmp.eq.s32.totalorder %s50, 10
    %p98 = por %p96, %p97
    %p99 = scmp.ne.s32.totalorder %s88, %s89
    %p100 = scmp.eq.s32.totalorder %s50, 0
    %p101 = por %p99, %p100
    %p102 = scmp.ne.s32.totalorder %s88, %s89
    %p103 = scmp.eq.s32.totalorder %s51, 10
    %p104 = por %p102, %p103
    %p106 = scmp.ne.s32.totalorder %s89, %s105
    %p107 = scmp.eq.s32.totalorder %s51, 0
    %p108 = por %p106, %p107
    %s109 = sld [smem:[#allocation5 + %s45]]
    %s110 = sld [smem:[#allocation5 + %s52]]
    %s111 = ssub.s32 %s109, %s110
    %p112 = scmp.eq.s32.totalorder %s111, 0
    %s114 = sadd.s32 %s113, 1
    %s115 = scalar_select %p112, %s113, %s114
    %p118 = pneg %p112
    %p119 = scmp.eq.s32.totalorder %s45, 10
    %p120 = por %p118, %p119
    %p121 = scmp.ne.s32.totalorder %s113, %s116
    %p122 = scmp.eq.s32.totalorder %s45, 0
    %p123 = por %p121, %p122
    %p124 = scmp.ne.s32.totalorder %s113, %s116
    %p125 = scmp.eq.s32.totalorder %s50, 10
    %p126 = por %p124, %p125
    %p127 = scmp.ne.s32.totalorder %s116, %s117
    %p128 = scmp.eq.s32.totalorder %s50, 0
    %p129 = por %p127, %p128
    %p130 = scmp.ne.s32.totalorder %s116, %s117
    %p131 = scmp.eq.s32.totalorder %s51, 10
    %p132 = por %p130, %p131
    %p134 = scmp.ne.s32.totalorder %s117, %s133
    %p135 = scmp.eq.s32.totalorder %s51, 0
    %p136 = por %p134, %p135
    %s137 = sld [smem:[#allocation4 + %s45]]
    %s138 = sld [smem:[#allocation4 + %s52]]
    %s139 = ssub.s32 %s137, %s138
    %p140 = scmp.eq.s32.totalorder %s139, 0
    %s142 = sadd.s32 %s141, 1
    %s143 = scalar_select %p140, %s141, %s142
    %p146 = pneg %p140
    %p147 = scmp.eq.s32.totalorder %s45, 10
    %p148 = por %p146, %p147
    %p149 = scmp.ne.s32.totalorder %s141, %s144
    %p150 = scmp.eq.s32.totalorder %s45, 0
    %p151 = por %p149, %p150
    %p152 = scmp.ne.s32.totalorder %s141, %s144
    %p153 = scmp.eq.s32.totalorder %s50, 10
    %p154 = por %p152, %p153
    %p155 = scmp.ne.s32.totalorder %s144, %s145
    %p156 = scmp.eq.s32.totalorder %s50, 0
    %p157 = por %p155, %p156
    %p158 = scmp.ne.s32.totalorder %s144, %s145
    %p159 = scmp.eq.s32.totalorder %s51, 10
    %p160 = por %p158, %p159
    %p162 = scmp.ne.s32.totalorder %s145, %s161
    %p163 = scmp.eq.s32.totalorder %s51, 0
    %p164 = por %p162, %p163
    %s166 = sadd.s32 %s165, 1
    %p169 = scmp.eq.s32.totalorder %s45, 10
    %p170 = scmp.ne.s32.totalorder %s165, %s167
    %p171 = scmp.eq.s32.totalorder %s45, 0
    %p172 = por %p170, %p171
    %p173 = scmp.ne.s32.totalorder %s165, %s167
    %p174 = scmp.eq.s32.totalorder %s50, 10
    %p175 = por %p173, %p174
    %p176 = scmp.ne.s32.totalorder %s167, %s168
    %p177 = scmp.eq.s32.totalorder %s50, 0
    %p178 = por %p176, %p177
    %p179 = scmp.ne.s32.totalorder %s167, %s168
    %p180 = scmp.eq.s32.totalorder %s51, 10
    %p181 = por %p179, %p180
    %p183 = scmp.ne.s32.totalorder %s168, %s182
    %p184 = scmp.eq.s32.totalorder %s51, 0
    %p185 = por %p183, %p184
    %s187 = sadd.s32 %s186, 1
    %p190 = scmp.eq.s32.totalorder %s45, 10
    %p191 = scmp.ne.s32.totalorder %s186, %s188
    %p192 = scmp.eq.s32.totalorder %s45, 0
    %p193 = por %p191, %p192
    %p194 = scmp.ne.s32.totalorder %s186, %s188
    %p195 = scmp.eq.s32.totalorder %s50, 10
    %p196 = por %p194, %p195
    %p197 = scmp.ne.s32.totalorder %s188, %s189
    %p198 = scmp.eq.s32.totalorder %s50, 0
    %p199 = por %p197, %p198
    %p200 = scmp.ne.s32.totalorder %s188, %s189
    %p201 = scmp.eq.s32.totalorder %s51, 10
    %p202 = por %p200, %p201
    %p204 = scmp.ne.s32.totalorder %s189, %s203
    %p205 = scmp.eq.s32.totalorder %s51, 0
    %p206 = por %p204, %p205
    %s207 = sld [smem:[#allocation4 + %s45]]
    %s208 = sld [smem:[#allocation4 + %s52]]
    %s209 = ssub.s32 %s207, %s208
    %p210 = scmp.eq.s32.totalorder %s209, 0
    %s212 = sadd.s32 %s211, 1
    %s213 = scalar_select %p210, %s211, %s212
    %p216 = pneg %p210
    %p217 = scmp.eq.s32.totalorder %s45, 10
    %p218 = por %p216, %p217
    %p219 = scmp.ne.s32.totalorder %s211, %s214
    %p220 = scmp.eq.s32.totalorder %s45, 0
    %p221 = por %p219, %p220
    %p222 = scmp.ne.s32.totalorder %s211, %s214
    %p223 = scmp.eq.s32.totalorder %s50, 10
    %p224 = por %p222, %p223
    %p225 = scmp.ne.s32.totalorder %s214, %s215
    %p226 = scmp.eq.s32.totalorder %s50, 0
    %p227 = por %p225, %p226
    %p228 = scmp.ne.s32.totalorder %s214, %s215
    %p229 = scmp.eq.s32.totalorder %s51, 10
    %p230 = por %p228, %p229
    %p232 = scmp.ne.s32.totalorder %s215, %s231
    %p233 = scmp.eq.s32.totalorder %s51, 0
    %p234 = por %p232, %p233
    %p235 = scmp.le.s32.totalorder 1, %s45
    %p236 = scmp.lt.s32.totalorder %s45, 12
    %p237 = pnand %p235, %p236
    %p238 = pneg %p237
    // Predicated region
    $region9: #{three_d_interaction.3} parent=5 // pred_check
      _
    $region10: #{three_d_interaction.3} parent=5 // pred_check_branch
      %240 = sbr.rel (%p237) target = $region12
    $region11: #{three_d_interaction.3} parent=5 // pred_region
      %s241 = ssub.s32 %s45, 1
      // Predicated region
      $region13: #{three_d_interaction.3} parent=11 // pred_check
        %p242 = pneg %p178
      $region14: #{three_d_interaction.3} parent=11 // pred_check_branch
        %244 = sbr.rel (%p242) target = $region16
      $region15: #{three_d_interaction.3} parent=11 // pred_region
        _
      $region16: #{three_d_interaction.3} parent=11 // pred_fallthru
        _
      // Predicated region
      $region17: #{three_d_interaction.3} parent=11 // pred_check
        %p245 = pneg %p199
      $region18: #{three_d_interaction.3} parent=11 // pred_check_branch
        %247 = sbr.rel (%p245) target = $region20
      $region19: #{three_d_interaction.3} parent=11 // pred_region
        _
      $region20: #{three_d_interaction.3} parent=11 // pred_fallthru
        _
    $region12: #{three_d_interaction.3} parent=5 // pred_fallthru
      _
    %p248 = scmp.lt.s32.totalorder %s45, 11
    // Predicated region
    $region21: #{three_d_interaction.3} parent=5 // pred_check
      %p249 = pneg %p248
    $region22: #{three_d_interaction.3} parent=5 // pred_check_branch
      %251 = sbr.rel (%p249) target = $region24
    $region23: #{three_d_interaction.3} parent=5 // pred_region
      // Predicated region
      $region25: #{three_d_interaction.3} parent=23 // pred_check
        %p252 = pneg %p67
      $region26: #{three_d_interaction.3} parent=23 // pred_check_branch
        %254 = sbr.rel (%p252) target = $region28
      $region27: #{three_d_interaction.3} parent=23 // pred_region
        %s255 = sld [smem:[#allocation5 + %s45]]
        %s256 = smul.u32 64, %s255
        %p257 = scmp.lt.s32.totalorder %s256, 511
        %s258 = scalar_select %p257, %s256, 511
        %s259 = smul.addr %s258, 4
        %s260 = scalar_lea.vmem %s5, %s259
        %s261 = sld [smem:[#allocation5 + %s45]]
        %s262 = smul.u32 64, %s261
      $region28: #{three_d_interaction.3} parent=23 // pred_fallthru
        _
      // Predicated region
      $region29: #{three_d_interaction.3} parent=23 // pred_check
        %p263 = pneg %p95
      $region30: #{three_d_interaction.3} parent=23 // pred_check_branch
        %265 = sbr.rel (%p263) target = $region32
      $region31: #{three_d_interaction.3} parent=23 // pred_region
        %s266 = sld [smem:[#allocation5 + %s45]]
        %s267 = smul.u32 64, %s266
        %p268 = scmp.lt.s32.totalorder %s267, 511
        %s269 = scalar_select %p268, %s267, 511
        %s270 = smul.addr %s269, 4
        %s271 = scalar_lea.vmem %s6, %s270
        %s272 = sld [smem:[#allocation5 + %s45]]
        %s273 = smul.u32 64, %s272
      $region32: #{three_d_interaction.3} parent=23 // pred_fallthru
        _
      // Predicated region
      $region33: #{three_d_interaction.3} parent=23 // pred_check
        %p274 = pneg %p123
      $region34: #{three_d_interaction.3} parent=23 // pred_check_branch
        %276 = sbr.rel (%p274) target = $region36
      $region35: #{three_d_interaction.3} parent=23 // pred_region
        %s277 = sld [smem:[#allocation5 + %s45]]
        %s278 = smul.u32 4, %s277
        %p279 = scmp.lt.s32.totalorder %s278, 31
        %s280 = scalar_select %p279, %s278, 31
        %s281 = scalar_lea.vmem %s7, %s280
        %s282 = sld [smem:[#allocation5 + %s45]]
        %s283 = smul.u32 4, %s282
      $region36: #{three_d_interaction.3} parent=23 // pred_fallthru
        _
      // Predicated region
      $region37: #{three_d_interaction.3} parent=23 // pred_check
        %p284 = pneg %p151
      $region38: #{three_d_interaction.3} parent=23 // pred_check_branch
        %286 = sbr.rel (%p284) target = $region40
      $region39: #{three_d_interaction.3} parent=23 // pred_region
        %s287 = sld [smem:[#allocation4 + %s45]]
        %s288 = smul.u32 64, %s287
        %p289 = scmp.lt.s32.totalorder %s288, 191
        %s290 = scalar_select %p289, %s288, 191
        %s291 = smul.addr %s290, 8
        %s292 = scalar_lea.vmem %s8, %s291
        %s293 = sld [smem:[#allocation4 + %s45]]
        %s294 = smul.u32 64, %s293
      $region40: #{three_d_interaction.3} parent=23 // pred_fallthru
        _
    $region24: #{three_d_interaction.3} parent=5 // pred_fallthru
      _
    %p295 = scmp.le.s32.totalorder 1, %s45
    %p296 = scmp.lt.s32.totalorder %s45, 12
    %p297 = pnand %p295, %p296
    %p298 = pneg %p297
    // Predicated region
    $region41: #{three_d_interaction.3} parent=5 // pred_check
      _
    $region42: #{three_d_interaction.3} parent=5 // pred_check_branch
      %300 = sbr.rel (%p297) target = $region44
    $region43: #{three_d_interaction.3} parent=5 // pred_region
      %s301 = ssub.s32 %s45, 1
      %s302 = sld [smem:[#allocation5 + %s50]]
      %s303 = smul.u32 64, %s302
      %p304 = scmp.lt.s32.totalorder %s303, 511
      %s305 = scalar_select %p304, %s303, 511
      %s306 = smul.addr %s305, 4
      %s307 = scalar_lea.vmem %s5, %s306
      %p308 = pneg %p73
      %p309 = pneg %p70
      %s310 = sld [smem:[#allocation5 + %s50]]
      %s311 = smul.u32 64, %s310
      %p312 = scmp.lt.s32.totalorder %s311, 511
      %s313 = scalar_select %p312, %s311, 511
      %s314 = smul.addr %s313, 4
      %s315 = scalar_lea.vmem %s6, %s314
      %p316 = pneg %p101
      %p317 = pneg %p98
      %s318 = sld [smem:[#allocation5 + %s50]]
      %s319 = smul.u32 4, %s318
      %p320 = scmp.lt.s32.totalorder %s319, 31
      %s321 = scalar_select %p320, %s319, 31
      %s322 = scalar_lea.vmem %s7, %s321
      %p323 = pneg %p129
      %p324 = pneg %p126
      %s325 = sld [smem:[#allocation4 + %s50]]
      %s326 = smul.u32 64, %s325
      %p327 = scmp.lt.s32.totalorder %s326, 191
      %s328 = scalar_select %p327, %s326, 191
      %s329 = smul.addr %s328, 8
      %s330 = scalar_lea.vmem %s8, %s329
      %p331 = pneg %p157
      %p332 = pneg %p154
      %p333 = pneg %p178
      %p334 = pneg %p175
      %p335 = pneg %p199
      %p336 = pneg %p196
      %p337 = pneg %p227
      %p338 = pneg %p224
      %s339 = sld [smem:[#allocation4 + %s50]]
      %s340 = smul.u32 64, %s339
      %p341 = scmp.lt.s32.totalorder %s340, 191
      %s342 = scalar_select %p341, %s340, 191
      %s343 = smul.addr %s342, 8
      %s344 = scalar_lea.vmem %s11, %s343
      %s345 = sld [smem:[#allocation5 + %s50]]
      %s346 = smul.u32 64, %s345
      %p347 = scmp.lt.s32.totalorder %s346, 511
      %s348 = scalar_select %p347, %s346, 511
      %s349 = smul.addr %s348, 4
      %s350 = scalar_lea.vmem %s5, %s349
      %s351 = sld [smem:[#allocation5 + %s50]]
      %s352 = smul.u32 64, %s351
      %s353 = sld [smem:[#allocation5 + %s50]]
      %s354 = smul.u32 64, %s353
      %p355 = scmp.lt.s32.totalorder %s354, 511
      %s356 = scalar_select %p355, %s354, 511
      %s357 = smul.addr %s356, 4
      %s358 = scalar_lea.vmem %s6, %s357
      %s359 = sld [smem:[#allocation5 + %s50]]
      %s360 = smul.u32 64, %s359
      %s361 = sld [smem:[#allocation5 + %s50]]
      %s362 = smul.u32 4, %s361
      %p363 = scmp.lt.s32.totalorder %s362, 31
      %s364 = scalar_select %p363, %s362, 31
      %s365 = scalar_lea.vmem %s7, %s364
      %s366 = sld [smem:[#allocation5 + %s50]]
      %s367 = smul.u32 4, %s366
      %s368 = sld [smem:[#allocation4 + %s50]]
      %s369 = smul.u32 64, %s368
      %p370 = scmp.lt.s32.totalorder %s369, 191
      %s371 = scalar_select %p370, %s369, 191
      %s372 = smul.addr %s371, 8
      %s373 = scalar_lea.vmem %s8, %s372
      %s374 = sld [smem:[#allocation4 + %s50]]
      %s375 = smul.u32 64, %s374
      %s376 = sld [smem:[#allocation4 + %s50]]
      %s377 = smul.u32 64, %s376
      %p378 = scmp.lt.s32.totalorder %s377, 191
      %s379 = scalar_select %p378, %s377, 191
      %s380 = smul.addr %s379, 8
      %s381 = scalar_lea.vmem %s11, %s380
      %s382 = sld [smem:[#allocation4 + %s50]]
      %s383 = smul.u32 64, %s382
      %s384 = sld [smem:[#allocation6 + %s50]]
      %p385 = scmp.eq.s32.totalorder %s384, 1
      // Predicated region
      $region45: #{three_d_interaction.3} parent=43 // pred_check
        %p386 = pneg %p385
      $region46: #{three_d_interaction.3} parent=43 // pred_check_branch
        %388 = sbr.rel (%p386) target = $region48
      $region47: #{three_d_interaction.3} parent=43 // pred_region
        %389 = vst [vmem:[#allocation2] sm:$0xff] 0.0
        %390 = vst [vmem:[#allocation2 + $0x8] sm:$0xff] 0.0
        %391 = vst [vmem:[#allocation2 + $0x10] sm:$0xff] 0.0
        %392 = vst [vmem:[#allocation2 + $0x18] sm:$0xff] 0.0
        %393 = vst [vmem:[#allocation2 + $0x20] sm:$0xff] 0.0
        %394 = vst [vmem:[#allocation2 + $0x28] sm:$0xff] 0.0
        %395 = vst [vmem:[#allocation2 + $0x30] sm:$0xff] 0.0
        %396 = vst [vmem:[#allocation2 + $0x38] sm:$0xff] 0.0
        %397 = vst [vmem:[#allocation2 + $0x40] sm:$0xff] 0.0
        %398 = vst [vmem:[#allocation2 + $0x48] sm:$0xff] 0.0
        %399 = vst [vmem:[#allocation2 + $0x50] sm:$0xff] 0.0
        %400 = vst [vmem:[#allocation2 + $0x58] sm:$0xff] 0.0
        %401 = vst [vmem:[#allocation2 + $0x60] sm:$0xff] 0.0
        %402 = vst [vmem:[#allocation2 + $0x68] sm:$0xff] 0.0
        %403 = vst [vmem:[#allocation2 + $0x70] sm:$0xff] 0.0
        %404 = vst [vmem:[#allocation2 + $0x78] sm:$0xff] 0.0
        %405 = vst [vmem:[#allocation2 + $0x80] sm:$0xff] 0.0
        %406 = vst [vmem:[#allocation2 + $0x88] sm:$0xff] 0.0
        %407 = vst [vmem:[#allocation2 + $0x90] sm:$0xff] 0.0
        %408 = vst [vmem:[#allocation2 + $0x98] sm:$0xff] 0.0
        %409 = vst [vmem:[#allocation2 + $0xa0] sm:$0xff] 0.0
        %410 = vst [vmem:[#allocation2 + $0xa8] sm:$0xff] 0.0
        %411 = vst [vmem:[#allocation2 + $0xb0] sm:$0xff] 0.0
        %412 = vst [vmem:[#allocation2 + $0xb8] sm:$0xff] 0.0
        %413 = vst [vmem:[#allocation2 + $0xc0] sm:$0xff] 0.0
        %414 = vst [vmem:[#allocation2 + $0xc8] sm:$0xff] 0.0
        %415 = vst [vmem:[#allocation2 + $0xd0] sm:$0xff] 0.0
        %416 = vst [vmem:[#allocation2 + $0xd8] sm:$0xff] 0.0
        %417 = vst [vmem:[#allocation2 + $0xe0] sm:$0xff] 0.0
        %418 = vst [vmem:[#allocation2 + $0xe8] sm:$0xff] 0.0
        %419 = vst [vmem:[#allocation2 + $0xf0] sm:$0xff] 0.0
        %420 = vst [vmem:[#allocation2 + $0xf8] sm:$0xff] 0.0
        %421 = vst [vmem:[#allocation2 + $0x100] sm:$0xff] 0.0
        %422 = vst [vmem:[#allocation2 + $0x108] sm:$0xff] 0.0
        %423 = vst [vmem:[#allocation2 + $0x110] sm:$0xff] 0.0
        %424 = vst [vmem:[#allocation2 + $0x118] sm:$0xff] 0.0
        %425 = vst [vmem:[#allocation2 + $0x120] sm:$0xff] 0.0
        %426 = vst [vmem:[#allocation2 + $0x128] sm:$0xff] 0.0
        %427 = vst [vmem:[#allocation2 + $0x130] sm:$0xff] 0.0
        %428 = vst [vmem:[#allocation2 + $0x138] sm:$0xff] 0.0
        %429 = vst [vmem:[#allocation2 + $0x140] sm:$0xff] 0.0
        %430 = vst [vmem:[#allocation2 + $0x148] sm:$0xff] 0.0
        %431 = vst [vmem:[#allocation2 + $0x150] sm:$0xff] 0.0
        %432 = vst [vmem:[#allocation2 + $0x158] sm:$0xff] 0.0
        %433 = vst [vmem:[#allocation2 + $0x160] sm:$0xff] 0.0
        %434 = vst [vmem:[#allocation2 + $0x168] sm:$0xff] 0.0
        %435 = vst [vmem:[#allocation2 + $0x170] sm:$0xff] 0.0
        %436 = vst [vmem:[#allocation2 + $0x178] sm:$0xff] 0.0
        %437 = vst [vmem:[#allocation2 + $0x180] sm:$0xff] 0.0
        %438 = vst [vmem:[#allocation2 + $0x188] sm:$0xff] 0.0
        %439 = vst [vmem:[#allocation2 + $0x190] sm:$0xff] 0.0
        %440 = vst [vmem:[#allocation2 + $0x198] sm:$0xff] 0.0
        %441 = vst [vmem:[#allocation2 + $0x1a0] sm:$0xff] 0.0
        %442 = vst [vmem:[#allocation2 + $0x1a8] sm:$0xff] 0.0
        %443 = vst [vmem:[#allocation2 + $0x1b0] sm:$0xff] 0.0
        %444 = vst [vmem:[#allocation2 + $0x1b8] sm:$0xff] 0.0
        %445 = vst [vmem:[#allocation2 + $0x1c0] sm:$0xff] 0.0
        %446 = vst [vmem:[#allocation2 + $0x1c8] sm:$0xff] 0.0
        %447 = vst [vmem:[#allocation2 + $0x1d0] sm:$0xff] 0.0
        %448 = vst [vmem:[#allocation2 + $0x1d8] sm:$0xff] 0.0
        %449 = vst [vmem:[#allocation2 + $0x1e0] sm:$0xff] 0.0
        %450 = vst [vmem:[#allocation2 + $0x1e8] sm:$0xff] 0.0
        %451 = vst [vmem:[#allocation2 + $0x1f0] sm:$0xff] 0.0
        %452 = vst [vmem:[#allocation2 + $0x1f8] sm:$0xff] 0.0
      $region48: #{three_d_interaction.3} parent=43 // pred_fallthru
        _
      %s453 = sld [smem:[#allocation8 + %s50]]
      %p454 = scmp.eq.s32.totalorder %s453, 1
      // Predicated region
      $region49: #{three_d_interaction.3} parent=43 // pred_check
        %p455 = pneg %p454
      $region50: #{three_d_interaction.3} parent=43 // pred_check_branch
        %457 = sbr.rel (%p455) target = $region52
      $region51: #{three_d_interaction.3} parent=43 // pred_region
        %s458 = sld [smem:[#allocation4 + %s50]]
        %v459 = vld [vmem:[%s350] sm:$0xf]
        %v460 = vld [vmem:[%s350 + $0x4] sm:$0xf]
        %v461 = vld [vmem:[%s350 + $0x8] sm:$0xf]
        %v462 = vld [vmem:[%s350 + $0xc] sm:$0xf]
        %v463 = vld [vmem:[%s350 + $0x10] sm:$0xf]
        %v464 = vld [vmem:[%s350 + $0x14] sm:$0xf]
        %v465 = vld [vmem:[%s350 + $0x18] sm:$0xf]
        %v466 = vld [vmem:[%s350 + $0x1c] sm:$0xf]
        %v467 = vld [vmem:[%s350 + $0x20] sm:$0xf]
        %v468 = vld [vmem:[%s350 + $0x24] sm:$0xf]
        %v469 = vld [vmem:[%s350 + $0x28] sm:$0xf]
        %v470 = vld [vmem:[%s350 + $0x2c] sm:$0xf]
        %v471 = vld [vmem:[%s350 + $0x30] sm:$0xf]
        %v472 = vld [vmem:[%s350 + $0x34] sm:$0xf]
        %v473 = vld [vmem:[%s350 + $0x38] sm:$0xf]
        %v474 = vld [vmem:[%s350 + $0x3c] sm:$0xf]
        %v475 = vld [vmem:[%s350 + $0x40] sm:$0xf]
        %v476 = vld [vmem:[%s350 + $0x44] sm:$0xf]
        %v477 = vld [vmem:[%s350 + $0x48] sm:$0xf]
        %v478 = vld [vmem:[%s350 + $0x4c] sm:$0xf]
        %v479 = vld [vmem:[%s350 + $0x50] sm:$0xf]
        %v480 = vld [vmem:[%s350 + $0x54] sm:$0xf]
        %v481 = vld [vmem:[%s350 + $0x58] sm:$0xf]
        %v482 = vld [vmem:[%s350 + $0x5c] sm:$0xf]
        %v483 = vld [vmem:[%s350 + $0x60] sm:$0xf]
        %v484 = vld [vmem:[%s350 + $0x64] sm:$0xf]
        %v485 = vld [vmem:[%s350 + $0x68] sm:$0xf]
        %v486 = vld [vmem:[%s350 + $0x6c] sm:$0xf]
        %v487 = vld [vmem:[%s350 + $0x70] sm:$0xf]
        %v488 = vld [vmem:[%s350 + $0x74] sm:$0xf]
        %v489 = vld [vmem:[%s350 + $0x78] sm:$0xf]
        %v490 = vld [vmem:[%s350 + $0x7c] sm:$0xf]
        %v491 = vld [vmem:[%s350 + $0x80] sm:$0xf]
        %v492 = vld [vmem:[%s350 + $0x84] sm:$0xf]
        %v493 = vld [vmem:[%s350 + $0x88] sm:$0xf]
        %v494 = vld [vmem:[%s350 + $0x8c] sm:$0xf]
        %v495 = vld [vmem:[%s350 + $0x90] sm:$0xf]
        %v496 = vld [vmem:[%s350 + $0x94] sm:$0xf]
        %v497 = vld [vmem:[%s350 + $0x98] sm:$0xf]
        %v498 = vld [vmem:[%s350 + $0x9c] sm:$0xf]
        %v499 = vld [vmem:[%s350 + $0xa0] sm:$0xf]
        %v500 = vld [vmem:[%s350 + $0xa4] sm:$0xf]
        %v501 = vld [vmem:[%s350 + $0xa8] sm:$0xf]
        %v502 = vld [vmem:[%s350 + $0xac] sm:$0xf]
        %v503 = vld [vmem:[%s350 + $0xb0] sm:$0xf]
        %v504 = vld [vmem:[%s350 + $0xb4] sm:$0xf]
        %v505 = vld [vmem:[%s350 + $0xb8] sm:$0xf]
        %v506 = vld [vmem:[%s350 + $0xbc] sm:$0xf]
        %v507 = vld [vmem:[%s350 + $0xc0] sm:$0xf]
        %v508 = vld [vmem:[%s350 + $0xc4] sm:$0xf]
        %v509 = vld [vmem:[%s350 + $0xc8] sm:$0xf]
        %v510 = vld [vmem:[%s350 + $0xcc] sm:$0xf]
        %v511 = vld [vmem:[%s350 + $0xd0] sm:$0xf]
        %v512 = vld [vmem:[%s350 + $0xd4] sm:$0xf]
        %v513 = vld [vmem:[%s350 + $0xd8] sm:$0xf]
        %v514 = vld [vmem:[%s350 + $0xdc] sm:$0xf]
        %v515 = vld [vmem:[%s350 + $0xe0] sm:$0xf]
        %v516 = vld [vmem:[%s350 + $0xe4] sm:$0xf]
        %v517 = vld [vmem:[%s350 + $0xe8] sm:$0xf]
        %v518 = vld [vmem:[%s350 + $0xec] sm:$0xf]
        %v519 = vld [vmem:[%s350 + $0xf0] sm:$0xf]
        %v520 = vld [vmem:[%s350 + $0xf4] sm:$0xf]
        %v521 = vld [vmem:[%s350 + $0xf8] sm:$0xf]
        %v522 = vld [vmem:[%s350 + $0xfc] sm:$0xf]
        %v523 = vld [vmem:[%s358] sm:$0xf]
        %v524 = vld [vmem:[%s358 + $0x4] sm:$0xf]
        %v525 = vld [vmem:[%s358 + $0x8] sm:$0xf]
        %v526 = vld [vmem:[%s358 + $0xc] sm:$0xf]
        %v527 = vld [vmem:[%s358 + $0x10] sm:$0xf]
        %v528 = vld [vmem:[%s358 + $0x14] sm:$0xf]
        %v529 = vld [vmem:[%s358 + $0x18] sm:$0xf]
        %v530 = vld [vmem:[%s358 + $0x1c] sm:$0xf]
        %v531 = vld [vmem:[%s358 + $0x20] sm:$0xf]
        %v532 = vld [vmem:[%s358 + $0x24] sm:$0xf]
        %v533 = vld [vmem:[%s358 + $0x28] sm:$0xf]
        %v534 = vld [vmem:[%s358 + $0x2c] sm:$0xf]
        %v535 = vld [vmem:[%s358 + $0x30] sm:$0xf]
        %v536 = vld [vmem:[%s358 + $0x34] sm:$0xf]
        %v537 = vld [vmem:[%s358 + $0x38] sm:$0xf]
        %v538 = vld [vmem:[%s358 + $0x3c] sm:$0xf]
        %v539 = vld [vmem:[%s358 + $0x40] sm:$0xf]
        %v540 = vld [vmem:[%s358 + $0x44] sm:$0xf]
        %v541 = vld [vmem:[%s358 + $0x48] sm:$0xf]
        %v542 = vld [vmem:[%s358 + $0x4c] sm:$0xf]
        %v543 = vld [vmem:[%s358 + $0x50] sm:$0xf]
        %v544 = vld [vmem:[%s358 + $0x54] sm:$0xf]
        %v545 = vld [vmem:[%s358 + $0x58] sm:$0xf]
        %v546 = vld [vmem:[%s358 + $0x5c] sm:$0xf]
        %v547 = vld [vmem:[%s358 + $0x60] sm:$0xf]
        %v548 = vld [vmem:[%s358 + $0x64] sm:$0xf]
        %v549 = vld [vmem:[%s358 + $0x68] sm:$0xf]
        %v550 = vld [vmem:[%s358 + $0x6c] sm:$0xf]
        %v551 = vld [vmem:[%s358 + $0x70] sm:$0xf]
        %v552 = vld [vmem:[%s358 + $0x74] sm:$0xf]
        %v553 = vld [vmem:[%s358 + $0x78] sm:$0xf]
        %v554 = vld [vmem:[%s358 + $0x7c] sm:$0xf]
        %v555 = vld [vmem:[%s358 + $0x80] sm:$0xf]
        %v556 = vld [vmem:[%s358 + $0x84] sm:$0xf]
        %v557 = vld [vmem:[%s358 + $0x88] sm:$0xf]
        %v558 = vld [vmem:[%s358 + $0x8c] sm:$0xf]
        %v559 = vld [vmem:[%s358 + $0x90] sm:$0xf]
        %v560 = vld [vmem:[%s358 + $0x94] sm:$0xf]
        %v561 = vld [vmem:[%s358 + $0x98] sm:$0xf]
        %v562 = vld [vmem:[%s358 + $0x9c] sm:$0xf]
        %v563 = vld [vmem:[%s358 + $0xa0] sm:$0xf]
        %v564 = vld [vmem:[%s358 + $0xa4] sm:$0xf]
        %v565 = vld [vmem:[%s358 + $0xa8] sm:$0xf]
        %v566 = vld [vmem:[%s358 + $0xac] sm:$0xf]
        %v567 = vld [vmem:[%s358 + $0xb0] sm:$0xf]
        %v568 = vld [vmem:[%s358 + $0xb4] sm:$0xf]
        %v569 = vld [vmem:[%s358 + $0xb8] sm:$0xf]
        %v570 = vld [vmem:[%s358 + $0xbc] sm:$0xf]
        %v571 = vld [vmem:[%s358 + $0xc0] sm:$0xf]
        %v572 = vld [vmem:[%s358 + $0xc4] sm:$0xf]
        %v573 = vld [vmem:[%s358 + $0xc8] sm:$0xf]
        %v574 = vld [vmem:[%s358 + $0xcc] sm:$0xf]
        %v575 = vld [vmem:[%s358 + $0xd0] sm:$0xf]
        %v576 = vld [vmem:[%s358 + $0xd4] sm:$0xf]
        %v577 = vld [vmem:[%s358 + $0xd8] sm:$0xf]
        %v578 = vld [vmem:[%s358 + $0xdc] sm:$0xf]
        %v579 = vld [vmem:[%s358 + $0xe0] sm:$0xf]
        %v580 = vld [vmem:[%s358 + $0xe4] sm:$0xf]
        %v581 = vld [vmem:[%s358 + $0xe8] sm:$0xf]
        %v582 = vld [vmem:[%s358 + $0xec] sm:$0xf]
        %v583 = vld [vmem:[%s358 + $0xf0] sm:$0xf]
        %v584 = vld [vmem:[%s358 + $0xf4] sm:$0xf]
        %v585 = vld [vmem:[%s358 + $0xf8] sm:$0xf]
        %v586 = vld [vmem:[%s358 + $0xfc] sm:$0xf]
        %v587 = vunpack.c.l.bf16 %v459
        %v588 = vunpack.c.l.bf16 %v460
        %v589 = vunpack.c.l.bf16 %v461
        %v590 = vunpack.c.l.bf16 %v462
        %v591 = vunpack.c.l.bf16 %v463
        %v592 = vunpack.c.l.bf16 %v464
        %v593 = vunpack.c.l.bf16 %v465
        %v594 = vunpack.c.l.bf16 %v466
        %v595 = vunpack.c.l.bf16 %v467
        %v596 = vunpack.c.l.bf16 %v468
        %v597 = vunpack.c.l.bf16 %v469
        %v598 = vunpack.c.l.bf16 %v470
        %v599 = vunpack.c.l.bf16 %v471
        %v600 = vunpack.c.l.bf16 %v472
        %v601 = vunpack.c.l.bf16 %v473
        %v602 = vunpack.c.l.bf16 %v474
        %v603 = vunpack.c.l.bf16 %v475
        %v604 = vunpack.c.l.bf16 %v476
        %v605 = vunpack.c.l.bf16 %v477
        %v606 = vunpack.c.l.bf16 %v478
        %v607 = vunpack.c.l.bf16 %v479
        %v608 = vunpack.c.l.bf16 %v480
        %v609 = vunpack.c.l.bf16 %v481
        %v610 = vunpack.c.l.bf16 %v482
        %v611 = vunpack.c.l.bf16 %v483
        %v612 = vunpack.c.l.bf16 %v484
        %v613 = vunpack.c.l.bf16 %v485
        %v614 = vunpack.c.l.bf16 %v486
        %v615 = vunpack.c.l.bf16 %v487
        %v616 = vunpack.c.l.bf16 %v488
        %v617 = vunpack.c.l.bf16 %v489
        %v618 = vunpack.c.l.bf16 %v490
        %v619 = vunpack.c.l.bf16 %v491
        %v620 = vunpack.c.l.bf16 %v492
        %v621 = vunpack.c.l.bf16 %v493
        %v622 = vunpack.c.l.bf16 %v494
        %v623 = vunpack.c.l.bf16 %v495
        %v624 = vunpack.c.l.bf16 %v496
        %v625 = vunpack.c.l.bf16 %v497
        %v626 = vunpack.c.l.bf16 %v498
        %v627 = vunpack.c.l.bf16 %v499
        %v628 = vunpack.c.l.bf16 %v500
        %v629 = vunpack.c.l.bf16 %v501
        %v630 = vunpack.c.l.bf16 %v502
        %v631 = vunpack.c.l.bf16 %v503
        %v632 = vunpack.c.l.bf16 %v504
        %v633 = vunpack.c.l.bf16 %v505
        %v634 = vunpack.c.l.bf16 %v506
        %v635 = vunpack.c.l.bf16 %v507
        %v636 = vunpack.c.l.bf16 %v508
        %v637 = vunpack.c.l.bf16 %v509
        %v638 = vunpack.c.l.bf16 %v510
        %v639 = vunpack.c.l.bf16 %v511
        %v640 = vunpack.c.l.bf16 %v512
        %v641 = vunpack.c.l.bf16 %v513
        %v642 = vunpack.c.l.bf16 %v514
        %v643 = vunpack.c.l.bf16 %v515
        %v644 = vunpack.c.l.bf16 %v516
        %v645 = vunpack.c.l.bf16 %v517
        %v646 = vunpack.c.l.bf16 %v518
        %v647 = vunpack.c.l.bf16 %v519
        %v648 = vunpack.c.l.bf16 %v520
        %v649 = vunpack.c.l.bf16 %v521
        %v650 = vunpack.c.l.bf16 %v522
        %v651 = vunpack.c.l.bf16 %v523
        %v652 = vunpack.c.l.bf16 %v524
        %v653 = vunpack.c.l.bf16 %v525
        %v654 = vunpack.c.l.bf16 %v526
        %v655 = vunpack.c.l.bf16 %v527
        %v656 = vunpack.c.l.bf16 %v528
        %v657 = vunpack.c.l.bf16 %v529
        %v658 = vunpack.c.l.bf16 %v530
        %v659 = vunpack.c.l.bf16 %v531
        %v660 = vunpack.c.l.bf16 %v532
        %v661 = vunpack.c.l.bf16 %v533
        %v662 = vunpack.c.l.bf16 %v534
        %v663 = vunpack.c.l.bf16 %v535
        %v664 = vunpack.c.l.bf16 %v536
        %v665 = vunpack.c.l.bf16 %v537
        %v666 = vunpack.c.l.bf16 %v538
        %v667 = vunpack.c.l.bf16 %v539
        %v668 = vunpack.c.l.bf16 %v540
        %v669 = vunpack.c.l.bf16 %v541
        %v670 = vunpack.c.l.bf16 %v542
        %v671 = vunpack.c.l.bf16 %v543
        %v672 = vunpack.c.l.bf16 %v544
        %v673 = vunpack.c.l.bf16 %v545
        %v674 = vunpack.c.l.bf16 %v546
        %v675 = vunpack.c.l.bf16 %v547
        %v676 = vunpack.c.l.bf16 %v548
        %v677 = vunpack.c.l.bf16 %v549
        %v678 = vunpack.c.l.bf16 %v550
        %v679 = vunpack.c.l.bf16 %v551
        %v680 = vunpack.c.l.bf16 %v552
        %v681 = vunpack.c.l.bf16 %v553
        %v682 = vunpack.c.l.bf16 %v554
        %v683 = vunpack.c.l.bf16 %v555
        %v684 = vunpack.c.l.bf16 %v556
        %v685 = vunpack.c.l.bf16 %v557
        %v686 = vunpack.c.l.bf16 %v558
        %v687 = vunpack.c.l.bf16 %v559
        %v688 = vunpack.c.l.bf16 %v560
        %v689 = vunpack.c.l.bf16 %v561
        %v690 = vunpack.c.l.bf16 %v562
        %v691 = vunpack.c.l.bf16 %v563
        %v692 = vunpack.c.l.bf16 %v564
        %v693 = vunpack.c.l.bf16 %v565
        %v694 = vunpack.c.l.bf16 %v566
        %v695 = vunpack.c.l.bf16 %v567
        %v696 = vunpack.c.l.bf16 %v568
        %v697 = vunpack.c.l.bf16 %v569
        %v698 = vunpack.c.l.bf16 %v570
        %v699 = vunpack.c.l.bf16 %v571
        %v700 = vunpack.c.l.bf16 %v572
        %v701 = vunpack.c.l.bf16 %v573
        %v702 = vunpack.c.l.bf16 %v574
        %v703 = vunpack.c.l.bf16 %v575
        %v704 = vunpack.c.l.bf16 %v576
        %v705 = vunpack.c.l.bf16 %v577
        %v706 = vunpack.c.l.bf16 %v578
        %v707 = vunpack.c.l.bf16 %v579
        %v708 = vunpack.c.l.bf16 %v580
        %v709 = vunpack.c.l.bf16 %v581
        %v710 = vunpack.c.l.bf16 %v582
        %v711 = vunpack.c.l.bf16 %v583
        %v712 = vunpack.c.l.bf16 %v584
        %v713 = vunpack.c.l.bf16 %v585
        %v714 = vunpack.c.l.bf16 %v586
        %v715 = vmul.f32 %v587, %v651
        %v716 = vmul.f32 %v588, %v652
        %v717 = vmul.f32 %v589, %v653
        %v718 = vmul.f32 %v590, %v654
        %v719 = vmul.f32 %v591, %v655
        %v720 = vmul.f32 %v592, %v656
        %v721 = vmul.f32 %v593, %v657
        %v722 = vmul.f32 %v594, %v658
        %v723 = vmul.f32 %v595, %v659
        %v724 = vmul.f32 %v596, %v660
        %v725 = vmul.f32 %v597, %v661
        %v726 = vmul.f32 %v598, %v662
        %v727 = vmul.f32 %v599, %v663
        %v728 = vmul.f32 %v600, %v664
        %v729 = vmul.f32 %v601, %v665
        %v730 = vmul.f32 %v602, %v666
        %v731 = vmul.f32 %v603, %v667
        %v732 = vmul.f32 %v604, %v668
        %v733 = vmul.f32 %v605, %v669
        %v734 = vmul.f32 %v606, %v670
        %v735 = vmul.f32 %v607, %v671
        %v736 = vmul.f32 %v608, %v672
        %v737 = vmul.f32 %v609, %v673
        %v738 = vmul.f32 %v610, %v674
        %v739 = vmul.f32 %v611, %v675
        %v740 = vmul.f32 %v612, %v676
        %v741 = vmul.f32 %v613, %v677
        %v742 = vmul.f32 %v614, %v678
        %v743 = vmul.f32 %v615, %v679
        %v744 = vmul.f32 %v616, %v680
        %v745 = vmul.f32 %v617, %v681
        %v746 = vmul.f32 %v618, %v682
        %v747 = vmul.f32 %v619, %v683
        %v748 = vmul.f32 %v620, %v684
        %v749 = vmul.f32 %v621, %v685
        %v750 = vmul.f32 %v622, %v686
        %v751 = vmul.f32 %v623, %v687
        %v752 = vmul.f32 %v624, %v688
        %v753 = vmul.f32 %v625, %v689
        %v754 = vmul.f32 %v626, %v690
        %v755 = vmul.f32 %v627, %v691
        %v756 = vmul.f32 %v628, %v692
        %v757 = vmul.f32 %v629, %v693
        %v758 = vmul.f32 %v630, %v694
        %v759 = vmul.f32 %v631, %v695
        %v760 = vmul.f32 %v632, %v696
        %v761 = vmul.f32 %v633, %v697
        %v762 = vmul.f32 %v634, %v698
        %v763 = vmul.f32 %v635, %v699
        %v764 = vmul.f32 %v636, %v700
        %v765 = vmul.f32 %v637, %v701
        %v766 = vmul.f32 %v638, %v702
        %v767 = vmul.f32 %v639, %v703
        %v768 = vmul.f32 %v640, %v704
        %v769 = vmul.f32 %v641, %v705
        %v770 = vmul.f32 %v642, %v706
        %v771 = vmul.f32 %v643, %v707
        %v772 = vmul.f32 %v644, %v708
        %v773 = vmul.f32 %v645, %v709
        %v774 = vmul.f32 %v646, %v710
        %v775 = vmul.f32 %v647, %v711
        %v776 = vmul.f32 %v648, %v712
        %v777 = vmul.f32 %v649, %v713
        %v778 = vmul.f32 %v650, %v714
        %v779 = vpack.c.bf16 %v716, %v715
        %v780 = vpack.c.bf16 %v718, %v717
        %v781 = vpack.c.bf16 %v720, %v719
        %v782 = vpack.c.bf16 %v722, %v721
        %v783 = vpack.c.bf16 %v724, %v723
        %v784 = vpack.c.bf16 %v726, %v725
        %v785 = vpack.c.bf16 %v728, %v727
        %v786 = vpack.c.bf16 %v730, %v729
        %v787 = vpack.c.bf16 %v732, %v731
        %v788 = vpack.c.bf16 %v734, %v733
        %v789 = vpack.c.bf16 %v736, %v735
        %v790 = vpack.c.bf16 %v738, %v737
        %v791 = vpack.c.bf16 %v740, %v739
        %v792 = vpack.c.bf16 %v742, %v741
        %v793 = vpack.c.bf16 %v744, %v743
        %v794 = vpack.c.bf16 %v746, %v745
        %v795 = vpack.c.bf16 %v748, %v747
        %v796 = vpack.c.bf16 %v750, %v749
        %v797 = vpack.c.bf16 %v752, %v751
        %v798 = vpack.c.bf16 %v754, %v753
        %v799 = vpack.c.bf16 %v756, %v755
        %v800 = vpack.c.bf16 %v758, %v757
        %v801 = vpack.c.bf16 %v760, %v759
        %v802 = vpack.c.bf16 %v762, %v761
        %v803 = vpack.c.bf16 %v764, %v763
        %v804 = vpack.c.bf16 %v766, %v765
        %v805 = vpack.c.bf16 %v768, %v767
        %v806 = vpack.c.bf16 %v770, %v769
        %v807 = vpack.c.bf16 %v772, %v771
        %v808 = vpack.c.bf16 %v774, %v773
        %v809 = vpack.c.bf16 %v776, %v775
        %v810 = vpack.c.bf16 %v778, %v777
        %v811 = vld [vmem:[%s365] sm:$0xf]
        %s812 = smul.u32 %s458, 512
        %v813 = vstv %s812
        %v814 = vsub.s32 %v811, %v813
        %v815 = vlaneseq
        %v816 = vshrl.u32 %v815, 7
        %v817 = vadd.s32 %v816, 8
        %v818 = vadd.s32 %v816, 16
        %v819 = vadd.s32 %v816, 24
        %v820 = vadd.s32 %v816, 32
        %v821 = vadd.s32 %v816, 40
        %v822 = vadd.s32 %v816, 48
        %v823 = vadd.s32 %v816, 56
        %v824 = vadd.s32 %v816, 64
        %v825 = vadd.s32 %v816, 72
        %v826 = vadd.s32 %v816, 80
        %v827 = vadd.s32 %v816, 88
        %v828 = vadd.s32 %v816, 96
        %v829 = vadd.s32 %v816, 104
        %v830 = vadd.s32 %v816, 112
        %v831 = vadd.s32 %v816, 120
        %v832 = vadd.s32 %v816, 128
        %v833 = vadd.s32 %v816, 136
        %v834 = vadd.s32 %v816, 144
        %v835 = vadd.s32 %v816, 152
        %v836 = vadd.s32 %v816, 160
        %v837 = vadd.s32 %v816, 168
        %v838 = vadd.s32 %v816, 176
        %v839 = vadd.s32 %v816, 184
        %v840 = vadd.s32 %v816, 192
        %v841 = vadd.s32 %v816, 200
        %v842 = vadd.s32 %v816, 208
        %v843 = vadd.s32 %v816, 216
        %v844 = vadd.s32 %v816, 224
        %v845 = vadd.s32 %v816, 232
        %v846 = vadd.s32 %v816, 240
        %v847 = vadd.s32 %v816, 248
        %v848 = vadd.s32 %v816, 256
        %v849 = vadd.s32 %v816, 264
        %v850 = vadd.s32 %v816, 272
        %v851 = vadd.s32 %v816, 280
        %v852 = vadd.s32 %v816, 288
        %v853 = vadd.s32 %v816, 296
        %v854 = vadd.s32 %v816, 304
        %v855 = vadd.s32 %v816, 312
        %v856 = vadd.s32 %v816, 320
        %v857 = vadd.s32 %v816, 328
        %v858 = vadd.s32 %v816, 336
        %v859 = vadd.s32 %v816, 344
        %v860 = vadd.s32 %v816, 352
        %v861 = vadd.s32 %v816, 360
        %v862 = vadd.s32 %v816, 368
        %v863 = vadd.s32 %v816, 376
        %v864 = vadd.s32 %v816, 384
        %v865 = vadd.s32 %v816, 392
        %v866 = vadd.s32 %v816, 400
        %v867 = vadd.s32 %v816, 408
        %v868 = vadd.s32 %v816, 416
        %v869 = vadd.s32 %v816, 424
        %v870 = vadd.s32 %v816, 432
        %v871 = vadd.s32 %v816, 440
        %v872 = vadd.s32 %v816, 448
        %v873 = vadd.s32 %v816, 456
        %v874 = vadd.s32 %v816, 464
        %v875 = vadd.s32 %v816, 472
        %v876 = vadd.s32 %v816, 480
        %v877 = vadd.s32 %v816, 488
        %v878 = vadd.s32 %v816, 496
        %v879 = vadd.s32 %v816, 504
        %v880 = vperm.slane %v814, 0
        %v881 = vperm.slane %v814, 1
        %v882 = vperm.slane %v814, 2
        %v883 = vperm.slane %v814, 3
        %vm884 = vcmp.eq.s32.totalorder %v816, %v880
        %vm885 = vcmp.eq.s32.totalorder %v816, %v881
        %vm886 = vcmp.eq.s32.totalorder %v816, %v882
        %vm887 = vcmp.eq.s32.totalorder %v816, %v883
        %vm888 = vcmp.eq.s32.totalorder %v817, %v880
        %vm889 = vcmp.eq.s32.totalorder %v817, %v881
        %vm890 = vcmp.eq.s32.totalorder %v817, %v882
        %vm891 = vcmp.eq.s32.totalorder %v817, %v883
        %vm892 = vcmp.eq.s32.totalorder %v818, %v880
        %vm893 = vcmp.eq.s32.totalorder %v818, %v881
        %vm894 = vcmp.eq.s32.totalorder %v818, %v882
        %vm895 = vcmp.eq.s32.totalorder %v818, %v883
        %vm896 = vcmp.eq.s32.totalorder %v819, %v880
        %vm897 = vcmp.eq.s32.totalorder %v819, %v881
        %vm898 = vcmp.eq.s32.totalorder %v819, %v882
        %vm899 = vcmp.eq.s32.totalorder %v819, %v883
        %vm900 = vcmp.eq.s32.totalorder %v820, %v880
        %vm901 = vcmp.eq.s32.totalorder %v820, %v881
        %vm902 = vcmp.eq.s32.totalorder %v820, %v882
        %vm903 = vcmp.eq.s32.totalorder %v820, %v883
        %vm904 = vcmp.eq.s32.totalorder %v821, %v880
        %vm905 = vcmp.eq.s32.totalorder %v821, %v881
        %vm906 = vcmp.eq.s32.totalorder %v821, %v882
        %vm907 = vcmp.eq.s32.totalorder %v821, %v883
        %vm908 = vcmp.eq.s32.totalorder %v822, %v880
        %vm909 = vcmp.eq.s32.totalorder %v822, %v881
        %vm910 = vcmp.eq.s32.totalorder %v822, %v882
        %vm911 = vcmp.eq.s32.totalorder %v822, %v883
        %vm912 = vcmp.eq.s32.totalorder %v823, %v880
        %vm913 = vcmp.eq.s32.totalorder %v823, %v881
        %vm914 = vcmp.eq.s32.totalorder %v823, %v882
        %vm915 = vcmp.eq.s32.totalorder %v823, %v883
        %vm916 = vcmp.eq.s32.totalorder %v824, %v880
        %vm917 = vcmp.eq.s32.totalorder %v824, %v881
        %vm918 = vcmp.eq.s32.totalorder %v824, %v882
        %vm919 = vcmp.eq.s32.totalorder %v824, %v883
        %vm920 = vcmp.eq.s32.totalorder %v825, %v880
        %vm921 = vcmp.eq.s32.totalorder %v825, %v881
        %vm922 = vcmp.eq.s32.totalorder %v825, %v882
        %vm923 = vcmp.eq.s32.totalorder %v825, %v883
        %vm924 = vcmp.eq.s32.totalorder %v826, %v880
        %vm925 = vcmp.eq.s32.totalorder %v826, %v881
        %vm926 = vcmp.eq.s32.totalorder %v826, %v882
        %vm927 = vcmp.eq.s32.totalorder %v826, %v883
        %vm928 = vcmp.eq.s32.totalorder %v827, %v880
        %vm929 = vcmp.eq.s32.totalorder %v827, %v881
        %vm930 = vcmp.eq.s32.totalorder %v827, %v882
        %vm931 = vcmp.eq.s32.totalorder %v827, %v883
        %vm932 = vcmp.eq.s32.totalorder %v828, %v880
        %vm933 = vcmp.eq.s32.totalorder %v828, %v881
        %vm934 = vcmp.eq.s32.totalorder %v828, %v882
        %vm935 = vcmp.eq.s32.totalorder %v828, %v883
        %vm936 = vcmp.eq.s32.totalorder %v829, %v880
        %vm937 = vcmp.eq.s32.totalorder %v829, %v881
        %vm938 = vcmp.eq.s32.totalorder %v829, %v882
        %vm939 = vcmp.eq.s32.totalorder %v829, %v883
        %vm940 = vcmp.eq.s32.totalorder %v830, %v880
        %vm941 = vcmp.eq.s32.totalorder %v830, %v881
        %vm942 = vcmp.eq.s32.totalorder %v830, %v882
        %vm943 = vcmp.eq.s32.totalorder %v830, %v883
        %vm944 = vcmp.eq.s32.totalorder %v831, %v880
        %vm945 = vcmp.eq.s32.totalorder %v831, %v881
        %vm946 = vcmp.eq.s32.totalorder %v831, %v882
        %vm947 = vcmp.eq.s32.totalorder %v831, %v883
        %vm948 = vcmp.eq.s32.totalorder %v832, %v880
        %vm949 = vcmp.eq.s32.totalorder %v832, %v881
        %vm950 = vcmp.eq.s32.totalorder %v832, %v882
        %vm951 = vcmp.eq.s32.totalorder %v832, %v883
        %vm952 = vcmp.eq.s32.totalorder %v833, %v880
        %vm953 = vcmp.eq.s32.totalorder %v833, %v881
        %vm954 = vcmp.eq.s32.totalorder %v833, %v882
        %vm955 = vcmp.eq.s32.totalorder %v833, %v883
        %vm956 = vcmp.eq.s32.totalorder %v834, %v880
        %vm957 = vcmp.eq.s32.totalorder %v834, %v881
        %vm958 = vcmp.eq.s32.totalorder %v834, %v882
        %vm959 = vcmp.eq.s32.totalorder %v834, %v883
        %vm960 = vcmp.eq.s32.totalorder %v835, %v880
        %vm961 = vcmp.eq.s32.totalorder %v835, %v881
        %vm962 = vcmp.eq.s32.totalorder %v835, %v882
        %vm963 = vcmp.eq.s32.totalorder %v835, %v883
        %vm964 = vcmp.eq.s32.totalorder %v836, %v880
        %vm965 = vcmp.eq.s32.totalorder %v836, %v881
        %vm966 = vcmp.eq.s32.totalorder %v836, %v882
        %vm967 = vcmp.eq.s32.totalorder %v836, %v883
        %vm968 = vcmp.eq.s32.totalorder %v837, %v880
        %vm969 = vcmp.eq.s32.totalorder %v837, %v881
        %vm970 = vcmp.eq.s32.totalorder %v837, %v882
        %vm971 = vcmp.eq.s32.totalorder %v837, %v883
        %vm972 = vcmp.eq.s32.totalorder %v838, %v880
        %vm973 = vcmp.eq.s32.totalorder %v838, %v881
        %vm974 = vcmp.eq.s32.totalorder %v838, %v882
        %vm975 = vcmp.eq.s32.totalorder %v838, %v883
        %vm976 = vcmp.eq.s32.totalorder %v839, %v880
        %vm977 = vcmp.eq.s32.totalorder %v839, %v881
        %vm978 = vcmp.eq.s32.totalorder %v839, %v882
        %vm979 = vcmp.eq.s32.totalorder %v839, %v883
        %vm980 = vcmp.eq.s32.totalorder %v840, %v880
        %vm981 = vcmp.eq.s32.totalorder %v840, %v881
        %vm982 = vcmp.eq.s32.totalorder %v840, %v882
        %vm983 = vcmp.eq.s32.totalorder %v840, %v883
        %vm984 = vcmp.eq.s32.totalorder %v841, %v880
        %vm985 = vcmp.eq.s32.totalorder %v841, %v881
        %vm986 = vcmp.eq.s32.totalorder %v841, %v882
        %vm987 = vcmp.eq.s32.totalorder %v841, %v883
        %vm988 = vcmp.eq.s32.totalorder %v842, %v880
        %vm989 = vcmp.eq.s32.totalorder %v842, %v881
        %vm990 = vcmp.eq.s32.totalorder %v842, %v882
        %vm991 = vcmp.eq.s32.totalorder %v842, %v883
        %vm992 = vcmp.eq.s32.totalorder %v843, %v880
        %vm993 = vcmp.eq.s32.totalorder %v843, %v881
        %vm994 = vcmp.eq.s32.totalorder %v843, %v882
        %vm995 = vcmp.eq.s32.totalorder %v843, %v883
        %vm996 = vcmp.eq.s32.totalorder %v844, %v880
        %vm997 = vcmp.eq.s32.totalorder %v844, %v881
        %vm998 = vcmp.eq.s32.totalorder %v844, %v882
        %vm999 = vcmp.eq.s32.totalorder %v844, %v883
        %vm1000 = vcmp.eq.s32.totalorder %v845, %v880
        %vm1001 = vcmp.eq.s32.totalorder %v845, %v881
        %vm1002 = vcmp.eq.s32.totalorder %v845, %v882
        %vm1003 = vcmp.eq.s32.totalorder %v845, %v883
        %vm1004 = vcmp.eq.s32.totalorder %v846, %v880
        %vm1005 = vcmp.eq.s32.totalorder %v846, %v881
        %vm1006 = vcmp.eq.s32.totalorder %v846, %v882
        %vm1007 = vcmp.eq.s32.totalorder %v846, %v883
        %vm1008 = vcmp.eq.s32.totalorder %v847, %v880
        %vm1009 = vcmp.eq.s32.totalorder %v847, %v881
        %vm1010 = vcmp.eq.s32.totalorder %v847, %v882
        %vm1011 = vcmp.eq.s32.totalorder %v847, %v883
        %vm1012 = vcmp.eq.s32.totalorder %v848, %v880
        %vm1013 = vcmp.eq.s32.totalorder %v848, %v881
        %vm1014 = vcmp.eq.s32.totalorder %v848, %v882
        %vm1015 = vcmp.eq.s32.totalorder %v848, %v883
        %vm1016 = vcmp.eq.s32.totalorder %v849, %v880
        %vm1017 = vcmp.eq.s32.totalorder %v849, %v881
        %vm1018 = vcmp.eq.s32.totalorder %v849, %v882
        %vm1019 = vcmp.eq.s32.totalorder %v849, %v883
        %vm1020 = vcmp.eq.s32.totalorder %v850, %v880
        %vm1021 = vcmp.eq.s32.totalorder %v850, %v881
        %vm1022 = vcmp.eq.s32.totalorder %v850, %v882
        %vm1023 = vcmp.eq.s32.totalorder %v850, %v883
        %vm1024 = vcmp.eq.s32.totalorder %v851, %v880
        %vm1025 = vcmp.eq.s32.totalorder %v851, %v881
        %vm1026 = vcmp.eq.s32.totalorder %v851, %v882
        %vm1027 = vcmp.eq.s32.totalorder %v851, %v883
        %vm1028 = vcmp.eq.s32.totalorder %v852, %v880
        %vm1029 = vcmp.eq.s32.totalorder %v852, %v881
        %vm1030 = vcmp.eq.s32.totalorder %v852, %v882
        %vm1031 = vcmp.eq.s32.totalorder %v852, %v883
        %vm1032 = vcmp.eq.s32.totalorder %v853, %v880
        %vm1033 = vcmp.eq.s32.totalorder %v853, %v881
        %vm1034 = vcmp.eq.s32.totalorder %v853, %v882
        %vm1035 = vcmp.eq.s32.totalorder %v853, %v883
        %vm1036 = vcmp.eq.s32.totalorder %v854, %v880
        %vm1037 = vcmp.eq.s32.totalorder %v854, %v881
        %vm1038 = vcmp.eq.s32.totalorder %v854, %v882
        %vm1039 = vcmp.eq.s32.totalorder %v854, %v883
        %vm1040 = vcmp.eq.s32.totalorder %v855, %v880
        %vm1041 = vcmp.eq.s32.totalorder %v855, %v881
        %vm1042 = vcmp.eq.s32.totalorder %v855, %v882
        %vm1043 = vcmp.eq.s32.totalorder %v855, %v883
        %vm1044 = vcmp.eq.s32.totalorder %v856, %v880
        %vm1045 = vcmp.eq.s32.totalorder %v856, %v881
        %vm1046 = vcmp.eq.s32.totalorder %v856, %v882
        %vm1047 = vcmp.eq.s32.totalorder %v856, %v883
        %vm1048 = vcmp.eq.s32.totalorder %v857, %v880
        %vm1049 = vcmp.eq.s32.totalorder %v857, %v881
        %vm1050 = vcmp.eq.s32.totalorder %v857, %v882
        %vm1051 = vcmp.eq.s32.totalorder %v857, %v883
        %vm1052 = vcmp.eq.s32.totalorder %v858, %v880
        %vm1053 = vcmp.eq.s32.totalorder %v858, %v881
        %vm1054 = vcmp.eq.s32.totalorder %v858, %v882
        %vm1055 = vcmp.eq.s32.totalorder %v858, %v883
        %vm1056 = vcmp.eq.s32.totalorder %v859, %v880
        %vm1057 = vcmp.eq.s32.totalorder %v859, %v881
        %vm1058 = vcmp.eq.s32.totalorder %v859, %v882
        %vm1059 = vcmp.eq.s32.totalorder %v859, %v883
        %vm1060 = vcmp.eq.s32.totalorder %v860, %v880
        %vm1061 = vcmp.eq.s32.totalorder %v860, %v881
        %vm1062 = vcmp.eq.s32.totalorder %v860, %v882
        %vm1063 = vcmp.eq.s32.totalorder %v860, %v883
        %vm1064 = vcmp.eq.s32.totalorder %v861, %v880
        %vm1065 = vcmp.eq.s32.totalorder %v861, %v881
        %vm1066 = vcmp.eq.s32.totalorder %v861, %v882
        %vm1067 = vcmp.eq.s32.totalorder %v861, %v883
        %vm1068 = vcmp.eq.s32.totalorder %v862, %v880
        %vm1069 = vcmp.eq.s32.totalorder %v862, %v881
        %vm1070 = vcmp.eq.s32.totalorder %v862, %v882
        %vm1071 = vcmp.eq.s32.totalorder %v862, %v883
        %vm1072 = vcmp.eq.s32.totalorder %v863, %v880
        %vm1073 = vcmp.eq.s32.totalorder %v863, %v881
        %vm1074 = vcmp.eq.s32.totalorder %v863, %v882
        %vm1075 = vcmp.eq.s32.totalorder %v863, %v883
        %vm1076 = vcmp.eq.s32.totalorder %v864, %v880
        %vm1077 = vcmp.eq.s32.totalorder %v864, %v881
        %vm1078 = vcmp.eq.s32.totalorder %v864, %v882
        %vm1079 = vcmp.eq.s32.totalorder %v864, %v883
        %vm1080 = vcmp.eq.s32.totalorder %v865, %v880
        %vm1081 = vcmp.eq.s32.totalorder %v865, %v881
        %vm1082 = vcmp.eq.s32.totalorder %v865, %v882
        %vm1083 = vcmp.eq.s32.totalorder %v865, %v883
        %vm1084 = vcmp.eq.s32.totalorder %v866, %v880
        %vm1085 = vcmp.eq.s32.totalorder %v866, %v881
        %vm1086 = vcmp.eq.s32.totalorder %v866, %v882
        %vm1087 = vcmp.eq.s32.totalorder %v866, %v883
        %vm1088 = vcmp.eq.s32.totalorder %v867, %v880
        %vm1089 = vcmp.eq.s32.totalorder %v867, %v881
        %vm1090 = vcmp.eq.s32.totalorder %v867, %v882
        %vm1091 = vcmp.eq.s32.totalorder %v867, %v883
        %vm1092 = vcmp.eq.s32.totalorder %v868, %v880
        %vm1093 = vcmp.eq.s32.totalorder %v868, %v881
        %vm1094 = vcmp.eq.s32.totalorder %v868, %v882
        %vm1095 = vcmp.eq.s32.totalorder %v868, %v883
        %vm1096 = vcmp.eq.s32.totalorder %v869, %v880
        %vm1097 = vcmp.eq.s32.totalorder %v869, %v881
        %vm1098 = vcmp.eq.s32.totalorder %v869, %v882
        %vm1099 = vcmp.eq.s32.totalorder %v869, %v883
        %vm1100 = vcmp.eq.s32.totalorder %v870, %v880
        %vm1101 = vcmp.eq.s32.totalorder %v870, %v881
        %vm1102 = vcmp.eq.s32.totalorder %v870, %v882
        %vm1103 = vcmp.eq.s32.totalorder %v870, %v883
        %vm1104 = vcmp.eq.s32.totalorder %v871, %v880
        %vm1105 = vcmp.eq.s32.totalorder %v871, %v881
        %vm1106 = vcmp.eq.s32.totalorder %v871, %v882
        %vm1107 = vcmp.eq.s32.totalorder %v871, %v883
        %vm1108 = vcmp.eq.s32.totalorder %v872, %v880
        %vm1109 = vcmp.eq.s32.totalorder %v872, %v881
        %vm1110 = vcmp.eq.s32.totalorder %v872, %v882
        %vm1111 = vcmp.eq.s32.totalorder %v872, %v883
        %vm1112 = vcmp.eq.s32.totalorder %v873, %v880
        %vm1113 = vcmp.eq.s32.totalorder %v873, %v881
        %vm1114 = vcmp.eq.s32.totalorder %v873, %v882
        %vm1115 = vcmp.eq.s32.totalorder %v873, %v883
        %vm1116 = vcmp.eq.s32.totalorder %v874, %v880
        %vm1117 = vcmp.eq.s32.totalorder %v874, %v881
        %vm1118 = vcmp.eq.s32.totalorder %v874, %v882
        %vm1119 = vcmp.eq.s32.totalorder %v874, %v883
        %vm1120 = vcmp.eq.s32.totalorder %v875, %v880
        %vm1121 = vcmp.eq.s32.totalorder %v875, %v881
        %vm1122 = vcmp.eq.s32.totalorder %v875, %v882
        %vm1123 = vcmp.eq.s32.totalorder %v875, %v883
        %vm1124 = vcmp.eq.s32.totalorder %v876, %v880
        %vm1125 = vcmp.eq.s32.totalorder %v876, %v881
        %vm1126 = vcmp.eq.s32.totalorder %v876, %v882
        %vm1127 = vcmp.eq.s32.totalorder %v876, %v883
        %vm1128 = vcmp.eq.s32.totalorder %v877, %v880
        %vm1129 = vcmp.eq.s32.totalorder %v877, %v881
        %vm1130 = vcmp.eq.s32.totalorder %v877, %v882
        %vm1131 = vcmp.eq.s32.totalorder %v877, %v883
        %vm1132 = vcmp.eq.s32.totalorder %v878, %v880
        %vm1133 = vcmp.eq.s32.totalorder %v878, %v881
        %vm1134 = vcmp.eq.s32.totalorder %v878, %v882
        %vm1135 = vcmp.eq.s32.totalorder %v878, %v883
        %vm1136 = vcmp.eq.s32.totalorder %v879, %v880
        %vm1137 = vcmp.eq.s32.totalorder %v879, %v881
        %vm1138 = vcmp.eq.s32.totalorder %v879, %v882
        %vm1139 = vcmp.eq.s32.totalorder %v879, %v883
        %v1140 = vsel %vm884, 1, 0
        %v1141 = vsel %vm885, 1, 0
        %v1142 = vsel %vm886, 1, 0
        %v1143 = vsel %vm887, 1, 0
        %v1144 = vsel %vm888, 1, 0
        %v1145 = vsel %vm889, 1, 0
        %v1146 = vsel %vm890, 1, 0
        %v1147 = vsel %vm891, 1, 0
        %v1148 = vsel %vm892, 1, 0
        %v1149 = vsel %vm893, 1, 0
        %v1150 = vsel %vm894, 1, 0
        %v1151 = vsel %vm895, 1, 0
        %v1152 = vsel %vm896, 1, 0
        %v1153 = vsel %vm897, 1, 0
        %v1154 = vsel %vm898, 1, 0
        %v1155 = vsel %vm899, 1, 0
        %v1156 = vsel %vm900, 1, 0
        %v1157 = vsel %vm901, 1, 0
        %v1158 = vsel %vm902, 1, 0
        %v1159 = vsel %vm903, 1, 0
        %v1160 = vsel %vm904, 1, 0
        %v1161 = vsel %vm905, 1, 0
        %v1162 = vsel %vm906, 1, 0
        %v1163 = vsel %vm907, 1, 0
        %v1164 = vsel %vm908, 1, 0
        %v1165 = vsel %vm909, 1, 0
        %v1166 = vsel %vm910, 1, 0
        %v1167 = vsel %vm911, 1, 0
        %v1168 = vsel %vm912, 1, 0
        %v1169 = vsel %vm913, 1, 0
        %v1170 = vsel %vm914, 1, 0
        %v1171 = vsel %vm915, 1, 0
        %v1172 = vsel %vm916, 1, 0
        %v1173 = vsel %vm917, 1, 0
        %v1174 = vsel %vm918, 1, 0
        %v1175 = vsel %vm919, 1, 0
        %v1176 = vsel %vm920, 1, 0
        %v1177 = vsel %vm921, 1, 0
        %v1178 = vsel %vm922, 1, 0
        %v1179 = vsel %vm923, 1, 0
        %v1180 = vsel %vm924, 1, 0
        %v1181 = vsel %vm925, 1, 0
        %v1182 = vsel %vm926, 1, 0
        %v1183 = vsel %vm927, 1, 0
        %v1184 = vsel %vm928, 1, 0
        %v1185 = vsel %vm929, 1, 0
        %v1186 = vsel %vm930, 1, 0
        %v1187 = vsel %vm931, 1, 0
        %v1188 = vsel %vm932, 1, 0
        %v1189 = vsel %vm933, 1, 0
        %v1190 = vsel %vm934, 1, 0
        %v1191 = vsel %vm935, 1, 0
        %v1192 = vsel %vm936, 1, 0
        %v1193 = vsel %vm937, 1, 0
        %v1194 = vsel %vm938, 1, 0
        %v1195 = vsel %vm939, 1, 0
        %v1196 = vsel %vm940, 1, 0
        %v1197 = vsel %vm941, 1, 0
        %v1198 = vsel %vm942, 1, 0
        %v1199 = vsel %vm943, 1, 0
        %v1200 = vsel %vm944, 1, 0
        %v1201 = vsel %vm945, 1, 0
        %v1202 = vsel %vm946, 1, 0
        %v1203 = vsel %vm947, 1, 0
        %v1204 = vsel %vm948, 1, 0
        %v1205 = vsel %vm949, 1, 0
        %v1206 = vsel %vm950, 1, 0
        %v1207 = vsel %vm951, 1, 0
        %v1208 = vsel %vm952, 1, 0
        %v1209 = vsel %vm953, 1, 0
        %v1210 = vsel %vm954, 1, 0
        %v1211 = vsel %vm955, 1, 0
        %v1212 = vsel %vm956, 1, 0
        %v1213 = vsel %vm957, 1, 0
        %v1214 = vsel %vm958, 1, 0
        %v1215 = vsel %vm959, 1, 0
        %v1216 = vsel %vm960, 1, 0
        %v1217 = vsel %vm961, 1, 0
        %v1218 = vsel %vm962, 1, 0
        %v1219 = vsel %vm963, 1, 0
        %v1220 = vsel %vm964, 1, 0
        %v1221 = vsel %vm965, 1, 0
        %v1222 = vsel %vm966, 1, 0
        %v1223 = vsel %vm967, 1, 0
        %v1224 = vsel %vm968, 1, 0
        %v1225 = vsel %vm969, 1, 0
        %v1226 = vsel %vm970, 1, 0
        %v1227 = vsel %vm971, 1, 0
        %v1228 = vsel %vm972, 1, 0
        %v1229 = vsel %vm973, 1, 0
        %v1230 = vsel %vm974, 1, 0
        %v1231 = vsel %vm975, 1, 0
        %v1232 = vsel %vm976, 1, 0
        %v1233 = vsel %vm977, 1, 0
        %v1234 = vsel %vm978, 1, 0
        %v1235 = vsel %vm979, 1, 0
        %v1236 = vsel %vm980, 1, 0
        %v1237 = vsel %vm981, 1, 0
        %v1238 = vsel %vm982, 1, 0
        %v1239 = vsel %vm983, 1, 0
        %v1240 = vsel %vm984, 1, 0
        %v1241 = vsel %vm985, 1, 0
        %v1242 = vsel %vm986, 1, 0
        %v1243 = vsel %vm987, 1, 0
        %v1244 = vsel %vm988, 1, 0
        %v1245 = vsel %vm989, 1, 0
        %v1246 = vsel %vm990, 1, 0
        %v1247 = vsel %vm991, 1, 0
        %v1248 = vsel %vm992, 1, 0
        %v1249 = vsel %vm993, 1, 0
        %v1250 = vsel %vm994, 1, 0
        %v1251 = vsel %vm995, 1, 0
        %v1252 = vsel %vm996, 1, 0
        %v1253 = vsel %vm997, 1, 0
        %v1254 = vsel %vm998, 1, 0
        %v1255 = vsel %vm999, 1, 0
        %v1256 = vsel %vm1000, 1, 0
        %v1257 = vsel %vm1001, 1, 0
        %v1258 = vsel %vm1002, 1, 0
        %v1259 = vsel %vm1003, 1, 0
        %v1260 = vsel %vm1004, 1, 0
        %v1261 = vsel %vm1005, 1, 0
        %v1262 = vsel %vm1006, 1, 0
        %v1263 = vsel %vm1007, 1, 0
        %v1264 = vsel %vm1008, 1, 0
        %v1265 = vsel %vm1009, 1, 0
        %v1266 = vsel %vm1010, 1, 0
        %v1267 = vsel %vm1011, 1, 0
        %v1268 = vsel %vm1012, 1, 0
        %v1269 = vsel %vm1013, 1, 0
        %v1270 = vsel %vm1014, 1, 0
        %v1271 = vsel %vm1015, 1, 0
        %v1272 = vsel %vm1016, 1, 0
        %v1273 = vsel %vm1017, 1, 0
        %v1274 = vsel %vm1018, 1, 0
        %v1275 = vsel %vm1019, 1, 0
        %v1276 = vsel %vm1020, 1, 0
        %v1277 = vsel %vm1021, 1, 0
        %v1278 = vsel %vm1022, 1, 0
        %v1279 = vsel %vm1023, 1, 0
        %v1280 = vsel %vm1024, 1, 0
        %v1281 = vsel %vm1025, 1, 0
        %v1282 = vsel %vm1026, 1, 0
        %v1283 = vsel %vm1027, 1, 0
        %v1284 = vsel %vm1028, 1, 0
        %v1285 = vsel %vm1029, 1, 0
        %v1286 = vsel %vm1030, 1, 0
        %v1287 = vsel %vm1031, 1, 0
        %v1288 = vsel %vm1032, 1, 0
        %v1289 = vsel %vm1033, 1, 0
        %v1290 = vsel %vm1034, 1, 0
        %v1291 = vsel %vm1035, 1, 0
        %v1292 = vsel %vm1036, 1, 0
        %v1293 = vsel %vm1037, 1, 0
        %v1294 = vsel %vm1038, 1, 0
        %v1295 = vsel %vm1039, 1, 0
        %v1296 = vsel %vm1040, 1, 0
        %v1297 = vsel %vm1041, 1, 0
        %v1298 = vsel %vm1042, 1, 0
        %v1299 = vsel %vm1043, 1, 0
        %v1300 = vsel %vm1044, 1, 0
        %v1301 = vsel %vm1045, 1, 0
        %v1302 = vsel %vm1046, 1, 0
        %v1303 = vsel %vm1047, 1, 0
        %v1304 = vsel %vm1048, 1, 0
        %v1305 = vsel %vm1049, 1, 0
        %v1306 = vsel %vm1050, 1, 0
        %v1307 = vsel %vm1051, 1, 0
        %v1308 = vsel %vm1052, 1, 0
        %v1309 = vsel %vm1053, 1, 0
        %v1310 = vsel %vm1054, 1, 0
        %v1311 = vsel %vm1055, 1, 0
        %v1312 = vsel %vm1056, 1, 0
        %v1313 = vsel %vm1057, 1, 0
        %v1314 = vsel %vm1058, 1, 0
        %v1315 = vsel %vm1059, 1, 0
        %v1316 = vsel %vm1060, 1, 0
        %v1317 = vsel %vm1061, 1, 0
        %v1318 = vsel %vm1062, 1, 0
        %v1319 = vsel %vm1063, 1, 0
        %v1320 = vsel %vm1064, 1, 0
        %v1321 = vsel %vm1065, 1, 0
        %v1322 = vsel %vm1066, 1, 0
        %v1323 = vsel %vm1067, 1, 0
        %v1324 = vsel %vm1068, 1, 0
        %v1325 = vsel %vm1069, 1, 0
        %v1326 = vsel %vm1070, 1, 0
        %v1327 = vsel %vm1071, 1, 0
        %v1328 = vsel %vm1072, 1, 0
        %v1329 = vsel %vm1073, 1, 0
        %v1330 = vsel %vm1074, 1, 0
        %v1331 = vsel %vm1075, 1, 0
        %v1332 = vsel %vm1076, 1, 0
        %v1333 = vsel %vm1077, 1, 0
        %v1334 = vsel %vm1078, 1, 0
        %v1335 = vsel %vm1079, 1, 0
        %v1336 = vsel %vm1080, 1, 0
        %v1337 = vsel %vm1081, 1, 0
        %v1338 = vsel %vm1082, 1, 0
        %v1339 = vsel %vm1083, 1, 0
        %v1340 = vsel %vm1084, 1, 0
        %v1341 = vsel %vm1085, 1, 0
        %v1342 = vsel %vm1086, 1, 0
        %v1343 = vsel %vm1087, 1, 0
        %v1344 = vsel %vm1088, 1, 0
        %v1345 = vsel %vm1089, 1, 0
        %v1346 = vsel %vm1090, 1, 0
        %v1347 = vsel %vm1091, 1, 0
        %v1348 = vsel %vm1092, 1, 0
        %v1349 = vsel %vm1093, 1, 0
        %v1350 = vsel %vm1094, 1, 0
        %v1351 = vsel %vm1095, 1, 0
        %v1352 = vsel %vm1096, 1, 0
        %v1353 = vsel %vm1097, 1, 0
        %v1354 = vsel %vm1098, 1, 0
        %v1355 = vsel %vm1099, 1, 0
        %v1356 = vsel %vm1100, 1, 0
        %v1357 = vsel %vm1101, 1, 0
        %v1358 = vsel %vm1102, 1, 0
        %v1359 = vsel %vm1103, 1, 0
        %v1360 = vsel %vm1104, 1, 0
        %v1361 = vsel %vm1105, 1, 0
        %v1362 = vsel %vm1106, 1, 0
        %v1363 = vsel %vm1107, 1, 0
        %v1364 = vsel %vm1108, 1, 0
        %v1365 = vsel %vm1109, 1, 0
        %v1366 = vsel %vm1110, 1, 0
        %v1367 = vsel %vm1111, 1, 0
        %v1368 = vsel %vm1112, 1, 0
        %v1369 = vsel %vm1113, 1, 0
        %v1370 = vsel %vm1114, 1, 0
        %v1371 = vsel %vm1115, 1, 0
        %v1372 = vsel %vm1116, 1, 0
        %v1373 = vsel %vm1117, 1, 0
        %v1374 = vsel %vm1118, 1, 0
        %v1375 = vsel %vm1119, 1, 0
        %v1376 = vsel %vm1120, 1, 0
        %v1377 = vsel %vm1121, 1, 0
        %v1378 = vsel %vm1122, 1, 0
        %v1379 = vsel %vm1123, 1, 0
        %v1380 = vsel %vm1124, 1, 0
        %v1381 = vsel %vm1125, 1, 0
        %v1382 = vsel %vm1126, 1, 0
        %v1383 = vsel %vm1127, 1, 0
        %v1384 = vsel %vm1128, 1, 0
        %v1385 = vsel %vm1129, 1, 0
        %v1386 = vsel %vm1130, 1, 0
        %v1387 = vsel %vm1131, 1, 0
        %v1388 = vsel %vm1132, 1, 0
        %v1389 = vsel %vm1133, 1, 0
        %v1390 = vsel %vm1134, 1, 0
        %v1391 = vsel %vm1135, 1, 0
        %v1392 = vsel %vm1136, 1, 0
        %v1393 = vsel %vm1137, 1, 0
        %v1394 = vsel %vm1138, 1, 0
        %v1395 = vsel %vm1139, 1, 0
        %v1396 = vcvt.s32.f32 %v1140
        %v1397 = vcvt.s32.f32 %v1141
        %v1398 = vcvt.s32.f32 %v1142
        %v1399 = vcvt.s32.f32 %v1143
        %v1400 = vcvt.s32.f32 %v1144
        %v1401 = vcvt.s32.f32 %v1145
        %v1402 = vcvt.s32.f32 %v1146
        %v1403 = vcvt.s32.f32 %v1147
        %v1404 = vcvt.s32.f32 %v1148
        %v1405 = vcvt.s32.f32 %v1149
        %v1406 = vcvt.s32.f32 %v1150
        %v1407 = vcvt.s32.f32 %v1151
        %v1408 = vcvt.s32.f32 %v1152
        %v1409 = vcvt.s32.f32 %v1153
        %v1410 = vcvt.s32.f32 %v1154
        %v1411 = vcvt.s32.f32 %v1155
        %v1412 = vcvt.s32.f32 %v1156
        %v1413 = vcvt.s32.f32 %v1157
        %v1414 = vcvt.s32.f32 %v1158
        %v1415 = vcvt.s32.f32 %v1159
        %v1416 = vcvt.s32.f32 %v1160
        %v1417 = vcvt.s32.f32 %v1161
        %v1418 = vcvt.s32.f32 %v1162
        %v1419 = vcvt.s32.f32 %v1163
        %v1420 = vcvt.s32.f32 %v1164
        %v1421 = vcvt.s32.f32 %v1165
        %v1422 = vcvt.s32.f32 %v1166
        %v1423 = vcvt.s32.f32 %v1167
        %v1424 = vcvt.s32.f32 %v1168
        %v1425 = vcvt.s32.f32 %v1169
        %v1426 = vcvt.s32.f32 %v1170
        %v1427 = vcvt.s32.f32 %v1171
        %v1428 = vcvt.s32.f32 %v1172
        %v1429 = vcvt.s32.f32 %v1173
        %v1430 = vcvt.s32.f32 %v1174
        %v1431 = vcvt.s32.f32 %v1175
        %v1432 = vcvt.s32.f32 %v1176
        %v1433 = vcvt.s32.f32 %v1177
        %v1434 = vcvt.s32.f32 %v1178
        %v1435 = vcvt.s32.f32 %v1179
        %v1436 = vcvt.s32.f32 %v1180
        %v1437 = vcvt.s32.f32 %v1181
        %v1438 = vcvt.s32.f32 %v1182
        %v1439 = vcvt.s32.f32 %v1183
        %v1440 = vcvt.s32.f32 %v1184
        %v1441 = vcvt.s32.f32 %v1185
        %v1442 = vcvt.s32.f32 %v1186
        %v1443 = vcvt.s32.f32 %v1187
        %v1444 = vcvt.s32.f32 %v1188
        %v1445 = vcvt.s32.f32 %v1189
        %v1446 = vcvt.s32.f32 %v1190
        %v1447 = vcvt.s32.f32 %v1191
        %v1448 = vcvt.s32.f32 %v1192
        %v1449 = vcvt.s32.f32 %v1193
        %v1450 = vcvt.s32.f32 %v1194
        %v1451 = vcvt.s32.f32 %v1195
        %v1452 = vcvt.s32.f32 %v1196
        %v1453 = vcvt.s32.f32 %v1197
        %v1454 = vcvt.s32.f32 %v1198
        %v1455 = vcvt.s32.f32 %v1199
        %v1456 = vcvt.s32.f32 %v1200
        %v1457 = vcvt.s32.f32 %v1201
        %v1458 = vcvt.s32.f32 %v1202
        %v1459 = vcvt.s32.f32 %v1203
        %v1460 = vcvt.s32.f32 %v1204
        %v1461 = vcvt.s32.f32 %v1205
        %v1462 = vcvt.s32.f32 %v1206
        %v1463 = vcvt.s32.f32 %v1207
        %v1464 = vcvt.s32.f32 %v1208
        %v1465 = vcvt.s32.f32 %v1209
        %v1466 = vcvt.s32.f32 %v1210
        %v1467 = vcvt.s32.f32 %v1211
        %v1468 = vcvt.s32.f32 %v1212
        %v1469 = vcvt.s32.f32 %v1213
        %v1470 = vcvt.s32.f32 %v1214
        %v1471 = vcvt.s32.f32 %v1215
        %v1472 = vcvt.s32.f32 %v1216
        %v1473 = vcvt.s32.f32 %v1217
        %v1474 = vcvt.s32.f32 %v1218
        %v1475 = vcvt.s32.f32 %v1219
        %v1476 = vcvt.s32.f32 %v1220
        %v1477 = vcvt.s32.f32 %v1221
        %v1478 = vcvt.s32.f32 %v1222
        %v1479 = vcvt.s32.f32 %v1223
        %v1480 = vcvt.s32.f32 %v1224
        %v1481 = vcvt.s32.f32 %v1225
        %v1482 = vcvt.s32.f32 %v1226
        %v1483 = vcvt.s32.f32 %v1227
        %v1484 = vcvt.s32.f32 %v1228
        %v1485 = vcvt.s32.f32 %v1229
        %v1486 = vcvt.s32.f32 %v1230
        %v1487 = vcvt.s32.f32 %v1231
        %v1488 = vcvt.s32.f32 %v1232
        %v1489 = vcvt.s32.f32 %v1233
        %v1490 = vcvt.s32.f32 %v1234
        %v1491 = vcvt.s32.f32 %v1235
        %v1492 = vcvt.s32.f32 %v1236
        %v1493 = vcvt.s32.f32 %v1237
        %v1494 = vcvt.s32.f32 %v1238
        %v1495 = vcvt.s32.f32 %v1239
        %v1496 = vcvt.s32.f32 %v1240
        %v1497 = vcvt.s32.f32 %v1241
        %v1498 = vcvt.s32.f32 %v1242
        %v1499 = vcvt.s32.f32 %v1243
        %v1500 = vcvt.s32.f32 %v1244
        %v1501 = vcvt.s32.f32 %v1245
        %v1502 = vcvt.s32.f32 %v1246
        %v1503 = vcvt.s32.f32 %v1247
        %v1504 = vcvt.s32.f32 %v1248
        %v1505 = vcvt.s32.f32 %v1249
        %v1506 = vcvt.s32.f32 %v1250
        %v1507 = vcvt.s32.f32 %v1251
        %v1508 = vcvt.s32.f32 %v1252
        %v1509 = vcvt.s32.f32 %v1253
        %v1510 = vcvt.s32.f32 %v1254
        %v1511 = vcvt.s32.f32 %v1255
        %v1512 = vcvt.s32.f32 %v1256
        %v1513 = vcvt.s32.f32 %v1257
        %v1514 = vcvt.s32.f32 %v1258
        %v1515 = vcvt.s32.f32 %v1259
        %v1516 = vcvt.s32.f32 %v1260
        %v1517 = vcvt.s32.f32 %v1261
        %v1518 = vcvt.s32.f32 %v1262
        %v1519 = vcvt.s32.f32 %v1263
        %v1520 = vcvt.s32.f32 %v1264
        %v1521 = vcvt.s32.f32 %v1265
        %v1522 = vcvt.s32.f32 %v1266
        %v1523 = vcvt.s32.f32 %v1267
        %v1524 = vcvt.s32.f32 %v1268
        %v1525 = vcvt.s32.f32 %v1269
        %v1526 = vcvt.s32.f32 %v1270
        %v1527 = vcvt.s32.f32 %v1271
        %v1528 = vcvt.s32.f32 %v1272
        %v1529 = vcvt.s32.f32 %v1273
        %v1530 = vcvt.s32.f32 %v1274
        %v1531 = vcvt.s32.f32 %v1275
        %v1532 = vcvt.s32.f32 %v1276
        %v1533 = vcvt.s32.f32 %v1277
        %v1534 = vcvt.s32.f32 %v1278
        %v1535 = vcvt.s32.f32 %v1279
        %v1536 = vcvt.s32.f32 %v1280
        %v1537 = vcvt.s32.f32 %v1281
        %v1538 = vcvt.s32.f32 %v1282
        %v1539 = vcvt.s32.f32 %v1283
        %v1540 = vcvt.s32.f32 %v1284
        %v1541 = vcvt.s32.f32 %v1285
        %v1542 = vcvt.s32.f32 %v1286
        %v1543 = vcvt.s32.f32 %v1287
        %v1544 = vcvt.s32.f32 %v1288
        %v1545 = vcvt.s32.f32 %v1289
        %v1546 = vcvt.s32.f32 %v1290
        %v1547 = vcvt.s32.f32 %v1291
        %v1548 = vcvt.s32.f32 %v1292
        %v1549 = vcvt.s32.f32 %v1293
        %v1550 = vcvt.s32.f32 %v1294
        %v1551 = vcvt.s32.f32 %v1295
        %v1552 = vcvt.s32.f32 %v1296
        %v1553 = vcvt.s32.f32 %v1297
        %v1554 = vcvt.s32.f32 %v1298
        %v1555 = vcvt.s32.f32 %v1299
        %v1556 = vcvt.s32.f32 %v1300
        %v1557 = vcvt.s32.f32 %v1301
        %v1558 = vcvt.s32.f32 %v1302
        %v1559 = vcvt.s32.f32 %v1303
        %v1560 = vcvt.s32.f32 %v1304
        %v1561 = vcvt.s32.f32 %v1305
        %v1562 = vcvt.s32.f32 %v1306
        %v1563 = vcvt.s32.f32 %v1307
        %v1564 = vcvt.s32.f32 %v1308
        %v1565 = vcvt.s32.f32 %v1309
        %v1566 = vcvt.s32.f32 %v1310
        %v1567 = vcvt.s32.f32 %v1311
        %v1568 = vcvt.s32.f32 %v1312
        %v1569 = vcvt.s32.f32 %v1313
        %v1570 = vcvt.s32.f32 %v1314
        %v1571 = vcvt.s32.f32 %v1315
        %v1572 = vcvt.s32.f32 %v1316
        %v1573 = vcvt.s32.f32 %v1317
        %v1574 = vcvt.s32.f32 %v1318
        %v1575 = vcvt.s32.f32 %v1319
        %v1576 = vcvt.s32.f32 %v1320
        %v1577 = vcvt.s32.f32 %v1321
        %v1578 = vcvt.s32.f32 %v1322
        %v1579 = vcvt.s32.f32 %v1323
        %v1580 = vcvt.s32.f32 %v1324
        %v1581 = vcvt.s32.f32 %v1325
        %v1582 = vcvt.s32.f32 %v1326
        %v1583 = vcvt.s32.f32 %v1327
        %v1584 = vcvt.s32.f32 %v1328
        %v1585 = vcvt.s32.f32 %v1329
        %v1586 = vcvt.s32.f32 %v1330
        %v1587 = vcvt.s32.f32 %v1331
        %v1588 = vcvt.s32.f32 %v1332
        %v1589 = vcvt.s32.f32 %v1333
        %v1590 = vcvt.s32.f32 %v1334
        %v1591 = vcvt.s32.f32 %v1335
        %v1592 = vcvt.s32.f32 %v1336
        %v1593 = vcvt.s32.f32 %v1337
        %v1594 = vcvt.s32.f32 %v1338
        %v1595 = vcvt.s32.f32 %v1339
        %v1596 = vcvt.s32.f32 %v1340
        %v1597 = vcvt.s32.f32 %v1341
        %v1598 = vcvt.s32.f32 %v1342
        %v1599 = vcvt.s32.f32 %v1343
        %v1600 = vcvt.s32.f32 %v1344
        %v1601 = vcvt.s32.f32 %v1345
        %v1602 = vcvt.s32.f32 %v1346
        %v1603 = vcvt.s32.f32 %v1347
        %v1604 = vcvt.s32.f32 %v1348
        %v1605 = vcvt.s32.f32 %v1349
        %v1606 = vcvt.s32.f32 %v1350
        %v1607 = vcvt.s32.f32 %v1351
        %v1608 = vcvt.s32.f32 %v1352
        %v1609 = vcvt.s32.f32 %v1353
        %v1610 = vcvt.s32.f32 %v1354
        %v1611 = vcvt.s32.f32 %v1355
        %v1612 = vcvt.s32.f32 %v1356
        %v1613 = vcvt.s32.f32 %v1357
        %v1614 = vcvt.s32.f32 %v1358
        %v1615 = vcvt.s32.f32 %v1359
        %v1616 = vcvt.s32.f32 %v1360
        %v1617 = vcvt.s32.f32 %v1361
        %v1618 = vcvt.s32.f32 %v1362
        %v1619 = vcvt.s32.f32 %v1363
        %v1620 = vcvt.s32.f32 %v1364
        %v1621 = vcvt.s32.f32 %v1365
        %v1622 = vcvt.s32.f32 %v1366
        %v1623 = vcvt.s32.f32 %v1367
        %v1624 = vcvt.s32.f32 %v1368
        %v1625 = vcvt.s32.f32 %v1369
        %v1626 = vcvt.s32.f32 %v1370
        %v1627 = vcvt.s32.f32 %v1371
        %v1628 = vcvt.s32.f32 %v1372
        %v1629 = vcvt.s32.f32 %v1373
        %v1630 = vcvt.s32.f32 %v1374
        %v1631 = vcvt.s32.f32 %v1375
        %v1632 = vcvt.s32.f32 %v1376
        %v1633 = vcvt.s32.f32 %v1377
        %v1634 = vcvt.s32.f32 %v1378
        %v1635 = vcvt.s32.f32 %v1379
        %v1636 = vcvt.s32.f32 %v1380
        %v1637 = vcvt.s32.f32 %v1381
        %v1638 = vcvt.s32.f32 %v1382
        %v1639 = vcvt.s32.f32 %v1383
        %v1640 = vcvt.s32.f32 %v1384
        %v1641 = vcvt.s32.f32 %v1385
        %v1642 = vcvt.s32.f32 %v1386
        %v1643 = vcvt.s32.f32 %v1387
        %v1644 = vcvt.s32.f32 %v1388
        %v1645 = vcvt.s32.f32 %v1389
        %v1646 = vcvt.s32.f32 %v1390
        %v1647 = vcvt.s32.f32 %v1391
        %v1648 = vcvt.s32.f32 %v1392
        %v1649 = vcvt.s32.f32 %v1393
        %v1650 = vcvt.s32.f32 %v1394
        %v1651 = vcvt.s32.f32 %v1395
        %v1652 = vpack.c.bf16 %v1400, %v1396
        %v1653 = vpack.c.bf16 %v1401, %v1397
        %v1654 = vpack.c.bf16 %v1402, %v1398
        %v1655 = vpack.c.bf16 %v1403, %v1399
        %v1656 = vpack.c.bf16 %v1408, %v1404
        %v1657 = vpack.c.bf16 %v1409, %v1405
        %v1658 = vpack.c.bf16 %v1410, %v1406
        %v1659 = vpack.c.bf16 %v1411, %v1407
        %v1660 = vpack.c.bf16 %v1416, %v1412
        %v1661 = vpack.c.bf16 %v1417, %v1413
        %v1662 = vpack.c.bf16 %v1418, %v1414
        %v1663 = vpack.c.bf16 %v1419, %v1415
        %v1664 = vpack.c.bf16 %v1424, %v1420
        %v1665 = vpack.c.bf16 %v1425, %v1421
        %v1666 = vpack.c.bf16 %v1426, %v1422
        %v1667 = vpack.c.bf16 %v1427, %v1423
        %v1668 = vpack.c.bf16 %v1432, %v1428
        %v1669 = vpack.c.bf16 %v1433, %v1429
        %v1670 = vpack.c.bf16 %v1434, %v1430
        %v1671 = vpack.c.bf16 %v1435, %v1431
        %v1672 = vpack.c.bf16 %v1440, %v1436
        %v1673 = vpack.c.bf16 %v1441, %v1437
        %v1674 = vpack.c.bf16 %v1442, %v1438
        %v1675 = vpack.c.bf16 %v1443, %v1439
        %v1676 = vpack.c.bf16 %v1448, %v1444
        %v1677 = vpack.c.bf16 %v1449, %v1445
        %v1678 = vpack.c.bf16 %v1450, %v1446
        %v1679 = vpack.c.bf16 %v1451, %v1447
        %v1680 = vpack.c.bf16 %v1456, %v1452
        %v1681 = vpack.c.bf16 %v1457, %v1453
        %v1682 = vpack.c.bf16 %v1458, %v1454
        %v1683 = vpack.c.bf16 %v1459, %v1455
        %v1684 = vpack.c.bf16 %v1464, %v1460
        %v1685 = vpack.c.bf16 %v1465, %v1461
        %v1686 = vpack.c.bf16 %v1466, %v1462
        %v1687 = vpack.c.bf16 %v1467, %v1463
        %v1688 = vpack.c.bf16 %v1472, %v1468
        %v1689 = vpack.c.bf16 %v1473, %v1469
        %v1690 = vpack.c.bf16 %v1474, %v1470
        %v1691 = vpack.c.bf16 %v1475, %v1471
        %v1692 = vpack.c.bf16 %v1480, %v1476
        %v1693 = vpack.c.bf16 %v1481, %v1477
        %v1694 = vpack.c.bf16 %v1482, %v1478
        %v1695 = vpack.c.bf16 %v1483, %v1479
        %v1696 = vpack.c.bf16 %v1488, %v1484
        %v1697 = vpack.c.bf16 %v1489, %v1485
        %v1698 = vpack.c.bf16 %v1490, %v1486
        %v1699 = vpack.c.bf16 %v1491, %v1487
        %v1700 = vpack.c.bf16 %v1496, %v1492
        %v1701 = vpack.c.bf16 %v1497, %v1493
        %v1702 = vpack.c.bf16 %v1498, %v1494
        %v1703 = vpack.c.bf16 %v1499, %v1495
        %v1704 = vpack.c.bf16 %v1504, %v1500
        %v1705 = vpack.c.bf16 %v1505, %v1501
        %v1706 = vpack.c.bf16 %v1506, %v1502
        %v1707 = vpack.c.bf16 %v1507, %v1503
        %v1708 = vpack.c.bf16 %v1512, %v1508
        %v1709 = vpack.c.bf16 %v1513, %v1509
        %v1710 = vpack.c.bf16 %v1514, %v1510
        %v1711 = vpack.c.bf16 %v1515, %v1511
        %v1712 = vpack.c.bf16 %v1520, %v1516
        %v1713 = vpack.c.bf16 %v1521, %v1517
        %v1714 = vpack.c.bf16 %v1522, %v1518
        %v1715 = vpack.c.bf16 %v1523, %v1519
        %v1716 = vpack.c.bf16 %v1528, %v1524
        %v1717 = vpack.c.bf16 %v1529, %v1525
        %v1718 = vpack.c.bf16 %v1530, %v1526
        %v1719 = vpack.c.bf16 %v1531, %v1527
        %v1720 = vpack.c.bf16 %v1536, %v1532
        %v1721 = vpack.c.bf16 %v1537, %v1533
        %v1722 = vpack.c.bf16 %v1538, %v1534
        %v1723 = vpack.c.bf16 %v1539, %v1535
        %v1724 = vpack.c.bf16 %v1544, %v1540
        %v1725 = vpack.c.bf16 %v1545, %v1541
        %v1726 = vpack.c.bf16 %v1546, %v1542
        %v1727 = vpack.c.bf16 %v1547, %v1543
        %v1728 = vpack.c.bf16 %v1552, %v1548
        %v1729 = vpack.c.bf16 %v1553, %v1549
        %v1730 = vpack.c.bf16 %v1554, %v1550
        %v1731 = vpack.c.bf16 %v1555, %v1551
        %v1732 = vpack.c.bf16 %v1560, %v1556
        %v1733 = vpack.c.bf16 %v1561, %v1557
        %v1734 = vpack.c.bf16 %v1562, %v1558
        %v1735 = vpack.c.bf16 %v1563, %v1559
        %v1736 = vpack.c.bf16 %v1568, %v1564
        %v1737 = vpack.c.bf16 %v1569, %v1565
        %v1738 = vpack.c.bf16 %v1570, %v1566
        %v1739 = vpack.c.bf16 %v1571, %v1567
        %v1740 = vpack.c.bf16 %v1576, %v1572
        %v1741 = vpack.c.bf16 %v1577, %v1573
        %v1742 = vpack.c.bf16 %v1578, %v1574
        %v1743 = vpack.c.bf16 %v1579, %v1575
        %v1744 = vpack.c.bf16 %v1584, %v1580
        %v1745 = vpack.c.bf16 %v1585, %v1581
        %v1746 = vpack.c.bf16 %v1586, %v1582
        %v1747 = vpack.c.bf16 %v1587, %v1583
        %v1748 = vpack.c.bf16 %v1592, %v1588
        %v1749 = vpack.c.bf16 %v1593, %v1589
        %v1750 = vpack.c.bf16 %v1594, %v1590
        %v1751 = vpack.c.bf16 %v1595, %v1591
        %v1752 = vpack.c.bf16 %v1600, %v1596
        %v1753 = vpack.c.bf16 %v1601, %v1597
        %v1754 = vpack.c.bf16 %v1602, %v1598
        %v1755 = vpack.c.bf16 %v1603, %v1599
        %v1756 = vpack.c.bf16 %v1608, %v1604
        %v1757 = vpack.c.bf16 %v1609, %v1605
        %v1758 = vpack.c.bf16 %v1610, %v1606
        %v1759 = vpack.c.bf16 %v1611, %v1607
        %v1760 = vpack.c.bf16 %v1616, %v1612
        %v1761 = vpack.c.bf16 %v1617, %v1613
        %v1762 = vpack.c.bf16 %v1618, %v1614
        %v1763 = vpack.c.bf16 %v1619, %v1615
        %v1764 = vpack.c.bf16 %v1624, %v1620
        %v1765 = vpack.c.bf16 %v1625, %v1621
        %v1766 = vpack.c.bf16 %v1626, %v1622
        %v1767 = vpack.c.bf16 %v1627, %v1623
        %v1768 = vpack.c.bf16 %v1632, %v1628
        %v1769 = vpack.c.bf16 %v1633, %v1629
        %v1770 = vpack.c.bf16 %v1634, %v1630
        %v1771 = vpack.c.bf16 %v1635, %v1631
        %v1772 = vpack.c.bf16 %v1640, %v1636
        %v1773 = vpack.c.bf16 %v1641, %v1637
        %v1774 = vpack.c.bf16 %v1642, %v1638
        %v1775 = vpack.c.bf16 %v1643, %v1639
        %v1776 = vpack.c.bf16 %v1648, %v1644
        %v1777 = vpack.c.bf16 %v1649, %v1645
        %v1778 = vpack.c.bf16 %v1650, %v1646
        %v1779 = vpack.c.bf16 %v1651, %v1647
        %v1780 = vld [vmem:[#allocation2] sm:$0xff]
        %v1781 = vld [vmem:[#allocation2 + $0x8] sm:$0xff]
        %v1782 = vld [vmem:[#allocation2 + $0x10] sm:$0xff]
        %v1783 = vld [vmem:[#allocation2 + $0x18] sm:$0xff]
        %v1784 = vld [vmem:[#allocation2 + $0x20] sm:$0xff]
        %v1785 = vld [vmem:[#allocation2 + $0x28] sm:$0xff]
        %v1786 = vld [vmem:[#allocation2 + $0x30] sm:$0xff]
        %v1787 = vld [vmem:[#allocation2 + $0x38] sm:$0xff]
        %v1788 = vld [vmem:[#allocation2 + $0x40] sm:$0xff]
        %v1789 = vld [vmem:[#allocation2 + $0x48] sm:$0xff]
        %v1790 = vld [vmem:[#allocation2 + $0x50] sm:$0xff]
        %v1791 = vld [vmem:[#allocation2 + $0x58] sm:$0xff]
        %v1792 = vld [vmem:[#allocation2 + $0x60] sm:$0xff]
        %v1793 = vld [vmem:[#allocation2 + $0x68] sm:$0xff]
        %v1794 = vld [vmem:[#allocation2 + $0x70] sm:$0xff]
        %v1795 = vld [vmem:[#allocation2 + $0x78] sm:$0xff]
        %v1796 = vld [vmem:[#allocation2 + $0x80] sm:$0xff]
        %v1797 = vld [vmem:[#allocation2 + $0x88] sm:$0xff]
        %v1798 = vld [vmem:[#allocation2 + $0x90] sm:$0xff]
        %v1799 = vld [vmem:[#allocation2 + $0x98] sm:$0xff]
        %v1800 = vld [vmem:[#allocation2 + $0xa0] sm:$0xff]
        %v1801 = vld [vmem:[#allocation2 + $0xa8] sm:$0xff]
        %v1802 = vld [vmem:[#allocation2 + $0xb0] sm:$0xff]
        %v1803 = vld [vmem:[#allocation2 + $0xb8] sm:$0xff]
        %v1804 = vld [vmem:[#allocation2 + $0xc0] sm:$0xff]
        %v1805 = vld [vmem:[#allocation2 + $0xc8] sm:$0xff]
        %v1806 = vld [vmem:[#allocation2 + $0xd0] sm:$0xff]
        %v1807 = vld [vmem:[#allocation2 + $0xd8] sm:$0xff]
        %v1808 = vld [vmem:[#allocation2 + $0xe0] sm:$0xff]
        %v1809 = vld [vmem:[#allocation2 + $0xe8] sm:$0xff]
        %v1810 = vld [vmem:[#allocation2 + $0xf0] sm:$0xff]
        %v1811 = vld [vmem:[#allocation2 + $0xf8] sm:$0xff]
        %v1812 = vld [vmem:[#allocation2 + $0x100] sm:$0xff]
        %v1813 = vld [vmem:[#allocation2 + $0x108] sm:$0xff]
        %v1814 = vld [vmem:[#allocation2 + $0x110] sm:$0xff]
        %v1815 = vld [vmem:[#allocation2 + $0x118] sm:$0xff]
        %v1816 = vld [vmem:[#allocation2 + $0x120] sm:$0xff]
        %v1817 = vld [vmem:[#allocation2 + $0x128] sm:$0xff]
        %v1818 = vld [vmem:[#allocation2 + $0x130] sm:$0xff]
        %v1819 = vld [vmem:[#allocation2 + $0x138] sm:$0xff]
        %v1820 = vld [vmem:[#allocation2 + $0x140] sm:$0xff]
        %v1821 = vld [vmem:[#allocation2 + $0x148] sm:$0xff]
        %v1822 = vld [vmem:[#allocation2 + $0x150] sm:$0xff]
        %v1823 = vld [vmem:[#allocation2 + $0x158] sm:$0xff]
        %v1824 = vld [vmem:[#allocation2 + $0x160] sm:$0xff]
        %v1825 = vld [vmem:[#allocation2 + $0x168] sm:$0xff]
        %v1826 = vld [vmem:[#allocation2 + $0x170] sm:$0xff]
        %v1827 = vld [vmem:[#allocation2 + $0x178] sm:$0xff]
        %v1828 = vld [vmem:[#allocation2 + $0x180] sm:$0xff]
        %v1829 = vld [vmem:[#allocation2 + $0x188] sm:$0xff]
        %v1830 = vld [vmem:[#allocation2 + $0x190] sm:$0xff]
        %v1831 = vld [vmem:[#allocation2 + $0x198] sm:$0xff]
        %v1832 = vld [vmem:[#allocation2 + $0x1a0] sm:$0xff]
        %v1833 = vld [vmem:[#allocation2 + $0x1a8] sm:$0xff]
        %v1834 = vld [vmem:[#allocation2 + $0x1b0] sm:$0xff]
        %v1835 = vld [vmem:[#allocation2 + $0x1b8] sm:$0xff]
        %v1836 = vld [vmem:[#allocation2 + $0x1c0] sm:$0xff]
        %v1837 = vld [vmem:[#allocation2 + $0x1c8] sm:$0xff]
        %v1838 = vld [vmem:[#allocation2 + $0x1d0] sm:$0xff]
        %v1839 = vld [vmem:[#allocation2 + $0x1d8] sm:$0xff]
        %v1840 = vld [vmem:[#allocation2 + $0x1e0] sm:$0xff]
        %v1841 = vld [vmem:[#allocation2 + $0x1e8] sm:$0xff]
        %v1842 = vld [vmem:[#allocation2 + $0x1f0] sm:$0xff]
        %v1843 = vld [vmem:[#allocation2 + $0x1f8] sm:$0xff]
        %1844 = vmatpush.bf16.msra.mxu0 %v786
        %1845 = vmatpush.bf16.msra.mxu0 %v785
        %1846 = vmatpush.bf16.msra.mxu0 %v784
        %1847 = vmatpush.bf16.msra.mxu0 %v783
        %1848 = vmatpush.bf16.msra.mxu0 %v782
        %1849 = vmatpush.bf16.msra.mxu0 %v781
        %1850 = vmatpush.bf16.msra.mxu0 %v780
        %1851 = vmatpush.bf16.msra.mxu0 %v779
        %1852 = vmatmul.bf16.gmra.mxu0 %v1652
        %v1853 = vpop.f32.mrf.mxu0
        %v1854 = vadd.f32 0.0, %v1853
        %v1855 = vpop.f32.mrf.mxu0
        %v1856 = vadd.f32 0.0, %v1855
        %1857 = vmatmul.bf16.gmra.mxu0 %v1656
        %v1858 = vpop.f32.mrf.mxu0
        %v1859 = vadd.f32 0.0, %v1858
        %v1860 = vpop.f32.mrf.mxu0
        %v1861 = vadd.f32 0.0, %v1860
        %1862 = vmatmul.bf16.gmra.mxu0 %v1660
        %v1863 = vpop.f32.mrf.mxu0
        %v1864 = vadd.f32 0.0, %v1863
        %v1865 = vpop.f32.mrf.mxu0
        %v1866 = vadd.f32 0.0, %v1865
        %1867 = vmatmul.bf16.gmra.mxu0 %v1664
        %v1868 = vpop.f32.mrf.mxu0
        %v1869 = vadd.f32 0.0, %v1868
        %v1870 = vpop.f32.mrf.mxu0
        %v1871 = vadd.f32 0.0, %v1870
        %1872 = vmatmul.bf16.gmra.mxu0 %v1668
        %v1873 = vpop.f32.mrf.mxu0
        %v1874 = vadd.f32 0.0, %v1873
        %v1875 = vpop.f32.mrf.mxu0
        %v1876 = vadd.f32 0.0, %v1875
        %1877 = vmatmul.bf16.gmra.mxu0 %v1672
        %v1878 = vpop.f32.mrf.mxu0
        %v1879 = vadd.f32 0.0, %v1878
        %v1880 = vpop.f32.mrf.mxu0
        %v1881 = vadd.f32 0.0, %v1880
        %1882 = vmatmul.bf16.gmra.mxu0 %v1676
        %v1883 = vpop.f32.mrf.mxu0
        %v1884 = vadd.f32 0.0, %v1883
        %v1885 = vpop.f32.mrf.mxu0
        %v1886 = vadd.f32 0.0, %v1885
        %1887 = vmatmul.bf16.gmra.mxu0 %v1680
        %v1888 = vpop.f32.mrf.mxu0
        %v1889 = vadd.f32 0.0, %v1888
        %v1890 = vpop.f32.mrf.mxu0
        %v1891 = vadd.f32 0.0, %v1890
        %1892 = vmatmul.bf16.gmra.mxu0 %v1684
        %v1893 = vpop.f32.mrf.mxu0
        %v1894 = vadd.f32 0.0, %v1893
        %v1895 = vpop.f32.mrf.mxu0
        %v1896 = vadd.f32 0.0, %v1895
        %1897 = vmatmul.bf16.gmra.mxu0 %v1688
        %v1898 = vpop.f32.mrf.mxu0
        %v1899 = vadd.f32 0.0, %v1898
        %v1900 = vpop.f32.mrf.mxu0
        %v1901 = vadd.f32 0.0, %v1900
        %1902 = vmatmul.bf16.gmra.mxu0 %v1692
        %v1903 = vpop.f32.mrf.mxu0
        %v1904 = vadd.f32 0.0, %v1903
        %v1905 = vpop.f32.mrf.mxu0
        %v1906 = vadd.f32 0.0, %v1905
        %1907 = vmatmul.bf16.gmra.mxu0 %v1696
        %v1908 = vpop.f32.mrf.mxu0
        %v1909 = vadd.f32 0.0, %v1908
        %v1910 = vpop.f32.mrf.mxu0
        %v1911 = vadd.f32 0.0, %v1910
        %1912 = vmatmul.bf16.gmra.mxu0 %v1700
        %v1913 = vpop.f32.mrf.mxu0
        %v1914 = vadd.f32 0.0, %v1913
        %v1915 = vpop.f32.mrf.mxu0
        %v1916 = vadd.f32 0.0, %v1915
        %1917 = vmatmul.bf16.gmra.mxu0 %v1704
        %v1918 = vpop.f32.mrf.mxu0
        %v1919 = vadd.f32 0.0, %v1918
        %v1920 = vpop.f32.mrf.mxu0
        %v1921 = vadd.f32 0.0, %v1920
        %1922 = vmatmul.bf16.gmra.mxu0 %v1708
        %v1923 = vpop.f32.mrf.mxu0
        %v1924 = vadd.f32 0.0, %v1923
        %v1925 = vpop.f32.mrf.mxu0
        %v1926 = vadd.f32 0.0, %v1925
        %1927 = vmatmul.bf16.gmra.mxu0 %v1712
        %v1928 = vpop.f32.mrf.mxu0
        %v1929 = vadd.f32 0.0, %v1928
        %v1930 = vpop.f32.mrf.mxu0
        %v1931 = vadd.f32 0.0, %v1930
        %1932 = vmatmul.bf16.gmra.mxu0 %v1716
        %v1933 = vpop.f32.mrf.mxu0
        %v1934 = vadd.f32 0.0, %v1933
        %v1935 = vpop.f32.mrf.mxu0
        %v1936 = vadd.f32 0.0, %v1935
        %1937 = vmatmul.bf16.gmra.mxu0 %v1720
        %v1938 = vpop.f32.mrf.mxu0
        %v1939 = vadd.f32 0.0, %v1938
        %v1940 = vpop.f32.mrf.mxu0
        %v1941 = vadd.f32 0.0, %v1940
        %1942 = vmatmul.bf16.gmra.mxu0 %v1724
        %v1943 = vpop.f32.mrf.mxu0
        %v1944 = vadd.f32 0.0, %v1943
        %v1945 = vpop.f32.mrf.mxu0
        %v1946 = vadd.f32 0.0, %v1945
        %1947 = vmatmul.bf16.gmra.mxu0 %v1728
        %v1948 = vpop.f32.mrf.mxu0
        %v1949 = vadd.f32 0.0, %v1948
        %v1950 = vpop.f32.mrf.mxu0
        %v1951 = vadd.f32 0.0, %v1950
        %1952 = vmatmul.bf16.gmra.mxu0 %v1732
        %v1953 = vpop.f32.mrf.mxu0
        %v1954 = vadd.f32 0.0, %v1953
        %v1955 = vpop.f32.mrf.mxu0
        %v1956 = vadd.f32 0.0, %v1955
        %1957 = vmatmul.bf16.gmra.mxu0 %v1736
        %v1958 = vpop.f32.mrf.mxu0
        %v1959 = vadd.f32 0.0, %v1958
        %v1960 = vpop.f32.mrf.mxu0
        %v1961 = vadd.f32 0.0, %v1960
        %1962 = vmatmul.bf16.gmra.mxu0 %v1740
        %v1963 = vpop.f32.mrf.mxu0
        %v1964 = vadd.f32 0.0, %v1963
        %v1965 = vpop.f32.mrf.mxu0
        %v1966 = vadd.f32 0.0, %v1965
        %1967 = vmatmul.bf16.gmra.mxu0 %v1744
        %v1968 = vpop.f32.mrf.mxu0
        %v1969 = vadd.f32 0.0, %v1968
        %v1970 = vpop.f32.mrf.mxu0
        %v1971 = vadd.f32 0.0, %v1970
        %1972 = vmatmul.bf16.gmra.mxu0 %v1748
        %v1973 = vpop.f32.mrf.mxu0
        %v1974 = vadd.f32 0.0, %v1973
        %v1975 = vpop.f32.mrf.mxu0
        %v1976 = vadd.f32 0.0, %v1975
        %1977 = vmatmul.bf16.gmra.mxu0 %v1752
        %v1978 = vpop.f32.mrf.mxu0
        %v1979 = vadd.f32 0.0, %v1978
        %v1980 = vpop.f32.mrf.mxu0
        %v1981 = vadd.f32 0.0, %v1980
        %1982 = vmatmul.bf16.gmra.mxu0 %v1756
        %v1983 = vpop.f32.mrf.mxu0
        %v1984 = vadd.f32 0.0, %v1983
        %v1985 = vpop.f32.mrf.mxu0
        %v1986 = vadd.f32 0.0, %v1985
        %1987 = vmatmul.bf16.gmra.mxu0 %v1760
        %v1988 = vpop.f32.mrf.mxu0
        %v1989 = vadd.f32 0.0, %v1988
        %v1990 = vpop.f32.mrf.mxu0
        %v1991 = vadd.f32 0.0, %v1990
        %1992 = vmatmul.bf16.gmra.mxu0 %v1764
        %v1993 = vpop.f32.mrf.mxu0
        %v1994 = vadd.f32 0.0, %v1993
        %v1995 = vpop.f32.mrf.mxu0
        %v1996 = vadd.f32 0.0, %v1995
        %1997 = vmatmul.bf16.gmra.mxu0 %v1768
        %v1998 = vpop.f32.mrf.mxu0
        %v1999 = vadd.f32 0.0, %v1998
        %v2000 = vpop.f32.mrf.mxu0
        %v2001 = vadd.f32 0.0, %v2000
        %2002 = vmatmul.bf16.gmra.mxu0 %v1772
        %v2003 = vpop.f32.mrf.mxu0
        %v2004 = vadd.f32 0.0, %v2003
        %v2005 = vpop.f32.mrf.mxu0
        %v2006 = vadd.f32 0.0, %v2005
        %2007 = vmatmul.bf16.gmra.mxu0 %v1776
        %v2008 = vpop.f32.mrf.mxu0
        %v2009 = vadd.f32 0.0, %v2008
        %v2010 = vpop.f32.mrf.mxu0
        %v2011 = vadd.f32 0.0, %v2010
        %2012 = vdwg.mxu0
        %2013 = vmatpush.bf16.msra.mxu0 %v794
        %2014 = vmatpush.bf16.msra.mxu0 %v793
        %2015 = vmatpush.bf16.msra.mxu0 %v792
        %2016 = vmatpush.bf16.msra.mxu0 %v791
        %2017 = vmatpush.bf16.msra.mxu0 %v790
        %2018 = vmatpush.bf16.msra.mxu0 %v789
        %2019 = vmatpush.bf16.msra.mxu0 %v788
        %2020 = vmatpush.bf16.msra.mxu0 %v787
        %2021 = vmatmul.bf16.gmra.mxu0 %v1653
        %v2022 = vpop.f32.mrf.mxu0
        %v2023 = vadd.f32 %v1854, %v2022
        %v2024 = vpop.f32.mrf.mxu0
        %v2025 = vadd.f32 %v1856, %v2024
        %2026 = vmatmul.bf16.gmra.mxu0 %v1657
        %v2027 = vpop.f32.mrf.mxu0
        %v2028 = vadd.f32 %v1859, %v2027
        %v2029 = vpop.f32.mrf.mxu0
        %v2030 = vadd.f32 %v1861, %v2029
        %2031 = vmatmul.bf16.gmra.mxu0 %v1661
        %v2032 = vpop.f32.mrf.mxu0
        %v2033 = vadd.f32 %v1864, %v2032
        %v2034 = vpop.f32.mrf.mxu0
        %v2035 = vadd.f32 %v1866, %v2034
        %2036 = vmatmul.bf16.gmra.mxu0 %v1665
        %v2037 = vpop.f32.mrf.mxu0
        %v2038 = vadd.f32 %v1869, %v2037
        %v2039 = vpop.f32.mrf.mxu0
        %v2040 = vadd.f32 %v1871, %v2039
        %2041 = vmatmul.bf16.gmra.mxu0 %v1669
        %v2042 = vpop.f32.mrf.mxu0
        %v2043 = vadd.f32 %v1874, %v2042
        %v2044 = vpop.f32.mrf.mxu0
        %v2045 = vadd.f32 %v1876, %v2044
        %2046 = vmatmul.bf16.gmra.mxu0 %v1673
        %v2047 = vpop.f32.mrf.mxu0
        %v2048 = vadd.f32 %v1879, %v2047
        %v2049 = vpop.f32.mrf.mxu0
        %v2050 = vadd.f32 %v1881, %v2049
        %2051 = vmatmul.bf16.gmra.mxu0 %v1677
        %v2052 = vpop.f32.mrf.mxu0
        %v2053 = vadd.f32 %v1884, %v2052
        %v2054 = vpop.f32.mrf.mxu0
        %v2055 = vadd.f32 %v1886, %v2054
        %2056 = vmatmul.bf16.gmra.mxu0 %v1681
        %v2057 = vpop.f32.mrf.mxu0
        %v2058 = vadd.f32 %v1889, %v2057
        %v2059 = vpop.f32.mrf.mxu0
        %v2060 = vadd.f32 %v1891, %v2059
        %2061 = vmatmul.bf16.gmra.mxu0 %v1685
        %v2062 = vpop.f32.mrf.mxu0
        %v2063 = vadd.f32 %v1894, %v2062
        %v2064 = vpop.f32.mrf.mxu0
        %v2065 = vadd.f32 %v1896, %v2064
        %2066 = vmatmul.bf16.gmra.mxu0 %v1689
        %v2067 = vpop.f32.mrf.mxu0
        %v2068 = vadd.f32 %v1899, %v2067
        %v2069 = vpop.f32.mrf.mxu0
        %v2070 = vadd.f32 %v1901, %v2069
        %2071 = vmatmul.bf16.gmra.mxu0 %v1693
        %v2072 = vpop.f32.mrf.mxu0
        %v2073 = vadd.f32 %v1904, %v2072
        %v2074 = vpop.f32.mrf.mxu0
        %v2075 = vadd.f32 %v1906, %v2074
        %2076 = vmatmul.bf16.gmra.mxu0 %v1697
        %v2077 = vpop.f32.mrf.mxu0
        %v2078 = vadd.f32 %v1909, %v2077
        %v2079 = vpop.f32.mrf.mxu0
        %v2080 = vadd.f32 %v1911, %v2079
        %2081 = vmatmul.bf16.gmra.mxu0 %v1701
        %v2082 = vpop.f32.mrf.mxu0
        %v2083 = vadd.f32 %v1914, %v2082
        %v2084 = vpop.f32.mrf.mxu0
        %v2085 = vadd.f32 %v1916, %v2084
        %2086 = vmatmul.bf16.gmra.mxu0 %v1705
        %v2087 = vpop.f32.mrf.mxu0
        %v2088 = vadd.f32 %v1919, %v2087
        %v2089 = vpop.f32.mrf.mxu0
        %v2090 = vadd.f32 %v1921, %v2089
        %2091 = vmatmul.bf16.gmra.mxu0 %v1709
        %v2092 = vpop.f32.mrf.mxu0
        %v2093 = vadd.f32 %v1924, %v2092
        %v2094 = vpop.f32.mrf.mxu0
        %v2095 = vadd.f32 %v1926, %v2094
        %2096 = vmatmul.bf16.gmra.mxu0 %v1713
        %v2097 = vpop.f32.mrf.mxu0
        %v2098 = vadd.f32 %v1929, %v2097
        %v2099 = vpop.f32.mrf.mxu0
        %v2100 = vadd.f32 %v1931, %v2099
        %2101 = vmatmul.bf16.gmra.mxu0 %v1717
        %v2102 = vpop.f32.mrf.mxu0
        %v2103 = vadd.f32 %v1934, %v2102
        %v2104 = vpop.f32.mrf.mxu0
        %v2105 = vadd.f32 %v1936, %v2104
        %2106 = vmatmul.bf16.gmra.mxu0 %v1721
        %v2107 = vpop.f32.mrf.mxu0
        %v2108 = vadd.f32 %v1939, %v2107
        %v2109 = vpop.f32.mrf.mxu0
        %v2110 = vadd.f32 %v1941, %v2109
        %2111 = vmatmul.bf16.gmra.mxu0 %v1725
        %v2112 = vpop.f32.mrf.mxu0
        %v2113 = vadd.f32 %v1944, %v2112
        %v2114 = vpop.f32.mrf.mxu0
        %v2115 = vadd.f32 %v1946, %v2114
        %2116 = vmatmul.bf16.gmra.mxu0 %v1729
        %v2117 = vpop.f32.mrf.mxu0
        %v2118 = vadd.f32 %v1949, %v2117
        %v2119 = vpop.f32.mrf.mxu0
        %v2120 = vadd.f32 %v1951, %v2119
        %2121 = vmatmul.bf16.gmra.mxu0 %v1733
        %v2122 = vpop.f32.mrf.mxu0
        %v2123 = vadd.f32 %v1954, %v2122
        %v2124 = vpop.f32.mrf.mxu0
        %v2125 = vadd.f32 %v1956, %v2124
        %2126 = vmatmul.bf16.gmra.mxu0 %v1737
        %v2127 = vpop.f32.mrf.mxu0
        %v2128 = vadd.f32 %v1959, %v2127
        %v2129 = vpop.f32.mrf.mxu0
        %v2130 = vadd.f32 %v1961, %v2129
        %2131 = vmatmul.bf16.gmra.mxu0 %v1741
        %v2132 = vpop.f32.mrf.mxu0
        %v2133 = vadd.f32 %v1964, %v2132
        %v2134 = vpop.f32.mrf.mxu0
        %v2135 = vadd.f32 %v1966, %v2134
        %2136 = vmatmul.bf16.gmra.mxu0 %v1745
        %v2137 = vpop.f32.mrf.mxu0
        %v2138 = vadd.f32 %v1969, %v2137
        %v2139 = vpop.f32.mrf.mxu0
        %v2140 = vadd.f32 %v1971, %v2139
        %2141 = vmatmul.bf16.gmra.mxu0 %v1749
        %v2142 = vpop.f32.mrf.mxu0
        %v2143 = vadd.f32 %v1974, %v2142
        %v2144 = vpop.f32.mrf.mxu0
        %v2145 = vadd.f32 %v1976, %v2144
        %2146 = vmatmul.bf16.gmra.mxu0 %v1753
        %v2147 = vpop.f32.mrf.mxu0
        %v2148 = vadd.f32 %v1979, %v2147
        %v2149 = vpop.f32.mrf.mxu0
        %v2150 = vadd.f32 %v1981, %v2149
        %2151 = vmatmul.bf16.gmra.mxu0 %v1757
        %v2152 = vpop.f32.mrf.mxu0
        %v2153 = vadd.f32 %v1984, %v2152
        %v2154 = vpop.f32.mrf.mxu0
        %v2155 = vadd.f32 %v1986, %v2154
        %2156 = vmatmul.bf16.gmra.mxu0 %v1761
        %v2157 = vpop.f32.mrf.mxu0
        %v2158 = vadd.f32 %v1989, %v2157
        %v2159 = vpop.f32.mrf.mxu0
        %v2160 = vadd.f32 %v1991, %v2159
        %2161 = vmatmul.bf16.gmra.mxu0 %v1765
        %v2162 = vpop.f32.mrf.mxu0
        %v2163 = vadd.f32 %v1994, %v2162
        %v2164 = vpop.f32.mrf.mxu0
        %v2165 = vadd.f32 %v1996, %v2164
        %2166 = vmatmul.bf16.gmra.mxu0 %v1769
        %v2167 = vpop.f32.mrf.mxu0
        %v2168 = vadd.f32 %v1999, %v2167
        %v2169 = vpop.f32.mrf.mxu0
        %v2170 = vadd.f32 %v2001, %v2169
        %2171 = vmatmul.bf16.gmra.mxu0 %v1773
        %v2172 = vpop.f32.mrf.mxu0
        %v2173 = vadd.f32 %v2004, %v2172
        %v2174 = vpop.f32.mrf.mxu0
        %v2175 = vadd.f32 %v2006, %v2174
        %2176 = vmatmul.bf16.gmra.mxu0 %v1777
        %v2177 = vpop.f32.mrf.mxu0
        %v2178 = vadd.f32 %v2009, %v2177
        %v2179 = vpop.f32.mrf.mxu0
        %v2180 = vadd.f32 %v2011, %v2179
        %2181 = vdwg.mxu0
        %2182 = vmatpush.bf16.msra.mxu0 %v802
        %2183 = vmatpush.bf16.msra.mxu0 %v801
        %2184 = vmatpush.bf16.msra.mxu0 %v800
        %2185 = vmatpush.bf16.msra.mxu0 %v799
        %2186 = vmatpush.bf16.msra.mxu0 %v798
        %2187 = vmatpush.bf16.msra.mxu0 %v797
        %2188 = vmatpush.bf16.msra.mxu0 %v796
        %2189 = vmatpush.bf16.msra.mxu0 %v795
        %2190 = vmatmul.bf16.gmra.mxu0 %v1654
        %v2191 = vpop.f32.mrf.mxu0
        %v2192 = vadd.f32 %v2023, %v2191
        %v2193 = vpop.f32.mrf.mxu0
        %v2194 = vadd.f32 %v2025, %v2193
        %2195 = vmatmul.bf16.gmra.mxu0 %v1658
        %v2196 = vpop.f32.mrf.mxu0
        %v2197 = vadd.f32 %v2028, %v2196
        %v2198 = vpop.f32.mrf.mxu0
        %v2199 = vadd.f32 %v2030, %v2198
        %2200 = vmatmul.bf16.gmra.mxu0 %v1662
        %v2201 = vpop.f32.mrf.mxu0
        %v2202 = vadd.f32 %v2033, %v2201
        %v2203 = vpop.f32.mrf.mxu0
        %v2204 = vadd.f32 %v2035, %v2203
        %2205 = vmatmul.bf16.gmra.mxu0 %v1666
        %v2206 = vpop.f32.mrf.mxu0
        %v2207 = vadd.f32 %v2038, %v2206
        %v2208 = vpop.f32.mrf.mxu0
        %v2209 = vadd.f32 %v2040, %v2208
        %2210 = vmatmul.bf16.gmra.mxu0 %v1670
        %v2211 = vpop.f32.mrf.mxu0
        %v2212 = vadd.f32 %v2043, %v2211
        %v2213 = vpop.f32.mrf.mxu0
        %v2214 = vadd.f32 %v2045, %v2213
        %2215 = vmatmul.bf16.gmra.mxu0 %v1674
        %v2216 = vpop.f32.mrf.mxu0
        %v2217 = vadd.f32 %v2048, %v2216
        %v2218 = vpop.f32.mrf.mxu0
        %v2219 = vadd.f32 %v2050, %v2218
        %2220 = vmatmul.bf16.gmra.mxu0 %v1678
        %v2221 = vpop.f32.mrf.mxu0
        %v2222 = vadd.f32 %v2053, %v2221
        %v2223 = vpop.f32.mrf.mxu0
        %v2224 = vadd.f32 %v2055, %v2223
        %2225 = vmatmul.bf16.gmra.mxu0 %v1682
        %v2226 = vpop.f32.mrf.mxu0
        %v2227 = vadd.f32 %v2058, %v2226
        %v2228 = vpop.f32.mrf.mxu0
        %v2229 = vadd.f32 %v2060, %v2228
        %2230 = vmatmul.bf16.gmra.mxu0 %v1686
        %v2231 = vpop.f32.mrf.mxu0
        %v2232 = vadd.f32 %v2063, %v2231
        %v2233 = vpop.f32.mrf.mxu0
        %v2234 = vadd.f32 %v2065, %v2233
        %2235 = vmatmul.bf16.gmra.mxu0 %v1690
        %v2236 = vpop.f32.mrf.mxu0
        %v2237 = vadd.f32 %v2068, %v2236
        %v2238 = vpop.f32.mrf.mxu0
        %v2239 = vadd.f32 %v2070, %v2238
        %2240 = vmatmul.bf16.gmra.mxu0 %v1694
        %v2241 = vpop.f32.mrf.mxu0
        %v2242 = vadd.f32 %v2073, %v2241
        %v2243 = vpop.f32.mrf.mxu0
        %v2244 = vadd.f32 %v2075, %v2243
        %2245 = vmatmul.bf16.gmra.mxu0 %v1698
        %v2246 = vpop.f32.mrf.mxu0
        %v2247 = vadd.f32 %v2078, %v2246
        %v2248 = vpop.f32.mrf.mxu0
        %v2249 = vadd.f32 %v2080, %v2248
        %2250 = vmatmul.bf16.gmra.mxu0 %v1702
        %v2251 = vpop.f32.mrf.mxu0
        %v2252 = vadd.f32 %v2083, %v2251
        %v2253 = vpop.f32.mrf.mxu0
        %v2254 = vadd.f32 %v2085, %v2253
        %2255 = vmatmul.bf16.gmra.mxu0 %v1706
        %v2256 = vpop.f32.mrf.mxu0
        %v2257 = vadd.f32 %v2088, %v2256
        %v2258 = vpop.f32.mrf.mxu0
        %v2259 = vadd.f32 %v2090, %v2258
        %2260 = vmatmul.bf16.gmra.mxu0 %v1710
        %v2261 = vpop.f32.mrf.mxu0
        %v2262 = vadd.f32 %v2093, %v2261
        %v2263 = vpop.f32.mrf.mxu0
        %v2264 = vadd.f32 %v2095, %v2263
        %2265 = vmatmul.bf16.gmra.mxu0 %v1714
        %v2266 = vpop.f32.mrf.mxu0
        %v2267 = vadd.f32 %v2098, %v2266
        %v2268 = vpop.f32.mrf.mxu0
        %v2269 = vadd.f32 %v2100, %v2268
        %2270 = vmatmul.bf16.gmra.mxu0 %v1718
        %v2271 = vpop.f32.mrf.mxu0
        %v2272 = vadd.f32 %v2103, %v2271
        %v2273 = vpop.f32.mrf.mxu0
        %v2274 = vadd.f32 %v2105, %v2273
        %2275 = vmatmul.bf16.gmra.mxu0 %v1722
        %v2276 = vpop.f32.mrf.mxu0
        %v2277 = vadd.f32 %v2108, %v2276
        %v2278 = vpop.f32.mrf.mxu0
        %v2279 = vadd.f32 %v2110, %v2278
        %2280 = vmatmul.bf16.gmra.mxu0 %v1726
        %v2281 = vpop.f32.mrf.mxu0
        %v2282 = vadd.f32 %v2113, %v2281
        %v2283 = vpop.f32.mrf.mxu0
        %v2284 = vadd.f32 %v2115, %v2283
        %2285 = vmatmul.bf16.gmra.mxu0 %v1730
        %v2286 = vpop.f32.mrf.mxu0
        %v2287 = vadd.f32 %v2118, %v2286
        %v2288 = vpop.f32.mrf.mxu0
        %v2289 = vadd.f32 %v2120, %v2288
        %2290 = vmatmul.bf16.gmra.mxu0 %v1734
        %v2291 = vpop.f32.mrf.mxu0
        %v2292 = vadd.f32 %v2123, %v2291
        %v2293 = vpop.f32.mrf.mxu0
        %v2294 = vadd.f32 %v2125, %v2293
        %2295 = vmatmul.bf16.gmra.mxu0 %v1738
        %v2296 = vpop.f32.mrf.mxu0
        %v2297 = vadd.f32 %v2128, %v2296
        %v2298 = vpop.f32.mrf.mxu0
        %v2299 = vadd.f32 %v2130, %v2298
        %2300 = vmatmul.bf16.gmra.mxu0 %v1742
        %v2301 = vpop.f32.mrf.mxu0
        %v2302 = vadd.f32 %v2133, %v2301
        %v2303 = vpop.f32.mrf.mxu0
        %v2304 = vadd.f32 %v2135, %v2303
        %2305 = vmatmul.bf16.gmra.mxu0 %v1746
        %v2306 = vpop.f32.mrf.mxu0
        %v2307 = vadd.f32 %v2138, %v2306
        %v2308 = vpop.f32.mrf.mxu0
        %v2309 = vadd.f32 %v2140, %v2308
        %2310 = vmatmul.bf16.gmra.mxu0 %v1750
        %v2311 = vpop.f32.mrf.mxu0
        %v2312 = vadd.f32 %v2143, %v2311
        %v2313 = vpop.f32.mrf.mxu0
        %v2314 = vadd.f32 %v2145, %v2313
        %2315 = vmatmul.bf16.gmra.mxu0 %v1754
        %v2316 = vpop.f32.mrf.mxu0
        %v2317 = vadd.f32 %v2148, %v2316
        %v2318 = vpop.f32.mrf.mxu0
        %v2319 = vadd.f32 %v2150, %v2318
        %2320 = vmatmul.bf16.gmra.mxu0 %v1758
        %v2321 = vpop.f32.mrf.mxu0
        %v2322 = vadd.f32 %v2153, %v2321
        %v2323 = vpop.f32.mrf.mxu0
        %v2324 = vadd.f32 %v2155, %v2323
        %2325 = vmatmul.bf16.gmra.mxu0 %v1762
        %v2326 = vpop.f32.mrf.mxu0
        %v2327 = vadd.f32 %v2158, %v2326
        %v2328 = vpop.f32.mrf.mxu0
        %v2329 = vadd.f32 %v2160, %v2328
        %2330 = vmatmul.bf16.gmra.mxu0 %v1766
        %v2331 = vpop.f32.mrf.mxu0
        %v2332 = vadd.f32 %v2163, %v2331
        %v2333 = vpop.f32.mrf.mxu0
        %v2334 = vadd.f32 %v2165, %v2333
        %2335 = vmatmul.bf16.gmra.mxu0 %v1770
        %v2336 = vpop.f32.mrf.mxu0
        %v2337 = vadd.f32 %v2168, %v2336
        %v2338 = vpop.f32.mrf.mxu0
        %v2339 = vadd.f32 %v2170, %v2338
        %2340 = vmatmul.bf16.gmra.mxu0 %v1774
        %v2341 = vpop.f32.mrf.mxu0
        %v2342 = vadd.f32 %v2173, %v2341
        %v2343 = vpop.f32.mrf.mxu0
        %v2344 = vadd.f32 %v2175, %v2343
        %2345 = vmatmul.bf16.gmra.mxu0 %v1778
        %v2346 = vpop.f32.mrf.mxu0
        %v2347 = vadd.f32 %v2178, %v2346
        %v2348 = vpop.f32.mrf.mxu0
        %v2349 = vadd.f32 %v2180, %v2348
        %2350 = vdwg.mxu0
        %2351 = vmatpush.bf16.msra.mxu0 %v810
        %2352 = vmatpush.bf16.msra.mxu0 %v809
        %2353 = vmatpush.bf16.msra.mxu0 %v808
        %2354 = vmatpush.bf16.msra.mxu0 %v807
        %2355 = vmatpush.bf16.msra.mxu0 %v806
        %2356 = vmatpush.bf16.msra.mxu0 %v805
        %2357 = vmatpush.bf16.msra.mxu0 %v804
        %2358 = vmatpush.bf16.msra.mxu0 %v803
        %2359 = vmatmul.bf16.gmra.mxu0 %v1655
        %v2360 = vpop.f32.mrf.mxu0
        %v2361 = vadd.f32 %v2192, %v2360
        %v2362 = vpop.f32.mrf.mxu0
        %v2363 = vadd.f32 %v2194, %v2362
        %2364 = vmatmul.bf16.gmra.mxu0 %v1659
        %v2365 = vpop.f32.mrf.mxu0
        %v2366 = vadd.f32 %v2197, %v2365
        %v2367 = vpop.f32.mrf.mxu0
        %v2368 = vadd.f32 %v2199, %v2367
        %2369 = vmatmul.bf16.gmra.mxu0 %v1663
        %v2370 = vpop.f32.mrf.mxu0
        %v2371 = vadd.f32 %v2202, %v2370
        %v2372 = vpop.f32.mrf.mxu0
        %v2373 = vadd.f32 %v2204, %v2372
        %2374 = vmatmul.bf16.gmra.mxu0 %v1667
        %v2375 = vpop.f32.mrf.mxu0
        %v2376 = vadd.f32 %v2207, %v2375
        %v2377 = vpop.f32.mrf.mxu0
        %v2378 = vadd.f32 %v2209, %v2377
        %2379 = vmatmul.bf16.gmra.mxu0 %v1671
        %v2380 = vpop.f32.mrf.mxu0
        %v2381 = vadd.f32 %v2212, %v2380
        %v2382 = vpop.f32.mrf.mxu0
        %v2383 = vadd.f32 %v2214, %v2382
        %2384 = vmatmul.bf16.gmra.mxu0 %v1675
        %v2385 = vpop.f32.mrf.mxu0
        %v2386 = vadd.f32 %v2217, %v2385
        %v2387 = vpop.f32.mrf.mxu0
        %v2388 = vadd.f32 %v2219, %v2387
        %2389 = vmatmul.bf16.gmra.mxu0 %v1679
        %v2390 = vpop.f32.mrf.mxu0
        %v2391 = vadd.f32 %v2222, %v2390
        %v2392 = vpop.f32.mrf.mxu0
        %v2393 = vadd.f32 %v2224, %v2392
        %2394 = vmatmul.bf16.gmra.mxu0 %v1683
        %v2395 = vpop.f32.mrf.mxu0
        %v2396 = vadd.f32 %v2227, %v2395
        %v2397 = vpop.f32.mrf.mxu0
        %v2398 = vadd.f32 %v2229, %v2397
        %2399 = vmatmul.bf16.gmra.mxu0 %v1687
        %v2400 = vpop.f32.mrf.mxu0
        %v2401 = vadd.f32 %v2232, %v2400
        %v2402 = vpop.f32.mrf.mxu0
        %v2403 = vadd.f32 %v2234, %v2402
        %2404 = vmatmul.bf16.gmra.mxu0 %v1691
        %v2405 = vpop.f32.mrf.mxu0
        %v2406 = vadd.f32 %v2237, %v2405
        %v2407 = vpop.f32.mrf.mxu0
        %v2408 = vadd.f32 %v2239, %v2407
        %2409 = vmatmul.bf16.gmra.mxu0 %v1695
        %v2410 = vpop.f32.mrf.mxu0
        %v2411 = vadd.f32 %v2242, %v2410
        %v2412 = vpop.f32.mrf.mxu0
        %v2413 = vadd.f32 %v2244, %v2412
        %2414 = vmatmul.bf16.gmra.mxu0 %v1699
        %v2415 = vpop.f32.mrf.mxu0
        %v2416 = vadd.f32 %v2247, %v2415
        %v2417 = vpop.f32.mrf.mxu0
        %v2418 = vadd.f32 %v2249, %v2417
        %2419 = vmatmul.bf16.gmra.mxu0 %v1703
        %v2420 = vpop.f32.mrf.mxu0
        %v2421 = vadd.f32 %v2252, %v2420
        %v2422 = vpop.f32.mrf.mxu0
        %v2423 = vadd.f32 %v2254, %v2422
        %2424 = vmatmul.bf16.gmra.mxu0 %v1707
        %v2425 = vpop.f32.mrf.mxu0
        %v2426 = vadd.f32 %v2257, %v2425
        %v2427 = vpop.f32.mrf.mxu0
        %v2428 = vadd.f32 %v2259, %v2427
        %2429 = vmatmul.bf16.gmra.mxu0 %v1711
        %v2430 = vpop.f32.mrf.mxu0
        %v2431 = vadd.f32 %v2262, %v2430
        %v2432 = vpop.f32.mrf.mxu0
        %v2433 = vadd.f32 %v2264, %v2432
        %2434 = vmatmul.bf16.gmra.mxu0 %v1715
        %v2435 = vpop.f32.mrf.mxu0
        %v2436 = vadd.f32 %v2267, %v2435
        %v2437 = vpop.f32.mrf.mxu0
        %v2438 = vadd.f32 %v2269, %v2437
        %2439 = vmatmul.bf16.gmra.mxu0 %v1719
        %v2440 = vpop.f32.mrf.mxu0
        %v2441 = vadd.f32 %v2272, %v2440
        %v2442 = vpop.f32.mrf.mxu0
        %v2443 = vadd.f32 %v2274, %v2442
        %2444 = vmatmul.bf16.gmra.mxu0 %v1723
        %v2445 = vpop.f32.mrf.mxu0
        %v2446 = vadd.f32 %v2277, %v2445
        %v2447 = vpop.f32.mrf.mxu0
        %v2448 = vadd.f32 %v2279, %v2447
        %2449 = vmatmul.bf16.gmra.mxu0 %v1727
        %v2450 = vpop.f32.mrf.mxu0
        %v2451 = vadd.f32 %v2282, %v2450
        %v2452 = vpop.f32.mrf.mxu0
        %v2453 = vadd.f32 %v2284, %v2452
        %2454 = vmatmul.bf16.gmra.mxu0 %v1731
        %v2455 = vpop.f32.mrf.mxu0
        %v2456 = vadd.f32 %v2287, %v2455
        %v2457 = vpop.f32.mrf.mxu0
        %v2458 = vadd.f32 %v2289, %v2457
        %2459 = vmatmul.bf16.gmra.mxu0 %v1735
        %v2460 = vpop.f32.mrf.mxu0
        %v2461 = vadd.f32 %v2292, %v2460
        %v2462 = vpop.f32.mrf.mxu0
        %v2463 = vadd.f32 %v2294, %v2462
        %2464 = vmatmul.bf16.gmra.mxu0 %v1739
        %v2465 = vpop.f32.mrf.mxu0
        %v2466 = vadd.f32 %v2297, %v2465
        %v2467 = vpop.f32.mrf.mxu0
        %v2468 = vadd.f32 %v2299, %v2467
        %2469 = vmatmul.bf16.gmra.mxu0 %v1743
        %v2470 = vpop.f32.mrf.mxu0
        %v2471 = vadd.f32 %v2302, %v2470
        %v2472 = vpop.f32.mrf.mxu0
        %v2473 = vadd.f32 %v2304, %v2472
        %2474 = vmatmul.bf16.gmra.mxu0 %v1747
        %v2475 = vpop.f32.mrf.mxu0
        %v2476 = vadd.f32 %v2307, %v2475
        %v2477 = vpop.f32.mrf.mxu0
        %v2478 = vadd.f32 %v2309, %v2477
        %2479 = vmatmul.bf16.gmra.mxu0 %v1751
        %v2480 = vpop.f32.mrf.mxu0
        %v2481 = vadd.f32 %v2312, %v2480
        %v2482 = vpop.f32.mrf.mxu0
        %v2483 = vadd.f32 %v2314, %v2482
        %2484 = vmatmul.bf16.gmra.mxu0 %v1755
        %v2485 = vpop.f32.mrf.mxu0
        %v2486 = vadd.f32 %v2317, %v2485
        %v2487 = vpop.f32.mrf.mxu0
        %v2488 = vadd.f32 %v2319, %v2487
        %2489 = vmatmul.bf16.gmra.mxu0 %v1759
        %v2490 = vpop.f32.mrf.mxu0
        %v2491 = vadd.f32 %v2322, %v2490
        %v2492 = vpop.f32.mrf.mxu0
        %v2493 = vadd.f32 %v2324, %v2492
        %2494 = vmatmul.bf16.gmra.mxu0 %v1763
        %v2495 = vpop.f32.mrf.mxu0
        %v2496 = vadd.f32 %v2327, %v2495
        %v2497 = vpop.f32.mrf.mxu0
        %v2498 = vadd.f32 %v2329, %v2497
        %2499 = vmatmul.bf16.gmra.mxu0 %v1767
        %v2500 = vpop.f32.mrf.mxu0
        %v2501 = vadd.f32 %v2332, %v2500
        %v2502 = vpop.f32.mrf.mxu0
        %v2503 = vadd.f32 %v2334, %v2502
        %2504 = vmatmul.bf16.gmra.mxu0 %v1771
        %v2505 = vpop.f32.mrf.mxu0
        %v2506 = vadd.f32 %v2337, %v2505
        %v2507 = vpop.f32.mrf.mxu0
        %v2508 = vadd.f32 %v2339, %v2507
        %2509 = vmatmul.bf16.gmra.mxu0 %v1775
        %v2510 = vpop.f32.mrf.mxu0
        %v2511 = vadd.f32 %v2342, %v2510
        %v2512 = vpop.f32.mrf.mxu0
        %v2513 = vadd.f32 %v2344, %v2512
        %2514 = vmatmul.bf16.gmra.mxu0 %v1779
        %v2515 = vpop.f32.mrf.mxu0
        %v2516 = vadd.f32 %v2347, %v2515
        %v2517 = vpop.f32.mrf.mxu0
        %v2518 = vadd.f32 %v2349, %v2517
        %2519 = vdwg.mxu0
        %v2520 = vadd.f32 %v1780, %v2361
        %v2521 = vadd.f32 %v1781, %v2363
        %v2522 = vadd.f32 %v1782, %v2366
        %v2523 = vadd.f32 %v1783, %v2368
        %v2524 = vadd.f32 %v1784, %v2371
        %v2525 = vadd.f32 %v1785, %v2373
        %v2526 = vadd.f32 %v1786, %v2376
        %v2527 = vadd.f32 %v1787, %v2378
        %v2528 = vadd.f32 %v1788, %v2381
        %v2529 = vadd.f32 %v1789, %v2383
        %v2530 = vadd.f32 %v1790, %v2386
        %v2531 = vadd.f32 %v1791, %v2388
        %v2532 = vadd.f32 %v1792, %v2391
        %v2533 = vadd.f32 %v1793, %v2393
        %v2534 = vadd.f32 %v1794, %v2396
        %v2535 = vadd.f32 %v1795, %v2398
        %v2536 = vadd.f32 %v1796, %v2401
        %v2537 = vadd.f32 %v1797, %v2403
        %v2538 = vadd.f32 %v1798, %v2406
        %v2539 = vadd.f32 %v1799, %v2408
        %v2540 = vadd.f32 %v1800, %v2411
        %v2541 = vadd.f32 %v1801, %v2413
        %v2542 = vadd.f32 %v1802, %v2416
        %v2543 = vadd.f32 %v1803, %v2418
        %v2544 = vadd.f32 %v1804, %v2421
        %v2545 = vadd.f32 %v1805, %v2423
        %v2546 = vadd.f32 %v1806, %v2426
        %v2547 = vadd.f32 %v1807, %v2428
        %v2548 = vadd.f32 %v1808, %v2431
        %v2549 = vadd.f32 %v1809, %v2433
        %v2550 = vadd.f32 %v1810, %v2436
        %v2551 = vadd.f32 %v1811, %v2438
        %v2552 = vadd.f32 %v1812, %v2441
        %v2553 = vadd.f32 %v1813, %v2443
        %v2554 = vadd.f32 %v1814, %v2446
        %v2555 = vadd.f32 %v1815, %v2448
        %v2556 = vadd.f32 %v1816, %v2451
        %v2557 = vadd.f32 %v1817, %v2453
        %v2558 = vadd.f32 %v1818, %v2456
        %v2559 = vadd.f32 %v1819, %v2458
        %v2560 = vadd.f32 %v1820, %v2461
        %v2561 = vadd.f32 %v1821, %v2463
        %v2562 = vadd.f32 %v1822, %v2466
        %v2563 = vadd.f32 %v1823, %v2468
        %v2564 = vadd.f32 %v1824, %v2471
        %v2565 = vadd.f32 %v1825, %v2473
        %v2566 = vadd.f32 %v1826, %v2476
        %v2567 = vadd.f32 %v1827, %v2478
        %v2568 = vadd.f32 %v1828, %v2481
        %v2569 = vadd.f32 %v1829, %v2483
        %v2570 = vadd.f32 %v1830, %v2486
        %v2571 = vadd.f32 %v1831, %v2488
        %v2572 = vadd.f32 %v1832, %v2491
        %v2573 = vadd.f32 %v1833, %v2493
        %v2574 = vadd.f32 %v1834, %v2496
        %v2575 = vadd.f32 %v1835, %v2498
        %v2576 = vadd.f32 %v1836, %v2501
        %v2577 = vadd.f32 %v1837, %v2503
        %v2578 = vadd.f32 %v1838, %v2506
        %v2579 = vadd.f32 %v1839, %v2508
        %v2580 = vadd.f32 %v1840, %v2511
        %v2581 = vadd.f32 %v1841, %v2513
        %v2582 = vadd.f32 %v1842, %v2516
        %v2583 = vadd.f32 %v1843, %v2518
        %2584 = vst [vmem:[#allocation2] sm:$0xff] %v2520
        %2585 = vst [vmem:[#allocation2 + $0x8] sm:$0xff] %v2521
        %2586 = vst [vmem:[#allocation2 + $0x10] sm:$0xff] %v2522
        %2587 = vst [vmem:[#allocation2 + $0x18] sm:$0xff] %v2523
        %2588 = vst [vmem:[#allocation2 + $0x20] sm:$0xff] %v2524
        %2589 = vst [vmem:[#allocation2 + $0x28] sm:$0xff] %v2525
        %2590 = vst [vmem:[#allocation2 + $0x30] sm:$0xff] %v2526
        %2591 = vst [vmem:[#allocation2 + $0x38] sm:$0xff] %v2527
        %2592 = vst [vmem:[#allocation2 + $0x40] sm:$0xff] %v2528
        %2593 = vst [vmem:[#allocation2 + $0x48] sm:$0xff] %v2529
        %2594 = vst [vmem:[#allocation2 + $0x50] sm:$0xff] %v2530
        %2595 = vst [vmem:[#allocation2 + $0x58] sm:$0xff] %v2531
        %2596 = vst [vmem:[#allocation2 + $0x60] sm:$0xff] %v2532
        %2597 = vst [vmem:[#allocation2 + $0x68] sm:$0xff] %v2533
        %2598 = vst [vmem:[#allocation2 + $0x70] sm:$0xff] %v2534
        %2599 = vst [vmem:[#allocation2 + $0x78] sm:$0xff] %v2535
        %2600 = vst [vmem:[#allocation2 + $0x80] sm:$0xff] %v2536
        %2601 = vst [vmem:[#allocation2 + $0x88] sm:$0xff] %v2537
        %2602 = vst [vmem:[#allocation2 + $0x90] sm:$0xff] %v2538
        %2603 = vst [vmem:[#allocation2 + $0x98] sm:$0xff] %v2539
        %2604 = vst [vmem:[#allocation2 + $0xa0] sm:$0xff] %v2540
        %2605 = vst [vmem:[#allocation2 + $0xa8] sm:$0xff] %v2541
        %2606 = vst [vmem:[#allocation2 + $0xb0] sm:$0xff] %v2542
        %2607 = vst [vmem:[#allocation2 + $0xb8] sm:$0xff] %v2543
        %2608 = vst [vmem:[#allocation2 + $0xc0] sm:$0xff] %v2544
        %2609 = vst [vmem:[#allocation2 + $0xc8] sm:$0xff] %v2545
        %2610 = vst [vmem:[#allocation2 + $0xd0] sm:$0xff] %v2546
        %2611 = vst [vmem:[#allocation2 + $0xd8] sm:$0xff] %v2547
        %2612 = vst [vmem:[#allocation2 + $0xe0] sm:$0xff] %v2548
        %2613 = vst [vmem:[#allocation2 + $0xe8] sm:$0xff] %v2549
        %2614 = vst [vmem:[#allocation2 + $0xf0] sm:$0xff] %v2550
        %2615 = vst [vmem:[#allocation2 + $0xf8] sm:$0xff] %v2551
        %2616 = vst [vmem:[#allocation2 + $0x100] sm:$0xff] %v2552
        %2617 = vst [vmem:[#allocation2 + $0x108] sm:$0xff] %v2553
        %2618 = vst [vmem:[#allocation2 + $0x110] sm:$0xff] %v2554
        %2619 = vst [vmem:[#allocation2 + $0x118] sm:$0xff] %v2555
        %2620 = vst [vmem:[#allocation2 + $0x120] sm:$0xff] %v2556
        %2621 = vst [vmem:[#allocation2 + $0x128] sm:$0xff] %v2557
        %2622 = vst [vmem:[#allocation2 + $0x130] sm:$0xff] %v2558
        %2623 = vst [vmem:[#allocation2 + $0x138] sm:$0xff] %v2559
        %2624 = vst [vmem:[#allocation2 + $0x140] sm:$0xff] %v2560
        %2625 = vst [vmem:[#allocation2 + $0x148] sm:$0xff] %v2561
        %2626 = vst [vmem:[#allocation2 + $0x150] sm:$0xff] %v2562
        %2627 = vst [vmem:[#allocation2 + $0x158] sm:$0xff] %v2563
        %2628 = vst [vmem:[#allocation2 + $0x160] sm:$0xff] %v2564
        %2629 = vst [vmem:[#allocation2 + $0x168] sm:$0xff] %v2565
        %2630 = vst [vmem:[#allocation2 + $0x170] sm:$0xff] %v2566
        %2631 = vst [vmem:[#allocation2 + $0x178] sm:$0xff] %v2567
        %2632 = vst [vmem:[#allocation2 + $0x180] sm:$0xff] %v2568
        %2633 = vst [vmem:[#allocation2 + $0x188] sm:$0xff] %v2569
        %2634 = vst [vmem:[#allocation2 + $0x190] sm:$0xff] %v2570
        %2635 = vst [vmem:[#allocation2 + $0x198] sm:$0xff] %v2571
        %2636 = vst [vmem:[#allocation2 + $0x1a0] sm:$0xff] %v2572
        %2637 = vst [vmem:[#allocation2 + $0x1a8] sm:$0xff] %v2573
        %2638 = vst [vmem:[#allocation2 + $0x1b0] sm:$0xff] %v2574
        %2639 = vst [vmem:[#allocation2 + $0x1b8] sm:$0xff] %v2575
        %2640 = vst [vmem:[#allocation2 + $0x1c0] sm:$0xff] %v2576
        %2641 = vst [vmem:[#allocation2 + $0x1c8] sm:$0xff] %v2577
        %2642 = vst [vmem:[#allocation2 + $0x1d0] sm:$0xff] %v2578
        %2643 = vst [vmem:[#allocation2 + $0x1d8] sm:$0xff] %v2579
        %2644 = vst [vmem:[#allocation2 + $0x1e0] sm:$0xff] %v2580
        %2645 = vst [vmem:[#allocation2 + $0x1e8] sm:$0xff] %v2581
        %2646 = vst [vmem:[#allocation2 + $0x1f0] sm:$0xff] %v2582
        %2647 = vst [vmem:[#allocation2 + $0x1f8] sm:$0xff] %v2583
      $region52: #{three_d_interaction.3} parent=43 // pred_fallthru
        _
      %s2648 = sld [smem:[#allocation7 + %s50]]
      %p2649 = scmp.eq.s32.totalorder %s2648, 1
      // Predicated region
      $region53: #{three_d_interaction.3} parent=43 // pred_check
        %p2650 = pneg %p2649
      $region54: #{three_d_interaction.3} parent=43 // pred_check_branch
        %2652 = sbr.rel (%p2650) target = $region56
      $region55: #{three_d_interaction.3} parent=43 // pred_region
        %v2653 = vld [vmem:[#allocation2] sm:$0xff]
        %v2654 = vld [vmem:[#allocation2 + $0x8] sm:$0xff]
        %v2655 = vld [vmem:[#allocation2 + $0x10] sm:$0xff]
        %v2656 = vld [vmem:[#allocation2 + $0x18] sm:$0xff]
        %v2657 = vld [vmem:[#allocation2 + $0x20] sm:$0xff]
        %v2658 = vld [vmem:[#allocation2 + $0x28] sm:$0xff]
        %v2659 = vld [vmem:[#allocation2 + $0x30] sm:$0xff]
        %v2660 = vld [vmem:[#allocation2 + $0x38] sm:$0xff]
        %v2661 = vld [vmem:[#allocation2 + $0x40] sm:$0xff]
        %v2662 = vld [vmem:[#allocation2 + $0x48] sm:$0xff]
        %v2663 = vld [vmem:[#allocation2 + $0x50] sm:$0xff]
        %v2664 = vld [vmem:[#allocation2 + $0x58] sm:$0xff]
        %v2665 = vld [vmem:[#allocation2 + $0x60] sm:$0xff]
        %v2666 = vld [vmem:[#allocation2 + $0x68] sm:$0xff]
        %v2667 = vld [vmem:[#allocation2 + $0x70] sm:$0xff]
        %v2668 = vld [vmem:[#allocation2 + $0x78] sm:$0xff]
        %v2669 = vld [vmem:[#allocation2 + $0x80] sm:$0xff]
        %v2670 = vld [vmem:[#allocation2 + $0x88] sm:$0xff]
        %v2671 = vld [vmem:[#allocation2 + $0x90] sm:$0xff]
        %v2672 = vld [vmem:[#allocation2 + $0x98] sm:$0xff]
        %v2673 = vld [vmem:[#allocation2 + $0xa0] sm:$0xff]
        %v2674 = vld [vmem:[#allocation2 + $0xa8] sm:$0xff]
        %v2675 = vld [vmem:[#allocation2 + $0xb0] sm:$0xff]
        %v2676 = vld [vmem:[#allocation2 + $0xb8] sm:$0xff]
        %v2677 = vld [vmem:[#allocation2 + $0xc0] sm:$0xff]
        %v2678 = vld [vmem:[#allocation2 + $0xc8] sm:$0xff]
        %v2679 = vld [vmem:[#allocation2 + $0xd0] sm:$0xff]
        %v2680 = vld [vmem:[#allocation2 + $0xd8] sm:$0xff]
        %v2681 = vld [vmem:[#allocation2 + $0xe0] sm:$0xff]
        %v2682 = vld [vmem:[#allocation2 + $0xe8] sm:$0xff]
        %v2683 = vld [vmem:[#allocation2 + $0xf0] sm:$0xff]
        %v2684 = vld [vmem:[#allocation2 + $0xf8] sm:$0xff]
        %v2685 = vld [vmem:[#allocation2 + $0x100] sm:$0xff]
        %v2686 = vld [vmem:[#allocation2 + $0x108] sm:$0xff]
        %v2687 = vld [vmem:[#allocation2 + $0x110] sm:$0xff]
        %v2688 = vld [vmem:[#allocation2 + $0x118] sm:$0xff]
        %v2689 = vld [vmem:[#allocation2 + $0x120] sm:$0xff]
        %v2690 = vld [vmem:[#allocation2 + $0x128] sm:$0xff]
        %v2691 = vld [vmem:[#allocation2 + $0x130] sm:$0xff]
        %v2692 = vld [vmem:[#allocation2 + $0x138] sm:$0xff]
        %v2693 = vld [vmem:[#allocation2 + $0x140] sm:$0xff]
        %v2694 = vld [vmem:[#allocation2 + $0x148] sm:$0xff]
        %v2695 = vld [vmem:[#allocation2 + $0x150] sm:$0xff]
        %v2696 = vld [vmem:[#allocation2 + $0x158] sm:$0xff]
        %v2697 = vld [vmem:[#allocation2 + $0x160] sm:$0xff]
        %v2698 = vld [vmem:[#allocation2 + $0x168] sm:$0xff]
        %v2699 = vld [vmem:[#allocation2 + $0x170] sm:$0xff]
        %v2700 = vld [vmem:[#allocation2 + $0x178] sm:$0xff]
        %v2701 = vld [vmem:[#allocation2 + $0x180] sm:$0xff]
        %v2702 = vld [vmem:[#allocation2 + $0x188] sm:$0xff]
        %v2703 = vld [vmem:[#allocation2 + $0x190] sm:$0xff]
        %v2704 = vld [vmem:[#allocation2 + $0x198] sm:$0xff]
        %v2705 = vld [vmem:[#allocation2 + $0x1a0] sm:$0xff]
        %v2706 = vld [vmem:[#allocation2 + $0x1a8] sm:$0xff]
        %v2707 = vld [vmem:[#allocation2 + $0x1b0] sm:$0xff]
        %v2708 = vld [vmem:[#allocation2 + $0x1b8] sm:$0xff]
        %v2709 = vld [vmem:[#allocation2 + $0x1c0] sm:$0xff]
        %v2710 = vld [vmem:[#allocation2 + $0x1c8] sm:$0xff]
        %v2711 = vld [vmem:[#allocation2 + $0x1d0] sm:$0xff]
        %v2712 = vld [vmem:[#allocation2 + $0x1d8] sm:$0xff]
        %v2713 = vld [vmem:[#allocation2 + $0x1e0] sm:$0xff]
        %v2714 = vld [vmem:[#allocation2 + $0x1e8] sm:$0xff]
        %v2715 = vld [vmem:[#allocation2 + $0x1f0] sm:$0xff]
        %v2716 = vld [vmem:[#allocation2 + $0x1f8] sm:$0xff]
        %v2717 = vld [vmem:[%s9] sm:$0xff]
        %v2718 = vld [vmem:[%s9 + $0x8] sm:$0xff]
        %v2719 = vld [vmem:[%s9 + $0x10] sm:$0xff]
        %v2720 = vld [vmem:[%s9 + $0x18] sm:$0xff]
        %v2721 = vld [vmem:[%s9 + $0x20] sm:$0xff]
        %v2722 = vld [vmem:[%s9 + $0x28] sm:$0xff]
        %v2723 = vld [vmem:[%s9 + $0x30] sm:$0xff]
        %v2724 = vld [vmem:[%s9 + $0x38] sm:$0xff]
        %v2725 = vld [vmem:[%s9 + $0x40] sm:$0xff]
        %v2726 = vld [vmem:[%s9 + $0x48] sm:$0xff]
        %v2727 = vld [vmem:[%s9 + $0x50] sm:$0xff]
        %v2728 = vld [vmem:[%s9 + $0x58] sm:$0xff]
        %v2729 = vld [vmem:[%s9 + $0x60] sm:$0xff]
        %v2730 = vld [vmem:[%s9 + $0x68] sm:$0xff]
        %v2731 = vld [vmem:[%s9 + $0x70] sm:$0xff]
        %v2732 = vld [vmem:[%s9 + $0x78] sm:$0xff]
        %v2733 = vld [vmem:[%s10] sm:$0x1]
        %v2735 = vperm.slane %v2733, 0
        %2737 = vmatpush.msra.mxu0 %v2732
        %2738 = vmatpush.msra.mxu0 %v2731
        %2739 = vmatpush.msra.mxu0 %v2730
        %2740 = vmatpush.msra.mxu0 %v2729
        %2741 = vmatpush.msra.mxu0 %v2728
        %2742 = vmatpush.msra.mxu0 %v2727
        %2743 = vmatpush.msra.mxu0 %v2726
        %2744 = vmatpush.msra.mxu0 %v2725
        %2745 = vmatpush.msra.mxu0 %v2724
        %2746 = vmatpush.msra.mxu0 %v2723
        %2747 = vmatpush.msra.mxu0 %v2722
        %2748 = vmatpush.msra.mxu0 %v2721
        %2749 = vmatpush.msra.mxu0 %v2720
        %2750 = vmatpush.msra.mxu0 %v2719
        %2751 = vmatpush.msra.mxu0 %v2718
        %2752 = vmatpush.msra.mxu0 %v2717
        %2753 = vmatmul.f32.gmra.mxu0 %v2653
        %v2754 = vpop.f32.mrf.mxu0
        %v2755 = vadd.f32 %v2735, %v2754
        %2756 = vmatmul.f32.gmra.mxu0 %v2654
        %v2757 = vpop.f32.mrf.mxu0
        %v2758 = vadd.f32 %v2735, %v2757
        %2759 = vmatmul.f32.gmra.mxu0 %v2655
        %v2760 = vpop.f32.mrf.mxu0
        %v2761 = vadd.f32 %v2735, %v2760
        %2762 = vmatmul.f32.gmra.mxu0 %v2656
        %v2763 = vpop.f32.mrf.mxu0
        %v2764 = vadd.f32 %v2735, %v2763
        %2765 = vmatmul.f32.gmra.mxu0 %v2657
        %v2766 = vpop.f32.mrf.mxu0
        %v2767 = vadd.f32 %v2735, %v2766
        %2768 = vmatmul.f32.gmra.mxu0 %v2658
        %v2769 = vpop.f32.mrf.mxu0
        %v2770 = vadd.f32 %v2735, %v2769
        %2771 = vmatmul.f32.gmra.mxu0 %v2659
        %v2772 = vpop.f32.mrf.mxu0
        %v2773 = vadd.f32 %v2735, %v2772
        %2774 = vmatmul.f32.gmra.mxu0 %v2660
        %v2775 = vpop.f32.mrf.mxu0
        %v2776 = vadd.f32 %v2735, %v2775
        %2777 = vmatmul.f32.gmra.mxu0 %v2661
        %v2778 = vpop.f32.mrf.mxu0
        %v2779 = vadd.f32 %v2735, %v2778
        %2780 = vmatmul.f32.gmra.mxu0 %v2662
        %v2781 = vpop.f32.mrf.mxu0
        %v2782 = vadd.f32 %v2735, %v2781
        %2783 = vmatmul.f32.gmra.mxu0 %v2663
        %v2784 = vpop.f32.mrf.mxu0
        %v2785 = vadd.f32 %v2735, %v2784
        %2786 = vmatmul.f32.gmra.mxu0 %v2664
        %v2787 = vpop.f32.mrf.mxu0
        %v2788 = vadd.f32 %v2735, %v2787
        %2789 = vmatmul.f32.gmra.mxu0 %v2665
        %v2790 = vpop.f32.mrf.mxu0
        %v2791 = vadd.f32 %v2735, %v2790
        %2792 = vmatmul.f32.gmra.mxu0 %v2666
        %v2793 = vpop.f32.mrf.mxu0
        %v2794 = vadd.f32 %v2735, %v2793
        %2795 = vmatmul.f32.gmra.mxu0 %v2667
        %v2796 = vpop.f32.mrf.mxu0
        %v2797 = vadd.f32 %v2735, %v2796
        %2798 = vmatmul.f32.gmra.mxu0 %v2668
        %v2799 = vpop.f32.mrf.mxu0
        %v2800 = vadd.f32 %v2735, %v2799
        %2801 = vmatmul.f32.gmra.mxu0 %v2669
        %v2802 = vpop.f32.mrf.mxu0
        %v2803 = vadd.f32 %v2735, %v2802
        %2804 = vmatmul.f32.gmra.mxu0 %v2670
        %v2805 = vpop.f32.mrf.mxu0
        %v2806 = vadd.f32 %v2735, %v2805
        %2807 = vmatmul.f32.gmra.mxu0 %v2671
        %v2808 = vpop.f32.mrf.mxu0
        %v2809 = vadd.f32 %v2735, %v2808
        %2810 = vmatmul.f32.gmra.mxu0 %v2672
        %v2811 = vpop.f32.mrf.mxu0
        %v2812 = vadd.f32 %v2735, %v2811
        %2813 = vmatmul.f32.gmra.mxu0 %v2673
        %v2814 = vpop.f32.mrf.mxu0
        %v2815 = vadd.f32 %v2735, %v2814
        %2816 = vmatmul.f32.gmra.mxu0 %v2674
        %v2817 = vpop.f32.mrf.mxu0
        %v2818 = vadd.f32 %v2735, %v2817
        %2819 = vmatmul.f32.gmra.mxu0 %v2675
        %v2820 = vpop.f32.mrf.mxu0
        %v2821 = vadd.f32 %v2735, %v2820
        %2822 = vmatmul.f32.gmra.mxu0 %v2676
        %v2823 = vpop.f32.mrf.mxu0
        %v2824 = vadd.f32 %v2735, %v2823
        %2825 = vmatmul.f32.gmra.mxu0 %v2677
        %v2826 = vpop.f32.mrf.mxu0
        %v2827 = vadd.f32 %v2735, %v2826
        %2828 = vmatmul.f32.gmra.mxu0 %v2678
        %v2829 = vpop.f32.mrf.mxu0
        %v2830 = vadd.f32 %v2735, %v2829
        %2831 = vmatmul.f32.gmra.mxu0 %v2679
        %v2832 = vpop.f32.mrf.mxu0
        %v2833 = vadd.f32 %v2735, %v2832
        %2834 = vmatmul.f32.gmra.mxu0 %v2680
        %v2835 = vpop.f32.mrf.mxu0
        %v2836 = vadd.f32 %v2735, %v2835
        %2837 = vmatmul.f32.gmra.mxu0 %v2681
        %v2838 = vpop.f32.mrf.mxu0
        %v2839 = vadd.f32 %v2735, %v2838
        %2840 = vmatmul.f32.gmra.mxu0 %v2682
        %v2841 = vpop.f32.mrf.mxu0
        %v2842 = vadd.f32 %v2735, %v2841
        %2843 = vmatmul.f32.gmra.mxu0 %v2683
        %v2844 = vpop.f32.mrf.mxu0
        %v2845 = vadd.f32 %v2735, %v2844
        %2846 = vmatmul.f32.gmra.mxu0 %v2684
        %v2847 = vpop.f32.mrf.mxu0
        %v2848 = vadd.f32 %v2735, %v2847
        %2849 = vmatmul.f32.gmra.mxu0 %v2685
        %v2850 = vpop.f32.mrf.mxu0
        %v2851 = vadd.f32 %v2735, %v2850
        %2852 = vmatmul.f32.gmra.mxu0 %v2686
        %v2853 = vpop.f32.mrf.mxu0
        %v2854 = vadd.f32 %v2735, %v2853
        %2855 = vmatmul.f32.gmra.mxu0 %v2687
        %v2856 = vpop.f32.mrf.mxu0
        %v2857 = vadd.f32 %v2735, %v2856
        %2858 = vmatmul.f32.gmra.mxu0 %v2688
        %v2859 = vpop.f32.mrf.mxu0
        %v2860 = vadd.f32 %v2735, %v2859
        %2861 = vmatmul.f32.gmra.mxu0 %v2689
        %v2862 = vpop.f32.mrf.mxu0
        %v2863 = vadd.f32 %v2735, %v2862
        %2864 = vmatmul.f32.gmra.mxu0 %v2690
        %v2865 = vpop.f32.mrf.mxu0
        %v2866 = vadd.f32 %v2735, %v2865
        %2867 = vmatmul.f32.gmra.mxu0 %v2691
        %v2868 = vpop.f32.mrf.mxu0
        %v2869 = vadd.f32 %v2735, %v2868
        %2870 = vmatmul.f32.gmra.mxu0 %v2692
        %v2871 = vpop.f32.mrf.mxu0
        %v2872 = vadd.f32 %v2735, %v2871
        %2873 = vmatmul.f32.gmra.mxu0 %v2693
        %v2874 = vpop.f32.mrf.mxu0
        %v2875 = vadd.f32 %v2735, %v2874
        %2876 = vmatmul.f32.gmra.mxu0 %v2694
        %v2877 = vpop.f32.mrf.mxu0
        %v2878 = vadd.f32 %v2735, %v2877
        %2879 = vmatmul.f32.gmra.mxu0 %v2695
        %v2880 = vpop.f32.mrf.mxu0
        %v2881 = vadd.f32 %v2735, %v2880
        %2882 = vmatmul.f32.gmra.mxu0 %v2696
        %v2883 = vpop.f32.mrf.mxu0
        %v2884 = vadd.f32 %v2735, %v2883
        %2885 = vmatmul.f32.gmra.mxu0 %v2697
        %v2886 = vpop.f32.mrf.mxu0
        %v2887 = vadd.f32 %v2735, %v2886
        %2888 = vmatmul.f32.gmra.mxu0 %v2698
        %v2889 = vpop.f32.mrf.mxu0
        %v2890 = vadd.f32 %v2735, %v2889
        %2891 = vmatmul.f32.gmra.mxu0 %v2699
        %v2892 = vpop.f32.mrf.mxu0
        %v2893 = vadd.f32 %v2735, %v2892
        %2894 = vmatmul.f32.gmra.mxu0 %v2700
        %v2895 = vpop.f32.mrf.mxu0
        %v2896 = vadd.f32 %v2735, %v2895
        %2897 = vmatmul.f32.gmra.mxu0 %v2701
        %v2898 = vpop.f32.mrf.mxu0
        %v2899 = vadd.f32 %v2735, %v2898
        %2900 = vmatmul.f32.gmra.mxu0 %v2702
        %v2901 = vpop.f32.mrf.mxu0
        %v2902 = vadd.f32 %v2735, %v2901
        %2903 = vmatmul.f32.gmra.mxu0 %v2703
        %v2904 = vpop.f32.mrf.mxu0
        %v2905 = vadd.f32 %v2735, %v2904
        %2906 = vmatmul.f32.gmra.mxu0 %v2704
        %v2907 = vpop.f32.mrf.mxu0
        %v2908 = vadd.f32 %v2735, %v2907
        %2909 = vmatmul.f32.gmra.mxu0 %v2705
        %v2910 = vpop.f32.mrf.mxu0
        %v2911 = vadd.f32 %v2735, %v2910
        %2912 = vmatmul.f32.gmra.mxu0 %v2706
        %v2913 = vpop.f32.mrf.mxu0
        %v2914 = vadd.f32 %v2735, %v2913
        %2915 = vmatmul.f32.gmra.mxu0 %v2707
        %v2916 = vpop.f32.mrf.mxu0
        %v2917 = vadd.f32 %v2735, %v2916
        %2918 = vmatmul.f32.gmra.mxu0 %v2708
        %v2919 = vpop.f32.mrf.mxu0
        %v2920 = vadd.f32 %v2735, %v2919
        %2921 = vmatmul.f32.gmra.mxu0 %v2709
        %v2922 = vpop.f32.mrf.mxu0
        %v2923 = vadd.f32 %v2735, %v2922
        %2924 = vmatmul.f32.gmra.mxu0 %v2710
        %v2925 = vpop.f32.mrf.mxu0
        %v2926 = vadd.f32 %v2735, %v2925
        %2927 = vmatmul.f32.gmra.mxu0 %v2711
        %v2928 = vpop.f32.mrf.mxu0
        %v2929 = vadd.f32 %v2735, %v2928
        %2930 = vmatmul.f32.gmra.mxu0 %v2712
        %v2931 = vpop.f32.mrf.mxu0
        %v2932 = vadd.f32 %v2735, %v2931
        %2933 = vmatmul.f32.gmra.mxu0 %v2713
        %v2934 = vpop.f32.mrf.mxu0
        %v2935 = vadd.f32 %v2735, %v2934
        %2936 = vmatmul.f32.gmra.mxu0 %v2714
        %v2937 = vpop.f32.mrf.mxu0
        %v2938 = vadd.f32 %v2735, %v2937
        %2939 = vmatmul.f32.gmra.mxu0 %v2715
        %v2940 = vpop.f32.mrf.mxu0
        %v2941 = vadd.f32 %v2735, %v2940
        %2942 = vmatmul.f32.gmra.mxu0 %v2716
        %v2943 = vpop.f32.mrf.mxu0
        %v2944 = vadd.f32 %v2735, %v2943
        %2945 = vdwg.mxu0
        %v2946 = vld [vmem:[%s373] sm:$0xff]
        %v2947 = vld [vmem:[%s373 + $0x8] sm:$0xff]
        %v2948 = vld [vmem:[%s373 + $0x10] sm:$0xff]
        %v2949 = vld [vmem:[%s373 + $0x18] sm:$0xff]
        %v2950 = vld [vmem:[%s373 + $0x20] sm:$0xff]
        %v2951 = vld [vmem:[%s373 + $0x28] sm:$0xff]
        %v2952 = vld [vmem:[%s373 + $0x30] sm:$0xff]
        %v2953 = vld [vmem:[%s373 + $0x38] sm:$0xff]
        %v2954 = vld [vmem:[%s373 + $0x40] sm:$0xff]
        %v2955 = vld [vmem:[%s373 + $0x48] sm:$0xff]
        %v2956 = vld [vmem:[%s373 + $0x50] sm:$0xff]
        %v2957 = vld [vmem:[%s373 + $0x58] sm:$0xff]
        %v2958 = vld [vmem:[%s373 + $0x60] sm:$0xff]
        %v2959 = vld [vmem:[%s373 + $0x68] sm:$0xff]
        %v2960 = vld [vmem:[%s373 + $0x70] sm:$0xff]
        %v2961 = vld [vmem:[%s373 + $0x78] sm:$0xff]
        %v2962 = vld [vmem:[%s373 + $0x80] sm:$0xff]
        %v2963 = vld [vmem:[%s373 + $0x88] sm:$0xff]
        %v2964 = vld [vmem:[%s373 + $0x90] sm:$0xff]
        %v2965 = vld [vmem:[%s373 + $0x98] sm:$0xff]
        %v2966 = vld [vmem:[%s373 + $0xa0] sm:$0xff]
        %v2967 = vld [vmem:[%s373 + $0xa8] sm:$0xff]
        %v2968 = vld [vmem:[%s373 + $0xb0] sm:$0xff]
        %v2969 = vld [vmem:[%s373 + $0xb8] sm:$0xff]
        %v2970 = vld [vmem:[%s373 + $0xc0] sm:$0xff]
        %v2971 = vld [vmem:[%s373 + $0xc8] sm:$0xff]
        %v2972 = vld [vmem:[%s373 + $0xd0] sm:$0xff]
        %v2973 = vld [vmem:[%s373 + $0xd8] sm:$0xff]
        %v2974 = vld [vmem:[%s373 + $0xe0] sm:$0xff]
        %v2975 = vld [vmem:[%s373 + $0xe8] sm:$0xff]
        %v2976 = vld [vmem:[%s373 + $0xf0] sm:$0xff]
        %v2977 = vld [vmem:[%s373 + $0xf8] sm:$0xff]
        %v2978 = vld [vmem:[%s373 + $0x100] sm:$0xff]
        %v2979 = vld [vmem:[%s373 + $0x108] sm:$0xff]
        %v2980 = vld [vmem:[%s373 + $0x110] sm:$0xff]
        %v2981 = vld [vmem:[%s373 + $0x118] sm:$0xff]
        %v2982 = vld [vmem:[%s373 + $0x120] sm:$0xff]
        %v2983 = vld [vmem:[%s373 + $0x128] sm:$0xff]
        %v2984 = vld [vmem:[%s373 + $0x130] sm:$0xff]
        %v2985 = vld [vmem:[%s373 + $0x138] sm:$0xff]
        %v2986 = vld [vmem:[%s373 + $0x140] sm:$0xff]
        %v2987 = vld [vmem:[%s373 + $0x148] sm:$0xff]
        %v2988 = vld [vmem:[%s373 + $0x150] sm:$0xff]
        %v2989 = vld [vmem:[%s373 + $0x158] sm:$0xff]
        %v2990 = vld [vmem:[%s373 + $0x160] sm:$0xff]
        %v2991 = vld [vmem:[%s373 + $0x168] sm:$0xff]
        %v2992 = vld [vmem:[%s373 + $0x170] sm:$0xff]
        %v2993 = vld [vmem:[%s373 + $0x178] sm:$0xff]
        %v2994 = vld [vmem:[%s373 + $0x180] sm:$0xff]
        %v2995 = vld [vmem:[%s373 + $0x188] sm:$0xff]
        %v2996 = vld [vmem:[%s373 + $0x190] sm:$0xff]
        %v2997 = vld [vmem:[%s373 + $0x198] sm:$0xff]
        %v2998 = vld [vmem:[%s373 + $0x1a0] sm:$0xff]
        %v2999 = vld [vmem:[%s373 + $0x1a8] sm:$0xff]
        %v3000 = vld [vmem:[%s373 + $0x1b0] sm:$0xff]
        %v3001 = vld [vmem:[%s373 + $0x1b8] sm:$0xff]
        %v3002 = vld [vmem:[%s373 + $0x1c0] sm:$0xff]
        %v3003 = vld [vmem:[%s373 + $0x1c8] sm:$0xff]
        %v3004 = vld [vmem:[%s373 + $0x1d0] sm:$0xff]
        %v3005 = vld [vmem:[%s373 + $0x1d8] sm:$0xff]
        %v3006 = vld [vmem:[%s373 + $0x1e0] sm:$0xff]
        %v3007 = vld [vmem:[%s373 + $0x1e8] sm:$0xff]
        %v3008 = vld [vmem:[%s373 + $0x1f0] sm:$0xff]
        %v3009 = vld [vmem:[%s373 + $0x1f8] sm:$0xff]
        %v3010 = vadd.f32 %v2946, %v2755
        %v3011 = vadd.f32 %v2947, %v2758
        %v3012 = vadd.f32 %v2948, %v2761
        %v3013 = vadd.f32 %v2949, %v2764
        %v3014 = vadd.f32 %v2950, %v2767
        %v3015 = vadd.f32 %v2951, %v2770
        %v3016 = vadd.f32 %v2952, %v2773
        %v3017 = vadd.f32 %v2953, %v2776
        %v3018 = vadd.f32 %v2954, %v2779
        %v3019 = vadd.f32 %v2955, %v2782
        %v3020 = vadd.f32 %v2956, %v2785
        %v3021 = vadd.f32 %v2957, %v2788
        %v3022 = vadd.f32 %v2958, %v2791
        %v3023 = vadd.f32 %v2959, %v2794
        %v3024 = vadd.f32 %v2960, %v2797
        %v3025 = vadd.f32 %v2961, %v2800
        %v3026 = vadd.f32 %v2962, %v2803
        %v3027 = vadd.f32 %v2963, %v2806
        %v3028 = vadd.f32 %v2964, %v2809
        %v3029 = vadd.f32 %v2965, %v2812
        %v3030 = vadd.f32 %v2966, %v2815
        %v3031 = vadd.f32 %v2967, %v2818
        %v3032 = vadd.f32 %v2968, %v2821
        %v3033 = vadd.f32 %v2969, %v2824
        %v3034 = vadd.f32 %v2970, %v2827
        %v3035 = vadd.f32 %v2971, %v2830
        %v3036 = vadd.f32 %v2972, %v2833
        %v3037 = vadd.f32 %v2973, %v2836
        %v3038 = vadd.f32 %v2974, %v2839
        %v3039 = vadd.f32 %v2975, %v2842
        %v3040 = vadd.f32 %v2976, %v2845
        %v3041 = vadd.f32 %v2977, %v2848
        %v3042 = vadd.f32 %v2978, %v2851
        %v3043 = vadd.f32 %v2979, %v2854
        %v3044 = vadd.f32 %v2980, %v2857
        %v3045 = vadd.f32 %v2981, %v2860
        %v3046 = vadd.f32 %v2982, %v2863
        %v3047 = vadd.f32 %v2983, %v2866
        %v3048 = vadd.f32 %v2984, %v2869
        %v3049 = vadd.f32 %v2985, %v2872
        %v3050 = vadd.f32 %v2986, %v2875
        %v3051 = vadd.f32 %v2987, %v2878
        %v3052 = vadd.f32 %v2988, %v2881
        %v3053 = vadd.f32 %v2989, %v2884
        %v3054 = vadd.f32 %v2990, %v2887
        %v3055 = vadd.f32 %v2991, %v2890
        %v3056 = vadd.f32 %v2992, %v2893
        %v3057 = vadd.f32 %v2993, %v2896
        %v3058 = vadd.f32 %v2994, %v2899
        %v3059 = vadd.f32 %v2995, %v2902
        %v3060 = vadd.f32 %v2996, %v2905
        %v3061 = vadd.f32 %v2997, %v2908
        %v3062 = vadd.f32 %v2998, %v2911
        %v3063 = vadd.f32 %v2999, %v2914
        %v3064 = vadd.f32 %v3000, %v2917
        %v3065 = vadd.f32 %v3001, %v2920
        %v3066 = vadd.f32 %v3002, %v2923
        %v3067 = vadd.f32 %v3003, %v2926
        %v3068 = vadd.f32 %v3004, %v2929
        %v3069 = vadd.f32 %v3005, %v2932
        %v3070 = vadd.f32 %v3006, %v2935
        %v3071 = vadd.f32 %v3007, %v2938
        %v3072 = vadd.f32 %v3008, %v2941
        %v3073 = vadd.f32 %v3009, %v2944
        %3074 = vst [vmem:[%s381] sm:$0xff] %v3010
        %3075 = vst [vmem:[%s381 + $0x8] sm:$0xff] %v3011
        %3076 = vst [vmem:[%s381 + $0x10] sm:$0xff] %v3012
        %3077 = vst [vmem:[%s381 + $0x18] sm:$0xff] %v3013
        %3078 = vst [vmem:[%s381 + $0x20] sm:$0xff] %v3014
        %3079 = vst [vmem:[%s381 + $0x28] sm:$0xff] %v3015
        %3080 = vst [vmem:[%s381 + $0x30] sm:$0xff] %v3016
        %3081 = vst [vmem:[%s381 + $0x38] sm:$0xff] %v3017
        %3082 = vst [vmem:[%s381 + $0x40] sm:$0xff] %v3018
        %3083 = vst [vmem:[%s381 + $0x48] sm:$0xff] %v3019
        %3084 = vst [vmem:[%s381 + $0x50] sm:$0xff] %v3020
        %3085 = vst [vmem:[%s381 + $0x58] sm:$0xff] %v3021
        %3086 = vst [vmem:[%s381 + $0x60] sm:$0xff] %v3022
        %3087 = vst [vmem:[%s381 + $0x68] sm:$0xff] %v3023
        %3088 = vst [vmem:[%s381 + $0x70] sm:$0xff] %v3024
        %3089 = vst [vmem:[%s381 + $0x78] sm:$0xff] %v3025
        %3090 = vst [vmem:[%s381 + $0x80] sm:$0xff] %v3026
        %3091 = vst [vmem:[%s381 + $0x88] sm:$0xff] %v3027
        %3092 = vst [vmem:[%s381 + $0x90] sm:$0xff] %v3028
        %3093 = vst [vmem:[%s381 + $0x98] sm:$0xff] %v3029
        %3094 = vst [vmem:[%s381 + $0xa0] sm:$0xff] %v3030
        %3095 = vst [vmem:[%s381 + $0xa8] sm:$0xff] %v3031
        %3096 = vst [vmem:[%s381 + $0xb0] sm:$0xff] %v3032
        %3097 = vst [vmem:[%s381 + $0xb8] sm:$0xff] %v3033
        %3098 = vst [vmem:[%s381 + $0xc0] sm:$0xff] %v3034
        %3099 = vst [vmem:[%s381 + $0xc8] sm:$0xff] %v3035
        %3100 = vst [vmem:[%s381 + $0xd0] sm:$0xff] %v3036
        %3101 = vst [vmem:[%s381 + $0xd8] sm:$0xff] %v3037
        %3102 = vst [vmem:[%s381 + $0xe0] sm:$0xff] %v3038
        %3103 = vst [vmem:[%s381 + $0xe8] sm:$0xff] %v3039
        %3104 = vst [vmem:[%s381 + $0xf0] sm:$0xff] %v3040
        %3105 = vst [vmem:[%s381 + $0xf8] sm:$0xff] %v3041
        %3106 = vst [vmem:[%s381 + $0x100] sm:$0xff] %v3042
        %3107 = vst [vmem:[%s381 + $0x108] sm:$0xff] %v3043
        %3108 = vst [vmem:[%s381 + $0x110] sm:$0xff] %v3044
        %3109 = vst [vmem:[%s381 + $0x118] sm:$0xff] %v3045
        %3110 = vst [vmem:[%s381 + $0x120] sm:$0xff] %v3046
        %3111 = vst [vmem:[%s381 + $0x128] sm:$0xff] %v3047
        %3112 = vst [vmem:[%s381 + $0x130] sm:$0xff] %v3048
        %3113 = vst [vmem:[%s381 + $0x138] sm:$0xff] %v3049
        %3114 = vst [vmem:[%s381 + $0x140] sm:$0xff] %v3050
        %3115 = vst [vmem:[%s381 + $0x148] sm:$0xff] %v3051
        %3116 = vst [vmem:[%s381 + $0x150] sm:$0xff] %v3052
        %3117 = vst [vmem:[%s381 + $0x158] sm:$0xff] %v3053
        %3118 = vst [vmem:[%s381 + $0x160] sm:$0xff] %v3054
        %3119 = vst [vmem:[%s381 + $0x168] sm:$0xff] %v3055
        %3120 = vst [vmem:[%s381 + $0x170] sm:$0xff] %v3056
        %3121 = vst [vmem:[%s381 + $0x178] sm:$0xff] %v3057
        %3122 = vst [vmem:[%s381 + $0x180] sm:$0xff] %v3058
        %3123 = vst [vmem:[%s381 + $0x188] sm:$0xff] %v3059
        %3124 = vst [vmem:[%s381 + $0x190] sm:$0xff] %v3060
        %3125 = vst [vmem:[%s381 + $0x198] sm:$0xff] %v3061
        %3126 = vst [vmem:[%s381 + $0x1a0] sm:$0xff] %v3062
        %3127 = vst [vmem:[%s381 + $0x1a8] sm:$0xff] %v3063
        %3128 = vst [vmem:[%s381 + $0x1b0] sm:$0xff] %v3064
        %3129 = vst [vmem:[%s381 + $0x1b8] sm:$0xff] %v3065
        %3130 = vst [vmem:[%s381 + $0x1c0] sm:$0xff] %v3066
        %3131 = vst [vmem:[%s381 + $0x1c8] sm:$0xff] %v3067
        %3132 = vst [vmem:[%s381 + $0x1d0] sm:$0xff] %v3068
        %3133 = vst [vmem:[%s381 + $0x1d8] sm:$0xff] %v3069
        %3134 = vst [vmem:[%s381 + $0x1e0] sm:$0xff] %v3070
        %3135 = vst [vmem:[%s381 + $0x1e8] sm:$0xff] %v3071
        %3136 = vst [vmem:[%s381 + $0x1f0] sm:$0xff] %v3072
        %3137 = vst [vmem:[%s381 + $0x1f8] sm:$0xff] %v3073
      $region56: #{three_d_interaction.3} parent=43 // pred_fallthru
        _
      %s3138 = sld [smem:[#allocation4 + %s50]]
      %s3139 = smul.u32 64, %s3138
      %p3140 = scmp.lt.s32.totalorder %s3139, 191
      %s3141 = scalar_select %p3140, %s3139, 191
      %s3142 = smul.addr %s3141, 8
      %s3143 = scalar_lea.vmem %s11, %s3142
      // Predicated region
      $region57: #{three_d_interaction.3} parent=43 // pred_check
        %p3144 = pneg %p224
      $region58: #{three_d_interaction.3} parent=43 // pred_check_branch
        %3146 = sbr.rel (%p3144) target = $region60
      $region59: #{three_d_interaction.3} parent=43 // pred_region
        %s3147 = sld [smem:[#allocation4 + %s50]]
        %s3148 = smul.u32 64, %s3147
      $region60: #{three_d_interaction.3} parent=43 // pred_fallthru
        _
    $region44: #{three_d_interaction.3} parent=5 // pred_fallthru
      _
    %p3149 = scmp.le.s32.totalorder 2, %s45
    // Predicated region
    $region61: #{three_d_interaction.3} parent=5 // pred_check
      %p3150 = pneg %p3149
    $region62: #{three_d_interaction.3} parent=5 // pred_check_branch
      %3152 = sbr.rel (%p3150) target = $region64
    $region63: #{three_d_interaction.3} parent=5 // pred_region
      %s3153 = ssub.s32 %s45, 2
      // Predicated region
      $region65: #{three_d_interaction.3} parent=63 // pred_check
        %p3154 = pneg %p230
      $region66: #{three_d_interaction.3} parent=63 // pred_check_branch
        %3156 = sbr.rel (%p3154) target = $region68
      $region67: #{three_d_interaction.3} parent=63 // pred_region
        %s3157 = sld [smem:[#allocation4 + %s51]]
        %s3158 = smul.u32 64, %s3157
        %p3159 = scmp.lt.s32.totalorder %s3158, 191
        %s3160 = scalar_select %p3159, %s3158, 191
        %s3161 = smul.addr %s3160, 8
        %s3162 = scalar_lea.vmem %s11, %s3161
      $region68: #{three_d_interaction.3} parent=63 // pred_fallthru
        _
    $region64: #{three_d_interaction.3} parent=5 // pred_fallthru
      _
  $region6: #{three_d_interaction.3} parent=0 // loop_footer
    %s49 = sadd.s32 1, %s45
  $region7: #{three_d_interaction.3} parent=0 // loop_footer_branch
    %44 = sbr.rel target = $region3
  $region8: #{three_d_interaction.3} parent=0 // loop_exit
    _

</llo_original>
